<compile_context>
chip_gen: v5e
topology: v5e:2x2
jax: 0.10.0
libtpu: 0.0.40
codegen_flags: <defaults>
</compile_context>

<pallas_src>
import jax
import jax.numpy as jnp
from jax.experimental import pallas as pl
from jax.experimental.pallas import tpu as pltpu

TB = 8  # images per grid step


# ------------------------------ Pallas kernel ------------------------------ #

def _cifarnet_kernel(x_ref, t1_ref, b1_ref, t2_ref, b2_ref,
                     wf1_ref, bf1_ref, wf2_ref, bf2_ref, wf3_ref, bf3_ref,
                     o_ref, acc_scr, pw1_scr, pool1_scr, pw2_scr):
    """One block of TB images per grid step.

    x_ref: [TB*32, 96] rows = [image*32 + h, w*3 + c] (f32).
    Conv weights are block-Toeplitz, even pooled columns in lanes 0..127 and odd
    pooled columns in lanes 128..255 (zero padded), so max over the two 128-wide
    halves realizes the W-direction 2-pool.
    """
    f32 = jnp.float32
    bf16 = jnp.bfloat16
    R1 = TB * 32 - 4   # conv1 output rows (incl. never-read cross-image rows)
    R2 = TB * 16 - 4   # conv2 output rows

    # ---- conv1: 5 row-shifted matmuls vs Toeplitz weights, f32 VMEM accumulate ----
    for ki in range(5):
        xa = x_ref[pl.ds(ki, R1), :].astype(bf16)                     # [R1, 96]
        part = jnp.dot(xa, t1_ref[ki], preferred_element_type=f32)    # [R1, 256]
        if ki == 0:
            acc_scr[pl.ds(0, R1), :] = part
        else:
            acc_scr[pl.ds(0, R1), :] += part

    # W-pool (max of even/odd halves) + bias + ReLU.  Pad lanes stay exactly 0.
    ev = acc_scr[pl.ds(0, R1), pl.ds(0, 128)]
    od = acc_scr[pl.ds(0, R1), pl.ds(128, 128)]
    pw1_scr[pl.ds(0, R1), :] = jnp.maximum(jnp.maximum(ev, od) + b1_ref[...], 0.0)
    pw1_scr[pl.ds(R1, 4), :] = jnp.zeros((4, 128), f32)               # defined tail

    # ---- H-pool conv1: one whole-tile stride-2 row max -> pool1 [TB*16, 128] ----
    pool1_scr[...] = jnp.maximum(pw1_scr[pl.ds(0, TB * 16, stride=2), :],
                                 pw1_scr[pl.ds(1, TB * 16, stride=2), :])

    # ---- conv2: same row-shifted Toeplitz scheme over pool1 ----
    for ki in range(5):
        xa = pool1_scr[pl.ds(ki, R2), :].astype(bf16)                 # [R2, 128]
        part = jnp.dot(xa, t2_ref[ki], preferred_element_type=f32)    # [R2, 256]
        if ki == 0:
            acc_scr[pl.ds(0, R2), :] = part
        else:
            acc_scr[pl.ds(0, R2), :] += part

    ev = acc_scr[pl.ds(0, R2), pl.ds(0, 128)]
    od = acc_scr[pl.ds(0, R2), pl.ds(128, 128)]
    pw2_scr[pl.ds(0, R2), :] = jnp.maximum(jnp.maximum(ev, od) + b2_ref[...], 0.0)

    # ---- H-pool conv2 fused with fc1 (flatten == sum of per-pooled-row matmuls) ----
    fc1_acc = None
    for p in range(5):
        ra = pw2_scr[pl.ds(2 * p, TB, stride=16), :]                  # [TB, 128]
        rb = pw2_scr[pl.ds(2 * p + 1, TB, stride=16), :]              # [TB, 128]
        pooled = jnp.maximum(ra, rb).astype(bf16)
        c = jnp.dot(pooled, wf1_ref[p], preferred_element_type=f32)   # [TB, 120]
        fc1_acc = c if fc1_acc is None else fc1_acc + c

    h1 = jnp.maximum(fc1_acc + bf1_ref[...], 0.0)                     # [TB, 120]
    h2 = jnp.maximum(
        jnp.dot(h1.astype(bf16), wf2_ref[...], preferred_element_type=f32)
        + bf2_ref[...], 0.0)                                          # [TB, 84]
    y = (jnp.dot(h2.astype(bf16), wf3_ref[...], preferred_element_type=f32)
         + bf3_ref[...])                                              # [TB, 10]
    o_ref[...] = y.astype(o_ref.dtype)


# --------------------- weight-side preprocessing (JAX) ---------------------- #

def _toeplitz_pair(w, w_in, in_pad, out_pad):
    """Conv weight [OC, C, KH, KW] -> [KH, in_pad, 2*out_pad] (even | odd halves).

    T[ki][w*C + c, q*OC + oc]           = w[oc, c, ki, w - 2q]       (even half)
    T[ki][w*C + c, out_pad + q*OC + oc] = w[oc, c, ki, w - (2q + 1)] (odd half)
    (zero where out of kernel range / in the lane padding), so that with
    activations laid out channels-innermost as rows[h, w*C + c]:
        conv[oh, 2q + par, oc] = sum_ki rows[oh + ki, :] @ T[ki][:, par_half].
    """
    OC, C, KH, KW = w.shape
    OW = w_in - KW + 1
    OWh = OW // 2
    wi = jnp.arange(w_in)
    qi = jnp.arange(OWh)
    wp = jnp.transpose(w, (2, 1, 0, 3))                       # [KH, C, OC, KW]

    def build(par):
        kj = wi[:, None] - (2 * qi[None, :] + par)             # [w_in, OWh]
        valid = (kj >= 0) & (kj < KW)
        g = wp[:, :, :, jnp.clip(kj, 0, KW - 1)]               # [KH, C, OC, w_in, OWh]
        g = jnp.where(valid[None, None, None], g, 0.0)
        g = jnp.transpose(g, (0, 3, 1, 4, 2))                  # [KH, w_in, C, OWh, OC]
        g = g.reshape(KH, w_in * C, OWh * OC)
        return jnp.pad(g, ((0, 0), (0, in_pad - w_in * C), (0, out_pad - OWh * OC)))

    return jnp.concatenate([build(0), build(1)], axis=-1)      # [KH, in_pad, 2*out_pad]


# -------------------------------- forward ---------------------------------- #

@jax.jit
def net_forward(x, params):
    f32, bf16 = jnp.float32, jnp.bfloat16
    B = x.shape[0]
    Bpad = ((B + TB - 1) // TB) * TB

    # Tiny weight preprocessing, independent of batch / activations.
    t1 = _toeplitz_pair(params["w1"].astype(f32), 32, 96, 128).astype(bf16)   # [5, 96, 256]
    t2 = _toeplitz_pair(params["w2"].astype(f32), 14, 128, 128).astype(bf16)  # [5,128, 256]
    b1p = jnp.zeros((1, 128), f32).at[0, :84].set(jnp.tile(params["b1"].astype(f32), 14))
    b2p = jnp.zeros((1, 128), f32).at[0, :80].set(jnp.tile(params["b2"].astype(f32), 5))
    # fc1: reorder its 400-dim input from torch's (c, h, w) flatten order to our pooled
    # (h, w, c) layout, split by pooled row h, pad the 80-wide input to 128 lanes.
    wf1s = jnp.transpose(params["wf1"].reshape(120, 16, 5, 5),
                         (2, 3, 1, 0)).reshape(5, 80, 120)
    wf1s = jnp.pad(wf1s, ((0, 0), (0, 48), (0, 0))).astype(bf16)              # [5,128,120]
    wf2 = params["wf2"].T.astype(bf16)                                        # [120, 84]
    wf3 = params["wf3"].T.astype(bf16)                                        # [84, 10]
    bf1 = params["bf1"].reshape(1, 120).astype(f32)
    bf2 = params["bf2"].reshape(1, 84).astype(f32)
    bf3 = params["bf3"].reshape(1, 10).astype(f32)

    # Input: NCHW -> channels-innermost rows [h, w*C + c], 32 rows per image,
    # batch padded with zeros to a multiple of TB.
    x_rows = jnp.transpose(x, (0, 2, 3, 1)).reshape(B * 32, 32 * 3).astype(f32)
    if Bpad != B:
        x_rows = jnp.pad(x_rows, ((0, (Bpad - B) * 32), (0, 0)))

    out = pl.pallas_call(
        _cifarnet_kernel,
        out_shape=jax.ShapeDtypeStruct((Bpad, 10), f32),
        grid=(Bpad // TB,),
        in_specs=[
            pl.BlockSpec((TB * 32, 96), lambda b: (b, 0)),       # TB images' rows
            pl.BlockSpec((5, 96, 256), lambda b: (0, 0, 0)),     # conv1 Toeplitz
            pl.BlockSpec((1, 128), lambda b: (0, 0)),            # bias1 (tiled+pad)
            pl.BlockSpec((5, 128, 256), lambda b: (0, 0, 0)),    # conv2 Toeplitz
            pl.BlockSpec((1, 128), lambda b: (0, 0)),            # bias2 (tiled+pad)
            pl.BlockSpec((5, 128, 120), lambda b: (0, 0, 0)),    # fc1 (split by row)
            pl.BlockSpec((1, 120), lambda b: (0, 0)),            # fc1 bias
            pl.BlockSpec((120, 84), lambda b: (0, 0)),           # fc2
            pl.BlockSpec((1, 84), lambda b: (0, 0)),             # fc2 bias
            pl.BlockSpec((84, 10), lambda b: (0, 0)),            # fc3
            pl.BlockSpec((1, 10), lambda b: (0, 0)),             # fc3 bias
        ],
        out_specs=pl.BlockSpec((TB, 10), lambda b: (b, 0)),
        scratch_shapes=[
            pltpu.VMEM((TB * 32, 256), jnp.float32),   # conv accumulator (reused)
            pltpu.VMEM((TB * 32, 128), jnp.float32),   # conv1 rows after ReLU+W-pool
            pltpu.VMEM((TB * 16, 128), jnp.float32),   # pool1 activations
            pltpu.VMEM((TB * 16, 128), jnp.float32),   # conv2 rows after ReLU+W-pool
        ],
        compiler_params=pltpu.CompilerParams(
            dimension_semantics=("parallel",)),
    )(x_rows, t1, b1p, t2, b2p, wf1s, bf1, wf2, bf2, wf3, bf3)

    return out[:B]


# ----------------------------- params & reference --------------------------- #

def init_params(key):
    """Deterministic synthetic parameters with the exact module shapes."""
    ks = jax.random.split(key, 10)

    def u(k, shape, fan_in):
        bound = 1.0 / jnp.sqrt(fan_in)
        return jax.random.uniform(k, shape, jnp.float32, -bound, bound)

    return {
        "w1": u(ks[0], (6, 3, 5, 5), 3 * 25),   "b1": u(ks[1], (6,), 3 * 25),
        "w2": u(ks[2], (16, 6, 5, 5), 6 * 25),  "b2": u(ks[3], (16,), 6 * 25),
        "wf1": u(ks[4], (120, 400), 400),       "bf1": u(ks[5], (120,), 400),
        "wf2": u(ks[6], (84, 120), 120),        "bf2": u(ks[7], (84,), 120),
        "wf3": u(ks[8], (10, 84), 84),          "bf3": u(ks[9], (10,), 84),
    }


def _reference_forward(x, params):
    """Plain-JAX f32 reference of the PyTorch module (for a sanity check)."""
    def conv(a, w, b):
        dn = jax.lax.conv_dimension_numbers(a.shape, w.shape, ("NCHW", "OIHW", "NCHW"))
        y = jax.lax.conv_general_dilated(a, w, (1, 1), "VALID",
                                         dimension_numbers=dn,
                                         precision=jax.lax.Precision.HIGHEST)
        return jax.nn.relu(y + b.reshape(1, -1, 1, 1))

    def pool(a):
        return jax.lax.reduce_window(a, -jnp.inf, jax.lax.max,
                                     (1, 1, 2, 2), (1, 1, 2, 2), "VALID")

    h = pool(conv(x, params["w1"], params["b1"]))
    h = pool(conv(h, params["w2"], params["b2"]))
    h = h.reshape(h.shape[0], -1)
    h = jax.nn.relu(h @ params["wf1"].T + params["bf1"])
    h = jax.nn.relu(h @ params["wf2"].T + params["bf2"])
    return h @ params["wf3"].T + params["bf3"]


if __name__ == "__main__":
    key = jax.random.PRNGKey(0)
    k_x, k_p = jax.random.split(key)
    # 32x32 input is required by the module (16*5*5 flatten size). Batch = 2.
    x = jax.random.normal(k_x, (2, 3, 32, 32), jnp.float32)
    params = init_params(k_p)

    out = net_forward(x, params)
    jax.block_until_ready(out)
    assert out.shape == (2, 10) and out.dtype == jnp.float32
    assert bool(jnp.all(jnp.isfinite(out)))

    ref = _reference_forward(x, params)
    err = float(jnp.max(jnp.abs(out - ref)))
    assert err < 5e-2, f"mismatch vs reference: max abs err = {err}"
    print("KERNEL_OK")
</pallas_src>

<mosaic_0001>
module attributes {stable_mosaic.version = 11 : i64} {
  func.func @_cifarnet_kernel(%arg0: i32, %arg1: memref<256x96xf32, #tpu.memory_space<vmem>>, %arg2: memref<5x96x256xbf16, #tpu.memory_space<vmem>>, %arg3: memref<1x128xf32, #tpu.memory_space<vmem>>, %arg4: memref<5x128x256xbf16, #tpu.memory_space<vmem>>, %arg5: memref<1x128xf32, #tpu.memory_space<vmem>>, %arg6: memref<5x128x120xbf16, #tpu.memory_space<vmem>>, %arg7: memref<1x120xf32, #tpu.memory_space<vmem>>, %arg8: memref<120x84xbf16, #tpu.memory_space<vmem>>, %arg9: memref<1x84xf32, #tpu.memory_space<vmem>>, %arg10: memref<84x10xbf16, #tpu.memory_space<vmem>>, %arg11: memref<1x10xf32, #tpu.memory_space<vmem>>, %arg12: memref<8x10xf32, #tpu.memory_space<vmem>>, %arg13: memref<256x256xf32, #tpu.memory_space<vmem>>, %arg14: memref<256x128xf32, #tpu.memory_space<vmem>>, %arg15: memref<128x128xf32, #tpu.memory_space<vmem>>, %arg16: memref<128x128xf32, #tpu.memory_space<vmem>>) attributes {dimension_semantics = [#tpu.dimension_semantics<parallel>], iteration_bounds = array<i64: 1>, scalar_prefetch = 0 : i64, scratch_operands = 4 : i64, tpu.core_type = #tpu.core_type<tc>, window_params = [{transform_indices = @transform_0, window_bounds = array<i64: 256, 96>}, {pipeline_mode = #tpu.pipeline_mode<synchronous>, transform_indices = @transform_1, window_bounds = array<i64: 5, 96, 256>}, {pipeline_mode = #tpu.pipeline_mode<synchronous>, transform_indices = @transform_2, window_bounds = array<i64: 1, 128>}, {pipeline_mode = #tpu.pipeline_mode<synchronous>, transform_indices = @transform_3, window_bounds = array<i64: 5, 128, 256>}, {pipeline_mode = #tpu.pipeline_mode<synchronous>, transform_indices = @transform_4, window_bounds = array<i64: 1, 128>}, {pipeline_mode = #tpu.pipeline_mode<synchronous>, transform_indices = @transform_5, window_bounds = array<i64: 5, 128, 120>}, {pipeline_mode = #tpu.pipeline_mode<synchronous>, transform_indices = @transform_6, window_bounds = array<i64: 1, 120>}, {pipeline_mode = #tpu.pipeline_mode<synchronous>, transform_indices = @transform_7, window_bounds = array<i64: 120, 84>}, {pipeline_mode = #tpu.pipeline_mode<synchronous>, transform_indices = @transform_8, window_bounds = array<i64: 1, 84>}, {pipeline_mode = #tpu.pipeline_mode<synchronous>, transform_indices = @transform_9, window_bounds = array<i64: 84, 10>}, {pipeline_mode = #tpu.pipeline_mode<synchronous>, transform_indices = @transform_10, window_bounds = array<i64: 1, 10>}, {transform_indices = @transform_11, window_bounds = array<i64: 8, 10>}]} {
    %c0 = arith.constant 0 : index
    %c0_0 = arith.constant 0 : index
    %0 = vector.load %arg1[%c0, %c0_0] : memref<256x96xf32, #tpu.memory_space<vmem>>, vector<252x96xf32>
    %1 = arith.truncf %0 : vector<252x96xf32> to vector<252x96xbf16>
    %c0_1 = arith.constant 0 : index
    %c0_2 = arith.constant 0 : index
    %c0_3 = arith.constant 0 : index
    %2 = vector.load %arg2[%c0_1, %c0_2, %c0_3] : memref<5x96x256xbf16, #tpu.memory_space<vmem>>, vector<1x96x256xbf16>
    %3 = vector.shape_cast %2 : vector<1x96x256xbf16> to vector<96x256xbf16>
    %cst = arith.constant dense<0.000000e+00> : vector<252x256xf32>
    %4 = tpu.matmul %1, %3, %cst {dimension_numbers = #tpu.dot_dimension_numbers<[1], [0], [0], [1], [0, 0, 1, 1], [], []>} : vector<252x96xbf16>, vector<96x256xbf16>, vector<252x256xf32> -> vector<252x256xf32>
    %c0_4 = arith.constant 0 : index
    %c0_5 = arith.constant 0 : index
    %5 = vector.load %arg13[%c0_4, %c0_5] : memref<256x256xf32, #tpu.memory_space<vmem>>, vector<252x256xf32>
    tpu.vector_store %arg13[%c0_4, %c0_5], %4 {strides = array<i32>} : memref<256x256xf32, #tpu.memory_space<vmem>>, vector<252x256xf32>,
    %c1 = arith.constant 1 : index
    %c0_6 = arith.constant 0 : index
    %6 = vector.load %arg1[%c1, %c0_6] : memref<256x96xf32, #tpu.memory_space<vmem>>, vector<252x96xf32>
    %7 = arith.truncf %6 : vector<252x96xf32> to vector<252x96xbf16>
    %c1_7 = arith.constant 1 : index
    %c0_8 = arith.constant 0 : index
    %c0_9 = arith.constant 0 : index
    %8 = vector.load %arg2[%c1_7, %c0_8, %c0_9] : memref<5x96x256xbf16, #tpu.memory_space<vmem>>, vector<1x96x256xbf16>
    %9 = vector.shape_cast %8 : vector<1x96x256xbf16> to vector<96x256xbf16>
    %cst_10 = arith.constant dense<0.000000e+00> : vector<252x256xf32>
    %10 = tpu.matmul %7, %9, %cst_10 {dimension_numbers = #tpu.dot_dimension_numbers<[1], [0], [0], [1], [0, 0, 1, 1], [], []>} : vector<252x96xbf16>, vector<96x256xbf16>, vector<252x256xf32> -> vector<252x256xf32>
    %c0_11 = arith.constant 0 : index
    %c0_12 = arith.constant 0 : index
    %11 = vector.load %arg13[%c0_11, %c0_12] : memref<256x256xf32, #tpu.memory_space<vmem>>, vector<252x256xf32>
    %12 = arith.addf %11, %10 : vector<252x256xf32>
    %c0_13 = arith.constant 0 : index
    %c0_14 = arith.constant 0 : index
    %13 = vector.load %arg13[%c0_13, %c0_14] : memref<256x256xf32, #tpu.memory_space<vmem>>, vector<252x256xf32>
    tpu.vector_store %arg13[%c0_13, %c0_14], %12 {strides = array<i32>} : memref<256x256xf32, #tpu.memory_space<vmem>>, vector<252x256xf32>,
    %c2 = arith.constant 2 : index
    %c0_15 = arith.constant 0 : index
    %14 = vector.load %arg1[%c2, %c0_15] : memref<256x96xf32, #tpu.memory_space<vmem>>, vector<252x96xf32>
    %15 = arith.truncf %14 : vector<252x96xf32> to vector<252x96xbf16>
    %c2_16 = arith.constant 2 : index
    %c0_17 = arith.constant 0 : index
    %c0_18 = arith.constant 0 : index
    %16 = vector.load %arg2[%c2_16, %c0_17, %c0_18] : memref<5x96x256xbf16, #tpu.memory_space<vmem>>, vector<1x96x256xbf16>
    %17 = vector.shape_cast %16 : vector<1x96x256xbf16> to vector<96x256xbf16>
    %cst_19 = arith.constant dense<0.000000e+00> : vector<252x256xf32>
    %18 = tpu.matmul %15, %17, %cst_19 {dimension_numbers = #tpu.dot_dimension_numbers<[1], [0], [0], [1], [0, 0, 1, 1], [], []>} : vector<252x96xbf16>, vector<96x256xbf16>, vector<252x256xf32> -> vector<252x256xf32>
    %c0_20 = arith.constant 0 : index
    %c0_21 = arith.constant 0 : index
    %19 = vector.load %arg13[%c0_20, %c0_21] : memref<256x256xf32, #tpu.memory_space<vmem>>, vector<252x256xf32>
    %20 = arith.addf %19, %18 : vector<252x256xf32>
    %c0_22 = arith.constant 0 : index
    %c0_23 = arith.constant 0 : index
    %21 = vector.load %arg13[%c0_22, %c0_23] : memref<256x256xf32, #tpu.memory_space<vmem>>, vector<252x256xf32>
    tpu.vector_store %arg13[%c0_22, %c0_23], %20 {strides = array<i32>} : memref<256x256xf32, #tpu.memory_space<vmem>>, vector<252x256xf32>,
    %c3 = arith.constant 3 : index
    %c0_24 = arith.constant 0 : index
    %22 = vector.load %arg1[%c3, %c0_24] : memref<256x96xf32, #tpu.memory_space<vmem>>, vector<252x96xf32>
    %23 = arith.truncf %22 : vector<252x96xf32> to vector<252x96xbf16>
    %c3_25 = arith.constant 3 : index
    %c0_26 = arith.constant 0 : index
    %c0_27 = arith.constant 0 : index
    %24 = vector.load %arg2[%c3_25, %c0_26, %c0_27] : memref<5x96x256xbf16, #tpu.memory_space<vmem>>, vector<1x96x256xbf16>
    %25 = vector.shape_cast %24 : vector<1x96x256xbf16> to vector<96x256xbf16>
    %cst_28 = arith.constant dense<0.000000e+00> : vector<252x256xf32>
    %26 = tpu.matmul %23, %25, %cst_28 {dimension_numbers = #tpu.dot_dimension_numbers<[1], [0], [0], [1], [0, 0, 1, 1], [], []>} : vector<252x96xbf16>, vector<96x256xbf16>, vector<252x256xf32> -> vector<252x256xf32>
    %c0_29 = arith.constant 0 : index
    %c0_30 = arith.constant 0 : index
    %27 = vector.load %arg13[%c0_29, %c0_30] : memref<256x256xf32, #tpu.memory_space<vmem>>, vector<252x256xf32>
    %28 = arith.addf %27, %26 : vector<252x256xf32>
    %c0_31 = arith.constant 0 : index
    %c0_32 = arith.constant 0 : index
    %29 = vector.load %arg13[%c0_31, %c0_32] : memref<256x256xf32, #tpu.memory_space<vmem>>, vector<252x256xf32>
    tpu.vector_store %arg13[%c0_31, %c0_32], %28 {strides = array<i32>} : memref<256x256xf32, #tpu.memory_space<vmem>>, vector<252x256xf32>,
    %c4 = arith.constant 4 : index
    %c0_33 = arith.constant 0 : index
    %30 = vector.load %arg1[%c4, %c0_33] : memref<256x96xf32, #tpu.memory_space<vmem>>, vector<252x96xf32>
    %31 = arith.truncf %30 : vector<252x96xf32> to vector<252x96xbf16>
    %c4_34 = arith.constant 4 : index
    %c0_35 = arith.constant 0 : index
    %c0_36 = arith.constant 0 : index
    %32 = vector.load %arg2[%c4_34, %c0_35, %c0_36] : memref<5x96x256xbf16, #tpu.memory_space<vmem>>, vector<1x96x256xbf16>
    %33 = vector.shape_cast %32 : vector<1x96x256xbf16> to vector<96x256xbf16>
    %cst_37 = arith.constant dense<0.000000e+00> : vector<252x256xf32>
    %34 = tpu.matmul %31, %33, %cst_37 {dimension_numbers = #tpu.dot_dimension_numbers<[1], [0], [0], [1], [0, 0, 1, 1], [], []>} : vector<252x96xbf16>, vector<96x256xbf16>, vector<252x256xf32> -> vector<252x256xf32>
    %c0_38 = arith.constant 0 : index
    %c0_39 = arith.constant 0 : index
    %35 = vector.load %arg13[%c0_38, %c0_39] : memref<256x256xf32, #tpu.memory_space<vmem>>, vector<252x256xf32>
    %36 = arith.addf %35, %34 : vector<252x256xf32>
    %c0_40 = arith.constant 0 : index
    %c0_41 = arith.constant 0 : index
    %37 = vector.load %arg13[%c0_40, %c0_41] : memref<256x256xf32, #tpu.memory_space<vmem>>, vector<252x256xf32>
    tpu.vector_store %arg13[%c0_40, %c0_41], %36 {strides = array<i32>} : memref<256x256xf32, #tpu.memory_space<vmem>>, vector<252x256xf32>,
    %c0_42 = arith.constant 0 : index
    %c0_43 = arith.constant 0 : index
    %38 = vector.load %arg13[%c0_42, %c0_43] : memref<256x256xf32, #tpu.memory_space<vmem>>, vector<252x128xf32>
    %c0_44 = arith.constant 0 : index
    %c128 = arith.constant 128 : index
    %39 = vector.load %arg13[%c0_44, %c128] : memref<256x256xf32, #tpu.memory_space<vmem>>, vector<252x128xf32>
    %40 = arith.maximumf %38, %39 : vector<252x128xf32>
    %c0_45 = arith.constant 0 : index
    %c0_46 = arith.constant 0 : index
    %41 = vector.load %arg3[%c0_45, %c0_46] : memref<1x128xf32, #tpu.memory_space<vmem>>, vector<1x128xf32>
    %42 = vector.broadcast %41 : vector<1x128xf32> to vector<252x128xf32>
    %43 = arith.addf %40, %42 : vector<252x128xf32>
    %cst_47 = arith.constant 0.000000e+00 : f32
    %44 = vector.broadcast %cst_47 : f32 to vector<252x128xf32>
    %45 = arith.maximumf %43, %44 : vector<252x128xf32>
    %c0_48 = arith.constant 0 : index
    %c0_49 = arith.constant 0 : index
    %46 = vector.load %arg14[%c0_48, %c0_49] : memref<256x128xf32, #tpu.memory_space<vmem>>, vector<252x128xf32>
    tpu.vector_store %arg14[%c0_48, %c0_49], %45 {strides = array<i32>} : memref<256x128xf32, #tpu.memory_space<vmem>>, vector<252x128xf32>,
    %cst_50 = arith.constant 0.000000e+00 : f32
    %47 = vector.broadcast %cst_50 : f32 to vector<4x128xf32>
    %c252 = arith.constant 252 : index
    %c0_51 = arith.constant 0 : index
    %48 = vector.load %arg14[%c252, %c0_51] : memref<256x128xf32, #tpu.memory_space<vmem>>, vector<4x128xf32>
    tpu.vector_store %arg14[%c252, %c0_51], %47 {strides = array<i32>} : memref<256x128xf32, #tpu.memory_space<vmem>>, vector<4x128xf32>,
    %c0_52 = arith.constant 0 : index
    %c0_53 = arith.constant 0 : index
    %49 = tpu.strided_load %arg14[%c0_52, %c0_53] {strides = array<i32: 2, 1>} : memref<256x128xf32, #tpu.memory_space<vmem>>, vector<128x128xf32>
    %c1_54 = arith.constant 1 : index
    %c0_55 = arith.constant 0 : index
    %50 = tpu.strided_load %arg14[%c1_54, %c0_55] {strides = array<i32: 2, 1>} : memref<256x128xf32, #tpu.memory_space<vmem>>, vector<128x128xf32>
    %51 = arith.maximumf %49, %50 : vector<128x128xf32>
    %c0_56 = arith.constant 0 : index
    %c0_57 = arith.constant 0 : index
    %52 = vector.load %arg15[%c0_56, %c0_57] : memref<128x128xf32, #tpu.memory_space<vmem>>, vector<128x128xf32>
    tpu.vector_store %arg15[%c0_56, %c0_57], %51 {strides = array<i32>} : memref<128x128xf32, #tpu.memory_space<vmem>>, vector<128x128xf32>,
    %c0_58 = arith.constant 0 : index
    %c0_59 = arith.constant 0 : index
    %53 = vector.load %arg15[%c0_58, %c0_59] : memref<128x128xf32, #tpu.memory_space<vmem>>, vector<124x128xf32>
    %54 = arith.truncf %53 : vector<124x128xf32> to vector<124x128xbf16>
    %c0_60 = arith.constant 0 : index
    %c0_61 = arith.constant 0 : index
    %c0_62 = arith.constant 0 : index
    %55 = vector.load %arg4[%c0_60, %c0_61, %c0_62] : memref<5x128x256xbf16, #tpu.memory_space<vmem>>, vector<1x128x256xbf16>
    %56 = vector.shape_cast %55 : vector<1x128x256xbf16> to vector<128x256xbf16>
    %cst_63 = arith.constant dense<0.000000e+00> : vector<124x256xf32>
    %57 = tpu.matmul %54, %56, %cst_63 {dimension_numbers = #tpu.dot_dimension_numbers<[1], [0], [0], [1], [0, 0, 1, 1], [], []>} : vector<124x128xbf16>, vector<128x256xbf16>, vector<124x256xf32> -> vector<124x256xf32>
    %c0_64 = arith.constant 0 : index
    %c0_65 = arith.constant 0 : index
    %58 = vector.load %arg13[%c0_64, %c0_65] : memref<256x256xf32, #tpu.memory_space<vmem>>, vector<124x256xf32>
    tpu.vector_store %arg13[%c0_64, %c0_65], %57 {strides = array<i32>} : memref<256x256xf32, #tpu.memory_space<vmem>>, vector<124x256xf32>,
    %c1_66 = arith.constant 1 : index
    %c0_67 = arith.constant 0 : index
    %59 = vector.load %arg15[%c1_66, %c0_67] : memref<128x128xf32, #tpu.memory_space<vmem>>, vector<124x128xf32>
    %60 = arith.truncf %59 : vector<124x128xf32> to vector<124x128xbf16>
    %c1_68 = arith.constant 1 : index
    %c0_69 = arith.constant 0 : index
    %c0_70 = arith.constant 0 : index
    %61 = vector.load %arg4[%c1_68, %c0_69, %c0_70] : memref<5x128x256xbf16, #tpu.memory_space<vmem>>, vector<1x128x256xbf16>
    %62 = vector.shape_cast %61 : vector<1x128x256xbf16> to vector<128x256xbf16>
    %cst_71 = arith.constant dense<0.000000e+00> : vector<124x256xf32>
    %63 = tpu.matmul %60, %62, %cst_71 {dimension_numbers = #tpu.dot_dimension_numbers<[1], [0], [0], [1], [0, 0, 1, 1], [], []>} : vector<124x128xbf16>, vector<128x256xbf16>, vector<124x256xf32> -> vector<124x256xf32>
    %c0_72 = arith.constant 0 : index
    %c0_73 = arith.constant 0 : index
    %64 = vector.load %arg13[%c0_72, %c0_73] : memref<256x256xf32, #tpu.memory_space<vmem>>, vector<124x256xf32>
    %65 = arith.addf %64, %63 : vector<124x256xf32>
    %c0_74 = arith.constant 0 : index
    %c0_75 = arith.constant 0 : index
    %66 = vector.load %arg13[%c0_74, %c0_75] : memref<256x256xf32, #tpu.memory_space<vmem>>, vector<124x256xf32>
    tpu.vector_store %arg13[%c0_74, %c0_75], %65 {strides = array<i32>} : memref<256x256xf32, #tpu.memory_space<vmem>>, vector<124x256xf32>,
    %c2_76 = arith.constant 2 : index
    %c0_77 = arith.constant 0 : index
    %67 = vector.load %arg15[%c2_76, %c0_77] : memref<128x128xf32, #tpu.memory_space<vmem>>, vector<124x128xf32>
    %68 = arith.truncf %67 : vector<124x128xf32> to vector<124x128xbf16>
    %c2_78 = arith.constant 2 : index
    %c0_79 = arith.constant 0 : index
    %c0_80 = arith.constant 0 : index
    %69 = vector.load %arg4[%c2_78, %c0_79, %c0_80] : memref<5x128x256xbf16, #tpu.memory_space<vmem>>, vector<1x128x256xbf16>
    %70 = vector.shape_cast %69 : vector<1x128x256xbf16> to vector<128x256xbf16>
    %cst_81 = arith.constant dense<0.000000e+00> : vector<124x256xf32>
    %71 = tpu.matmul %68, %70, %cst_81 {dimension_numbers = #tpu.dot_dimension_numbers<[1], [0], [0], [1], [0, 0, 1, 1], [], []>} : vector<124x128xbf16>, vector<128x256xbf16>, vector<124x256xf32> -> vector<124x256xf32>
    %c0_82 = arith.constant 0 : index
    %c0_83 = arith.constant 0 : index
    %72 = vector.load %arg13[%c0_82, %c0_83] : memref<256x256xf32, #tpu.memory_space<vmem>>, vector<124x256xf32>
    %73 = arith.addf %72, %71 : vector<124x256xf32>
    %c0_84 = arith.constant 0 : index
    %c0_85 = arith.constant 0 : index
    %74 = vector.load %arg13[%c0_84, %c0_85] : memref<256x256xf32, #tpu.memory_space<vmem>>, vector<124x256xf32>
    tpu.vector_store %arg13[%c0_84, %c0_85], %73 {strides = array<i32>} : memref<256x256xf32, #tpu.memory_space<vmem>>, vector<124x256xf32>,
    %c3_86 = arith.constant 3 : index
    %c0_87 = arith.constant 0 : index
    %75 = vector.load %arg15[%c3_86, %c0_87] : memref<128x128xf32, #tpu.memory_space<vmem>>, vector<124x128xf32>
    %76 = arith.truncf %75 : vector<124x128xf32> to vector<124x128xbf16>
    %c3_88 = arith.constant 3 : index
    %c0_89 = arith.constant 0 : index
    %c0_90 = arith.constant 0 : index
    %77 = vector.load %arg4[%c3_88, %c0_89, %c0_90] : memref<5x128x256xbf16, #tpu.memory_space<vmem>>, vector<1x128x256xbf16>
    %78 = vector.shape_cast %77 : vector<1x128x256xbf16> to vector<128x256xbf16>
    %cst_91 = arith.constant dense<0.000000e+00> : vector<124x256xf32>
    %79 = tpu.matmul %76, %78, %cst_91 {dimension_numbers = #tpu.dot_dimension_numbers<[1], [0], [0], [1], [0, 0, 1, 1], [], []>} : vector<124x128xbf16>, vector<128x256xbf16>, vector<124x256xf32> -> vector<124x256xf32>
    %c0_92 = arith.constant 0 : index
    %c0_93 = arith.constant 0 : index
    %80 = vector.load %arg13[%c0_92, %c0_93] : memref<256x256xf32, #tpu.memory_space<vmem>>, vector<124x256xf32>
    %81 = arith.addf %80, %79 : vector<124x256xf32>
    %c0_94 = arith.constant 0 : index
    %c0_95 = arith.constant 0 : index
    %82 = vector.load %arg13[%c0_94, %c0_95] : memref<256x256xf32, #tpu.memory_space<vmem>>, vector<124x256xf32>
    tpu.vector_store %arg13[%c0_94, %c0_95], %81 {strides = array<i32>} : memref<256x256xf32, #tpu.memory_space<vmem>>, vector<124x256xf32>,
    %c4_96 = arith.constant 4 : index
    %c0_97 = arith.constant 0 : index
    %83 = vector.load %arg15[%c4_96, %c0_97] : memref<128x128xf32, #tpu.memory_space<vmem>>, vector<124x128xf32>
    %84 = arith.truncf %83 : vector<124x128xf32> to vector<124x128xbf16>
    %c4_98 = arith.constant 4 : index
    %c0_99 = arith.constant 0 : index
    %c0_100 = arith.constant 0 : index
    %85 = vector.load %arg4[%c4_98, %c0_99, %c0_100] : memref<5x128x256xbf16, #tpu.memory_space<vmem>>, vector<1x128x256xbf16>
    %86 = vector.shape_cast %85 : vector<1x128x256xbf16> to vector<128x256xbf16>
    %cst_101 = arith.constant dense<0.000000e+00> : vector<124x256xf32>
    %87 = tpu.matmul %84, %86, %cst_101 {dimension_numbers = #tpu.dot_dimension_numbers<[1], [0], [0], [1], [0, 0, 1, 1], [], []>} : vector<124x128xbf16>, vector<128x256xbf16>, vector<124x256xf32> -> vector<124x256xf32>
    %c0_102 = arith.constant 0 : index
    %c0_103 = arith.constant 0 : index
    %88 = vector.load %arg13[%c0_102, %c0_103] : memref<256x256xf32, #tpu.memory_space<vmem>>, vector<124x256xf32>
    %89 = arith.addf %88, %87 : vector<124x256xf32>
    %c0_104 = arith.constant 0 : index
    %c0_105 = arith.constant 0 : index
    %90 = vector.load %arg13[%c0_104, %c0_105] : memref<256x256xf32, #tpu.memory_space<vmem>>, vector<124x256xf32>
    tpu.vector_store %arg13[%c0_104, %c0_105], %89 {strides = array<i32>} : memref<256x256xf32, #tpu.memory_space<vmem>>, vector<124x256xf32>,
    %c0_106 = arith.constant 0 : index
    %c0_107 = arith.constant 0 : index
    %91 = vector.load %arg13[%c0_106, %c0_107] : memref<256x256xf32, #tpu.memory_space<vmem>>, vector<124x128xf32>
    %c0_108 = arith.constant 0 : index
    %c128_109 = arith.constant 128 : index
    %92 = vector.load %arg13[%c0_108, %c128_109] : memref<256x256xf32, #tpu.memory_space<vmem>>, vector<124x128xf32>
    %93 = arith.maximumf %91, %92 : vector<124x128xf32>
    %c0_110 = arith.constant 0 : index
    %c0_111 = arith.constant 0 : index
    %94 = vector.load %arg5[%c0_110, %c0_111] : memref<1x128xf32, #tpu.memory_space<vmem>>, vector<1x128xf32>
    %95 = vector.broadcast %94 : vector<1x128xf32> to vector<124x128xf32>
    %96 = arith.addf %93, %95 : vector<124x128xf32>
    %cst_112 = arith.constant 0.000000e+00 : f32
    %97 = vector.broadcast %cst_112 : f32 to vector<124x128xf32>
    %98 = arith.maximumf %96, %97 : vector<124x128xf32>
    %c0_113 = arith.constant 0 : index
    %c0_114 = arith.constant 0 : index
    %99 = vector.load %arg16[%c0_113, %c0_114] : memref<128x128xf32, #tpu.memory_space<vmem>>, vector<124x128xf32>
    tpu.vector_store %arg16[%c0_113, %c0_114], %98 {strides = array<i32>} : memref<128x128xf32, #tpu.memory_space<vmem>>, vector<124x128xf32>,
    %c0_115 = arith.constant 0 : index
    %c0_116 = arith.constant 0 : index
    %100 = tpu.strided_load %arg16[%c0_115, %c0_116] {strides = array<i32: 16, 1>} : memref<128x128xf32, #tpu.memory_space<vmem>>, vector<8x128xf32>
    %c1_117 = arith.constant 1 : index
    %c0_118 = arith.constant 0 : index
    %101 = tpu.strided_load %arg16[%c1_117, %c0_118] {strides = array<i32: 16, 1>} : memref<128x128xf32, #tpu.memory_space<vmem>>, vector<8x128xf32>
    %102 = arith.maximumf %100, %101 : vector<8x128xf32>
    %103 = arith.truncf %102 : vector<8x128xf32> to vector<8x128xbf16>
    %c0_119 = arith.constant 0 : index
    %c0_120 = arith.constant 0 : index
    %c0_121 = arith.constant 0 : index
    %104 = vector.load %arg6[%c0_119, %c0_120, %c0_121] : memref<5x128x120xbf16, #tpu.memory_space<vmem>>, vector<1x128x120xbf16>
    %105 = vector.shape_cast %104 : vector<1x128x120xbf16> to vector<128x120xbf16>
    %cst_122 = arith.constant dense<0.000000e+00> : vector<8x120xf32>
    %106 = tpu.matmul %103, %105, %cst_122 {dimension_numbers = #tpu.dot_dimension_numbers<[1], [0], [0], [1], [0, 0, 1, 1], [], []>} : vector<8x128xbf16>, vector<128x120xbf16>, vector<8x120xf32> -> vector<8x120xf32>
    %c2_123 = arith.constant 2 : index
    %c0_124 = arith.constant 0 : index
    %107 = tpu.strided_load %arg16[%c2_123, %c0_124] {strides = array<i32: 16, 1>} : memref<128x128xf32, #tpu.memory_space<vmem>>, vector<8x128xf32>
    %c3_125 = arith.constant 3 : index
    %c0_126 = arith.constant 0 : index
    %108 = tpu.strided_load %arg16[%c3_125, %c0_126] {strides = array<i32: 16, 1>} : memref<128x128xf32, #tpu.memory_space<vmem>>, vector<8x128xf32>
    %109 = arith.maximumf %107, %108 : vector<8x128xf32>
    %110 = arith.truncf %109 : vector<8x128xf32> to vector<8x128xbf16>
    %c1_127 = arith.constant 1 : index
    %c0_128 = arith.constant 0 : index
    %c0_129 = arith.constant 0 : index
    %111 = vector.load %arg6[%c1_127, %c0_128, %c0_129] : memref<5x128x120xbf16, #tpu.memory_space<vmem>>, vector<1x128x120xbf16>
    %112 = vector.shape_cast %111 : vector<1x128x120xbf16> to vector<128x120xbf16>
    %cst_130 = arith.constant dense<0.000000e+00> : vector<8x120xf32>
    %113 = tpu.matmul %110, %112, %cst_130 {dimension_numbers = #tpu.dot_dimension_numbers<[1], [0], [0], [1], [0, 0, 1, 1], [], []>} : vector<8x128xbf16>, vector<128x120xbf16>, vector<8x120xf32> -> vector<8x120xf32>
    %114 = arith.addf %106, %113 : vector<8x120xf32>
    %c4_131 = arith.constant 4 : index
    %c0_132 = arith.constant 0 : index
    %115 = tpu.strided_load %arg16[%c4_131, %c0_132] {strides = array<i32: 16, 1>} : memref<128x128xf32, #tpu.memory_space<vmem>>, vector<8x128xf32>
    %c5 = arith.constant 5 : index
    %c0_133 = arith.constant 0 : index
    %116 = tpu.strided_load %arg16[%c5, %c0_133] {strides = array<i32: 16, 1>} : memref<128x128xf32, #tpu.memory_space<vmem>>, vector<8x128xf32>
    %117 = arith.maximumf %115, %116 : vector<8x128xf32>
    %118 = arith.truncf %117 : vector<8x128xf32> to vector<8x128xbf16>
    %c2_134 = arith.constant 2 : index
    %c0_135 = arith.constant 0 : index
    %c0_136 = arith.constant 0 : index
    %119 = vector.load %arg6[%c2_134, %c0_135, %c0_136] : memref<5x128x120xbf16, #tpu.memory_space<vmem>>, vector<1x128x120xbf16>
    %120 = vector.shape_cast %119 : vector<1x128x120xbf16> to vector<128x120xbf16>
    %cst_137 = arith.constant dense<0.000000e+00> : vector<8x120xf32>
    %121 = tpu.matmul %118, %120, %cst_137 {dimension_numbers = #tpu.dot_dimension_numbers<[1], [0], [0], [1], [0, 0, 1, 1], [], []>} : vector<8x128xbf16>, vector<128x120xbf16>, vector<8x120xf32> -> vector<8x120xf32>
    %122 = arith.addf %114, %121 : vector<8x120xf32>
    %c6 = arith.constant 6 : index
    %c0_138 = arith.constant 0 : index
    %123 = tpu.strided_load %arg16[%c6, %c0_138] {strides = array<i32: 16, 1>} : memref<128x128xf32, #tpu.memory_space<vmem>>, vector<8x128xf32>
    %c7 = arith.constant 7 : index
    %c0_139 = arith.constant 0 : index
    %124 = tpu.strided_load %arg16[%c7, %c0_139] {strides = array<i32: 16, 1>} : memref<128x128xf32, #tpu.memory_space<vmem>>, vector<8x128xf32>
    %125 = arith.maximumf %123, %124 : vector<8x128xf32>
    %126 = arith.truncf %125 : vector<8x128xf32> to vector<8x128xbf16>
    %c3_140 = arith.constant 3 : index
    %c0_141 = arith.constant 0 : index
    %c0_142 = arith.constant 0 : index
    %127 = vector.load %arg6[%c3_140, %c0_141, %c0_142] : memref<5x128x120xbf16, #tpu.memory_space<vmem>>, vector<1x128x120xbf16>
    %128 = vector.shape_cast %127 : vector<1x128x120xbf16> to vector<128x120xbf16>
    %cst_143 = arith.constant dense<0.000000e+00> : vector<8x120xf32>
    %129 = tpu.matmul %126, %128, %cst_143 {dimension_numbers = #tpu.dot_dimension_numbers<[1], [0], [0], [1], [0, 0, 1, 1], [], []>} : vector<8x128xbf16>, vector<128x120xbf16>, vector<8x120xf32> -> vector<8x120xf32>
    %130 = arith.addf %122, %129 : vector<8x120xf32>
    %c8 = arith.constant 8 : index
    %c0_144 = arith.constant 0 : index
    %131 = tpu.strided_load %arg16[%c8, %c0_144] {strides = array<i32: 16, 1>} : memref<128x128xf32, #tpu.memory_space<vmem>>, vector<8x128xf32>
    %c9 = arith.constant 9 : index
    %c0_145 = arith.constant 0 : index
    %132 = tpu.strided_load %arg16[%c9, %c0_145] {strides = array<i32: 16, 1>} : memref<128x128xf32, #tpu.memory_space<vmem>>, vector<8x128xf32>
    %133 = arith.maximumf %131, %132 : vector<8x128xf32>
    %134 = arith.truncf %133 : vector<8x128xf32> to vector<8x128xbf16>
    %c4_146 = arith.constant 4 : index
    %c0_147 = arith.constant 0 : index
    %c0_148 = arith.constant 0 : index
    %135 = vector.load %arg6[%c4_146, %c0_147, %c0_148] : memref<5x128x120xbf16, #tpu.memory_space<vmem>>, vector<1x128x120xbf16>
    %136 = vector.shape_cast %135 : vector<1x128x120xbf16> to vector<128x120xbf16>
    %cst_149 = arith.constant dense<0.000000e+00> : vector<8x120xf32>
    %137 = tpu.matmul %134, %136, %cst_149 {dimension_numbers = #tpu.dot_dimension_numbers<[1], [0], [0], [1], [0, 0, 1, 1], [], []>} : vector<8x128xbf16>, vector<128x120xbf16>, vector<8x120xf32> -> vector<8x120xf32>
    %138 = arith.addf %130, %137 : vector<8x120xf32>
    %c0_150 = arith.constant 0 : index
    %c0_151 = arith.constant 0 : index
    %139 = vector.load %arg7[%c0_150, %c0_151] : memref<1x120xf32, #tpu.memory_space<vmem>>, vector<1x120xf32>
    %140 = vector.broadcast %139 : vector<1x120xf32> to vector<8x120xf32>
    %141 = arith.addf %138, %140 : vector<8x120xf32>
    %cst_152 = arith.constant 0.000000e+00 : f32
    %142 = vector.broadcast %cst_152 : f32 to vector<8x120xf32>
    %143 = arith.maximumf %141, %142 : vector<8x120xf32>
    %144 = arith.truncf %143 : vector<8x120xf32> to vector<8x120xbf16>
    %c0_153 = arith.constant 0 : index
    %c0_154 = arith.constant 0 : index
    %145 = vector.load %arg8[%c0_153, %c0_154] : memref<120x84xbf16, #tpu.memory_space<vmem>>, vector<120x84xbf16>
    %cst_155 = arith.constant dense<0.000000e+00> : vector<8x84xf32>
    %146 = tpu.matmul %144, %145, %cst_155 {dimension_numbers = #tpu.dot_dimension_numbers<[1], [0], [0], [1], [0, 0, 1, 1], [], []>} : vector<8x120xbf16>, vector<120x84xbf16>, vector<8x84xf32> -> vector<8x84xf32>
    %c0_156 = arith.constant 0 : index
    %c0_157 = arith.constant 0 : index
    %147 = vector.load %arg9[%c0_156, %c0_157] : memref<1x84xf32, #tpu.memory_space<vmem>>, vector<1x84xf32>
    %148 = vector.broadcast %147 : vector<1x84xf32> to vector<8x84xf32>
    %149 = arith.addf %146, %148 : vector<8x84xf32>
    %cst_158 = arith.constant 0.000000e+00 : f32
    %150 = vector.broadcast %cst_158 : f32 to vector<8x84xf32>
    %151 = arith.maximumf %149, %150 : vector<8x84xf32>
    %152 = arith.truncf %151 : vector<8x84xf32> to vector<8x84xbf16>
    %c0_159 = arith.constant 0 : index
    %c0_160 = arith.constant 0 : index
    %153 = vector.load %arg10[%c0_159, %c0_160] : memref<84x10xbf16, #tpu.memory_space<vmem>>, vector<84x10xbf16>
    %cst_161 = arith.constant dense<0.000000e+00> : vector<8x10xf32>
    %154 = tpu.matmul %152, %153, %cst_161 {dimension_numbers = #tpu.dot_dimension_numbers<[1], [0], [0], [1], [0, 0, 1, 1], [], []>} : vector<8x84xbf16>, vector<84x10xbf16>, vector<8x10xf32> -> vector<8x10xf32>
    %c0_162 = arith.constant 0 : index
    %c0_163 = arith.constant 0 : index
    %155 = vector.load %arg11[%c0_162, %c0_163] : memref<1x10xf32, #tpu.memory_space<vmem>>, vector<1x10xf32>
    %156 = vector.broadcast %155 : vector<1x10xf32> to vector<8x10xf32>
    %157 = arith.addf %154, %156 : vector<8x10xf32>
    %c0_164 = arith.constant 0 : index
    %c0_165 = arith.constant 0 : index
    %158 = vector.load %arg12[%c0_164, %c0_165] : memref<8x10xf32, #tpu.memory_space<vmem>>, vector<8x10xf32>
    tpu.vector_store %arg12[%c0_164, %c0_165], %157 {strides = array<i32>} : memref<8x10xf32, #tpu.memory_space<vmem>>, vector<8x10xf32>,
    return
  }
  func.func @transform_0(%arg0: i32) -> (i32, i32) {
    %c0_i32 = arith.constant 0 : i32
    %c0_i32_0 = arith.constant 0 : i32
    return %arg0, %c0_i32 : i32, i32
  }
  func.func @transform_1(%arg0: i32) -> (i32, i32, i32) {
    %c0_i32 = arith.constant 0 : i32
    %c0_i32_0 = arith.constant 0 : i32
    %c0_i32_1 = arith.constant 0 : i32
    %c0_i32_2 = arith.constant 0 : i32
    return %c0_i32, %c0_i32_0, %c0_i32_1 : i32, i32, i32
  }
  func.func @transform_2(%arg0: i32) -> (i32, i32) {
    %c0_i32 = arith.constant 0 : i32
    %c0_i32_0 = arith.constant 0 : i32
    %c0_i32_1 = arith.constant 0 : i32
    return %c0_i32, %c0_i32_0 : i32, i32
  }
  func.func @transform_3(%arg0: i32) -> (i32, i32, i32) {
    %c0_i32 = arith.constant 0 : i32
    %c0_i32_0 = arith.constant 0 : i32
    %c0_i32_1 = arith.constant 0 : i32
    %c0_i32_2 = arith.constant 0 : i32
    return %c0_i32, %c0_i32_0, %c0_i32_1 : i32, i32, i32
  }
  func.func @transform_4(%arg0: i32) -> (i32, i32) {
    %c0_i32 = arith.constant 0 : i32
    %c0_i32_0 = arith.constant 0 : i32
    %c0_i32_1 = arith.constant 0 : i32
    return %c0_i32, %c0_i32_0 : i32, i32
  }
  func.func @transform_5(%arg0: i32) -> (i32, i32, i32) {
    %c0_i32 = arith.constant 0 : i32
    %c0_i32_0 = arith.constant 0 : i32
    %c0_i32_1 = arith.constant 0 : i32
    %c0_i32_2 = arith.constant 0 : i32
    return %c0_i32, %c0_i32_0, %c0_i32_1 : i32, i32, i32
  }
  func.func @transform_6(%arg0: i32) -> (i32, i32) {
    %c0_i32 = arith.constant 0 : i32
    %c0_i32_0 = arith.constant 0 : i32
    %c0_i32_1 = arith.constant 0 : i32
    return %c0_i32, %c0_i32_0 : i32, i32
  }
  func.func @transform_7(%arg0: i32) -> (i32, i32) {
    %c0_i32 = arith.constant 0 : i32
    %c0_i32_0 = arith.constant 0 : i32
    %c0_i32_1 = arith.constant 0 : i32
    return %c0_i32, %c0_i32_0 : i32, i32
  }
  func.func @transform_8(%arg0: i32) -> (i32, i32) {
    %c0_i32 = arith.constant 0 : i32
    %c0_i32_0 = arith.constant 0 : i32
    %c0_i32_1 = arith.constant 0 : i32
    return %c0_i32, %c0_i32_0 : i32, i32
  }
  func.func @transform_9(%arg0: i32) -> (i32, i32) {
    %c0_i32 = arith.constant 0 : i32
    %c0_i32_0 = arith.constant 0 : i32
    %c0_i32_1 = arith.constant 0 : i32
    return %c0_i32, %c0_i32_0 : i32, i32
  }
  func.func @transform_10(%arg0: i32) -> (i32, i32) {
    %c0_i32 = arith.constant 0 : i32
    %c0_i32_0 = arith.constant 0 : i32
    %c0_i32_1 = arith.constant 0 : i32
    return %c0_i32, %c0_i32_0 : i32, i32
  }
  func.func @transform_11(%arg0: i32) -> (i32, i32) {
    %c0_i32 = arith.constant 0 : i32
    %c0_i32_0 = arith.constant 0 : i32
    return %arg0, %c0_i32 : i32, i32
  }
}

</mosaic_0001>

<llo_original>
// kernel: net_forward.1
$region0: #{net_forward.1}
  #allocation0 [shape = 'u32[]', space=smem, size = 0x4, offset = 0x4, fixed_abs, tag = 'smem constant byte address 0x4 - core index']
  #allocation1 [shape = 'u32[72,128]{1,0:T(1,128)}', space=vmem, size = 0x9000, scoped, tag = 'internal scratch']
  #allocation2 [shape = 'f32[256,256]{1,0:T(8,128)}', space=vmem, size = 0x40000, scoped, tag = 'scratch operand']
  #allocation3 [shape = 'f32[256,128]{1,0:T(8,128)}', space=vmem, size = 0x20000, scoped, tag = 'scratch operand']
  #allocation4 [shape = 'f32[128,128]{1,0:T(8,128)}', space=vmem, size = 0x10000, scoped, tag = 'scratch operand']
  #allocation5 [shape = 'f32[128,128]{1,0:T(8,128)}', space=vmem, size = 0x10000, scoped, tag = 'scratch operand']
  %s0 = inlined_call_operand.vmem [shape: f32[256,96], index: 0, kind: input, shape index: {}]
  %s1 = inlined_call_operand.vmem [shape: bf16[5,96,256], index: 1, kind: input, shape index: {}]
  %s2 = inlined_call_operand.vmem [shape: f32[1,128], index: 2, kind: input, shape index: {}]
  %s3 = inlined_call_operand.vmem [shape: bf16[5,128,256], index: 3, kind: input, shape index: {}]
  %s4 = inlined_call_operand.vmem [shape: f32[1,128], index: 4, kind: input, shape index: {}]
  %s5 = inlined_call_operand.vmem [shape: bf16[5,128,120], index: 5, kind: input, shape index: {}]
  %s6 = inlined_call_operand.vmem [shape: f32[1,120], index: 6, kind: input, shape index: {}]
  %s7 = inlined_call_operand.vmem [shape: bf16[120,84], index: 7, kind: input, shape index: {}]
  %s8 = inlined_call_operand.vmem [shape: f32[1,84], index: 8, kind: input, shape index: {}]
  %s9 = inlined_call_operand.vmem [shape: bf16[84,10], index: 9, kind: input, shape index: {}]
  %s10 = inlined_call_operand.vmem [shape: f32[1,10], index: 10, kind: input, shape index: {}]
  %s11 = inlined_call_operand.vmem [shape: f32[8,10], index: 11, kind: output, shape index: {}]
  %s12 = sld [smem:[#allocation0]]
  $region54: #{net_forward.1} parent=0
    _
  %s14 = ssub.s32 1, %s12
  %s15 = scalar_select 0, %s14, %s12
  // Predicated region
  $region2: #{net_forward.1} parent=0 // pred_check
    _
  $region3: #{net_forward.1} parent=0 // pred_check_branch
    %17 = sbr.rel (0) target = $region5
  $region4: #{net_forward.1} parent=0 // pred_region
    _
  $region5: #{net_forward.1} parent=0 // pred_fallthru
    _
  // Predicated region
  $region6: #{net_forward.1} parent=0 // pred_check
    _
  $region7: #{net_forward.1} parent=0 // pred_check_branch
    %19 = sbr.rel (0) target = $region9
  $region8: #{net_forward.1} parent=0 // pred_region
    _
  $region9: #{net_forward.1} parent=0 // pred_fallthru
    _
  // Predicated region
  $region10: #{net_forward.1} parent=0 // pred_check
    _
  $region11: #{net_forward.1} parent=0 // pred_check_branch
    %21 = sbr.rel (0) target = $region13
  $region12: #{net_forward.1} parent=0 // pred_region
    _
  $region13: #{net_forward.1} parent=0 // pred_fallthru
    _
  // Predicated region
  $region14: #{net_forward.1} parent=0 // pred_check
    _
  $region15: #{net_forward.1} parent=0 // pred_check_branch
    %23 = sbr.rel (0) target = $region17
  $region16: #{net_forward.1} parent=0 // pred_region
    _
  $region17: #{net_forward.1} parent=0 // pred_fallthru
    _
  // Predicated region
  $region18: #{net_forward.1} parent=0 // pred_check
    _
  $region19: #{net_forward.1} parent=0 // pred_check_branch
    %25 = sbr.rel (0) target = $region21
  $region20: #{net_forward.1} parent=0 // pred_region
    _
  $region21: #{net_forward.1} parent=0 // pred_fallthru
    _
  // Predicated region
  $region22: #{net_forward.1} parent=0 // pred_check
    _
  $region23: #{net_forward.1} parent=0 // pred_check_branch
    %27 = sbr.rel (0) target = $region25
  $region24: #{net_forward.1} parent=0 // pred_region
    _
  $region25: #{net_forward.1} parent=0 // pred_fallthru
    _
  // Predicated region
  $region26: #{net_forward.1} parent=0 // pred_check
    _
  $region27: #{net_forward.1} parent=0 // pred_check_branch
    %29 = sbr.rel (0) target = $region29
  $region28: #{net_forward.1} parent=0 // pred_region
    _
  $region29: #{net_forward.1} parent=0 // pred_fallthru
    _
  // Predicated region
  $region30: #{net_forward.1} parent=0 // pred_check
    _
  $region31: #{net_forward.1} parent=0 // pred_check_branch
    %31 = sbr.rel (0) target = $region33
  $region32: #{net_forward.1} parent=0 // pred_region
    _
  $region33: #{net_forward.1} parent=0 // pred_fallthru
    _
  // Predicated region
  $region34: #{net_forward.1} parent=0 // pred_check
    _
  $region35: #{net_forward.1} parent=0 // pred_check_branch
    %33 = sbr.rel (0) target = $region37
  $region36: #{net_forward.1} parent=0 // pred_region
    _
  $region37: #{net_forward.1} parent=0 // pred_fallthru
    _
  // Predicated region
  $region38: #{net_forward.1} parent=0 // pred_check
    _
  $region39: #{net_forward.1} parent=0 // pred_check_branch
    %35 = sbr.rel (0) target = $region41
  $region40: #{net_forward.1} parent=0 // pred_region
    _
  $region41: #{net_forward.1} parent=0 // pred_fallthru
    _
  // Predicated region
  $region42: #{net_forward.1} parent=0 // pred_check
    _
  $region43: #{net_forward.1} parent=0 // pred_check_branch
    %37 = sbr.rel (0) target = $region45
  $region44: #{net_forward.1} parent=0 // pred_region
    _
  $region45: #{net_forward.1} parent=0 // pred_fallthru
    _
  %v39 = vld [vmem:[%s0] sm:$0xff]
  %v40 = vld [vmem:[%s0 + $0x8] sm:$0xff]
  %v41 = vld [vmem:[%s0 + $0x10] sm:$0xff]
  %v42 = vld [vmem:[%s0 + $0x18] sm:$0xff]
  %v43 = vld [vmem:[%s0 + $0x20] sm:$0xff]
  %v44 = vld [vmem:[%s0 + $0x28] sm:$0xff]
  %v45 = vld [vmem:[%s0 + $0x30] sm:$0xff]
  %v46 = vld [vmem:[%s0 + $0x38] sm:$0xff]
  %v47 = vld [vmem:[%s0 + $0x40] sm:$0xff]
  %v48 = vld [vmem:[%s0 + $0x48] sm:$0xff]
  %v49 = vld [vmem:[%s0 + $0x50] sm:$0xff]
  %v50 = vld [vmem:[%s0 + $0x58] sm:$0xff]
  %v51 = vld [vmem:[%s0 + $0x60] sm:$0xff]
  %v52 = vld [vmem:[%s0 + $0x68] sm:$0xff]
  %v53 = vld [vmem:[%s0 + $0x70] sm:$0xff]
  %v54 = vld [vmem:[%s0 + $0x78] sm:$0xff]
  %v55 = vld [vmem:[%s0 + $0x80] sm:$0xff]
  %v56 = vld [vmem:[%s0 + $0x88] sm:$0xff]
  %v57 = vld [vmem:[%s0 + $0x90] sm:$0xff]
  %v58 = vld [vmem:[%s0 + $0x98] sm:$0xff]
  %v59 = vld [vmem:[%s0 + $0xa0] sm:$0xff]
  %v60 = vld [vmem:[%s0 + $0xa8] sm:$0xff]
  %v61 = vld [vmem:[%s0 + $0xb0] sm:$0xff]
  %v62 = vld [vmem:[%s0 + $0xb8] sm:$0xff]
  %v63 = vld [vmem:[%s0 + $0xc0] sm:$0xff]
  %v64 = vld [vmem:[%s0 + $0xc8] sm:$0xff]
  %v65 = vld [vmem:[%s0 + $0xd0] sm:$0xff]
  %v66 = vld [vmem:[%s0 + $0xd8] sm:$0xff]
  %v67 = vld [vmem:[%s0 + $0xe0] sm:$0xff]
  %v68 = vld [vmem:[%s0 + $0xe8] sm:$0xff]
  %v69 = vld [vmem:[%s0 + $0xf0] sm:$0xff]
  %v70 = vld [vmem:[%s0 + $0xf8] sm:$0xf]
  %v71 = vpack.c.bf16 %v40, %v39
  %v72 = vpack.c.bf16 %v42, %v41
  %v73 = vpack.c.bf16 %v44, %v43
  %v74 = vpack.c.bf16 %v46, %v45
  %v75 = vpack.c.bf16 %v48, %v47
  %v76 = vpack.c.bf16 %v50, %v49
  %v77 = vpack.c.bf16 %v52, %v51
  %v78 = vpack.c.bf16 %v54, %v53
  %v79 = vpack.c.bf16 %v56, %v55
  %v80 = vpack.c.bf16 %v58, %v57
  %v81 = vpack.c.bf16 %v60, %v59
  %v82 = vpack.c.bf16 %v62, %v61
  %v83 = vpack.c.bf16 %v64, %v63
  %v84 = vpack.c.bf16 %v66, %v65
  %v85 = vpack.c.bf16 %v68, %v67
  %v86 = vpack.c.bf16 %v70, %v69
  %v87 = vld [vmem:[%s1] sm:$0xff]
  %v88 = vld [vmem:[%s1 + $0x8] sm:$0xff]
  %v89 = vld [vmem:[%s1 + $0x10] sm:$0xff]
  %v90 = vld [vmem:[%s1 + $0x18] sm:$0xff]
  %v91 = vld [vmem:[%s1 + $0x20] sm:$0xff]
  %v92 = vld [vmem:[%s1 + $0x28] sm:$0xff]
  %v93 = vld [vmem:[%s1 + $0x30] sm:$0xff]
  %v94 = vld [vmem:[%s1 + $0x38] sm:$0xff]
  %v95 = vld [vmem:[%s1 + $0x40] sm:$0xff]
  %v96 = vld [vmem:[%s1 + $0x48] sm:$0xff]
  %v97 = vld [vmem:[%s1 + $0x50] sm:$0xff]
  %v98 = vld [vmem:[%s1 + $0x58] sm:$0xff]
  %v111 = vunpack.c.l.b16 %v87
  %v112 = vunpack.c.h.b16 %v87
  %v113 = vunpack.c.l.b16 %v88
  %v114 = vunpack.c.h.b16 %v88
  %v115 = vunpack.c.l.b16 %v89
  %v116 = vunpack.c.h.b16 %v89
  %v117 = vunpack.c.l.b16 %v90
  %v118 = vunpack.c.h.b16 %v90
  %v119 = vunpack.c.l.b16 %v91
  %v120 = vunpack.c.h.b16 %v91
  %v121 = vunpack.c.l.b16 %v92
  %v122 = vunpack.c.h.b16 %v92
  %v123 = vunpack.c.l.b16 %v93
  %v124 = vunpack.c.h.b16 %v93
  %v125 = vunpack.c.l.b16 %v94
  %v126 = vunpack.c.h.b16 %v94
  %v127 = vunpack.c.l.b16 %v95
  %v128 = vunpack.c.h.b16 %v95
  %v129 = vunpack.c.l.b16 %v96
  %v130 = vunpack.c.h.b16 %v96
  %v131 = vunpack.c.l.b16 %v97
  %v132 = vunpack.c.h.b16 %v97
  %v133 = vunpack.c.l.b16 %v98
  %v134 = vunpack.c.h.b16 %v98
  %v135 = vpack.c.b16 %v113, %v111
  %v136 = vpack.c.b16 %v114, %v112
  %v137 = vpack.c.b16 %v117, %v115
  %v138 = vpack.c.b16 %v118, %v116
  %v139 = vpack.c.b16 %v121, %v119
  %v140 = vpack.c.b16 %v122, %v120
  %v141 = vpack.c.b16 %v125, %v123
  %v142 = vpack.c.b16 %v126, %v124
  %v143 = vpack.c.b16 %v129, %v127
  %v144 = vpack.c.b16 %v130, %v128
  %v145 = vpack.c.b16 %v133, %v131
  %v146 = vpack.c.b16 %v134, %v132
  %vm159 = vcmask 785408
  %v161 = vsel %vm159, %v71, 0
  %v164 = vsel %vm159, %v72, 0
  %v167 = vsel %vm159, %v73, 0
  %v170 = vsel %vm159, %v74, 0
  %v173 = vsel %vm159, %v75, 0
  %v176 = vsel %vm159, %v76, 0
  %v179 = vsel %vm159, %v77, 0
  %v182 = vsel %vm159, %v78, 0
  %v185 = vsel %vm159, %v79, 0
  %v188 = vsel %vm159, %v80, 0
  %v191 = vsel %vm159, %v81, 0
  %v194 = vsel %vm159, %v82, 0
  %v197 = vsel %vm159, %v83, 0
  %v200 = vsel %vm159, %v84, 0
  %v203 = vsel %vm159, %v85, 0
  %v206 = vsel %vm159, %v86, 0
  %208 = vmatpush.bf16.msra.mxu0 0
  %209 = vmatpush.bf16.msra.mxu0 0
  %210 = vmatpush.bf16.msra.mxu0 %v145
  %211 = vmatpush.bf16.msra.mxu0 %v143
  %212 = vmatpush.bf16.msra.mxu0 %v141
  %213 = vmatpush.bf16.msra.mxu0 %v139
  %214 = vmatpush.bf16.msra.mxu0 %v137
  %215 = vmatpush.bf16.msra.mxu0 %v135
  %216 = vmatmul.bf16.gmra.mxu0 %v161
  %v217 = vpop.f32.mrf.mxu0
  %v218 = vadd.f32 0.0, %v217
  %v219 = vpop.f32.mrf.mxu0
  %v220 = vadd.f32 0.0, %v219
  %221 = vmatmul.bf16.gmra.mxu0 %v164
  %v222 = vpop.f32.mrf.mxu0
  %v223 = vadd.f32 0.0, %v222
  %v224 = vpop.f32.mrf.mxu0
  %v225 = vadd.f32 0.0, %v224
  %226 = vmatmul.bf16.gmra.mxu0 %v167
  %v227 = vpop.f32.mrf.mxu0
  %v228 = vadd.f32 0.0, %v227
  %v229 = vpop.f32.mrf.mxu0
  %v230 = vadd.f32 0.0, %v229
  %231 = vmatmul.bf16.gmra.mxu0 %v170
  %v232 = vpop.f32.mrf.mxu0
  %v233 = vadd.f32 0.0, %v232
  %v234 = vpop.f32.mrf.mxu0
  %v235 = vadd.f32 0.0, %v234
  %236 = vmatmul.bf16.gmra.mxu0 %v173
  %v237 = vpop.f32.mrf.mxu0
  %v238 = vadd.f32 0.0, %v237
  %v239 = vpop.f32.mrf.mxu0
  %v240 = vadd.f32 0.0, %v239
  %241 = vmatmul.bf16.gmra.mxu0 %v176
  %v242 = vpop.f32.mrf.mxu0
  %v243 = vadd.f32 0.0, %v242
  %v244 = vpop.f32.mrf.mxu0
  %v245 = vadd.f32 0.0, %v244
  %246 = vmatmul.bf16.gmra.mxu0 %v179
  %v247 = vpop.f32.mrf.mxu0
  %v248 = vadd.f32 0.0, %v247
  %v249 = vpop.f32.mrf.mxu0
  %v250 = vadd.f32 0.0, %v249
  %251 = vmatmul.bf16.gmra.mxu0 %v182
  %v252 = vpop.f32.mrf.mxu0
  %v253 = vadd.f32 0.0, %v252
  %v254 = vpop.f32.mrf.mxu0
  %v255 = vadd.f32 0.0, %v254
  %256 = vmatmul.bf16.gmra.mxu0 %v185
  %v257 = vpop.f32.mrf.mxu0
  %v258 = vadd.f32 0.0, %v257
  %v259 = vpop.f32.mrf.mxu0
  %v260 = vadd.f32 0.0, %v259
  %261 = vmatmul.bf16.gmra.mxu0 %v188
  %v262 = vpop.f32.mrf.mxu0
  %v263 = vadd.f32 0.0, %v262
  %v264 = vpop.f32.mrf.mxu0
  %v265 = vadd.f32 0.0, %v264
  %266 = vmatmul.bf16.gmra.mxu0 %v191
  %v267 = vpop.f32.mrf.mxu0
  %v268 = vadd.f32 0.0, %v267
  %v269 = vpop.f32.mrf.mxu0
  %v270 = vadd.f32 0.0, %v269
  %271 = vmatmul.bf16.gmra.mxu0 %v194
  %v272 = vpop.f32.mrf.mxu0
  %v273 = vadd.f32 0.0, %v272
  %v274 = vpop.f32.mrf.mxu0
  %v275 = vadd.f32 0.0, %v274
  %276 = vmatmul.bf16.gmra.mxu0 %v197
  %v277 = vpop.f32.mrf.mxu0
  %v278 = vadd.f32 0.0, %v277
  %v279 = vpop.f32.mrf.mxu0
  %v280 = vadd.f32 0.0, %v279
  %281 = vmatmul.bf16.gmra.mxu0 %v200
  %v282 = vpop.f32.mrf.mxu0
  %v283 = vadd.f32 0.0, %v282
  %v284 = vpop.f32.mrf.mxu0
  %v285 = vadd.f32 0.0, %v284
  %286 = vmatmul.bf16.gmra.mxu0 %v203
  %v287 = vpop.f32.mrf.mxu0
  %v288 = vadd.f32 0.0, %v287
  %v289 = vpop.f32.mrf.mxu0
  %v290 = vadd.f32 0.0, %v289
  %291 = vmatmul.bf16.gmra.mxu0 %v206
  %v292 = vpop.f32.mrf.mxu0
  %v293 = vadd.f32 0.0, %v292
  %v294 = vpop.f32.mrf.mxu0
  %v295 = vadd.f32 0.0, %v294
  %296 = vdwg.mxu0
  %297 = vmatpush.bf16.msra.mxu0 0
  %298 = vmatpush.bf16.msra.mxu0 0
  %299 = vmatpush.bf16.msra.mxu0 %v146
  %300 = vmatpush.bf16.msra.mxu0 %v144
  %301 = vmatpush.bf16.msra.mxu0 %v142
  %302 = vmatpush.bf16.msra.mxu0 %v140
  %303 = vmatpush.bf16.msra.mxu0 %v138
  %304 = vmatpush.bf16.msra.mxu0 %v136
  %305 = vmatmul.bf16.gmra.mxu0 %v161
  %v306 = vpop.f32.mrf.mxu0
  %v307 = vadd.f32 0.0, %v306
  %v308 = vpop.f32.mrf.mxu0
  %v309 = vadd.f32 0.0, %v308
  %310 = vmatmul.bf16.gmra.mxu0 %v164
  %v311 = vpop.f32.mrf.mxu0
  %v312 = vadd.f32 0.0, %v311
  %v313 = vpop.f32.mrf.mxu0
  %v314 = vadd.f32 0.0, %v313
  %315 = vmatmul.bf16.gmra.mxu0 %v167
  %v316 = vpop.f32.mrf.mxu0
  %v317 = vadd.f32 0.0, %v316
  %v318 = vpop.f32.mrf.mxu0
  %v319 = vadd.f32 0.0, %v318
  %320 = vmatmul.bf16.gmra.mxu0 %v170
  %v321 = vpop.f32.mrf.mxu0
  %v322 = vadd.f32 0.0, %v321
  %v323 = vpop.f32.mrf.mxu0
  %v324 = vadd.f32 0.0, %v323
  %325 = vmatmul.bf16.gmra.mxu0 %v173
  %v326 = vpop.f32.mrf.mxu0
  %v327 = vadd.f32 0.0, %v326
  %v328 = vpop.f32.mrf.mxu0
  %v329 = vadd.f32 0.0, %v328
  %330 = vmatmul.bf16.gmra.mxu0 %v176
  %v331 = vpop.f32.mrf.mxu0
  %v332 = vadd.f32 0.0, %v331
  %v333 = vpop.f32.mrf.mxu0
  %v334 = vadd.f32 0.0, %v333
  %335 = vmatmul.bf16.gmra.mxu0 %v179
  %v336 = vpop.f32.mrf.mxu0
  %v337 = vadd.f32 0.0, %v336
  %v338 = vpop.f32.mrf.mxu0
  %v339 = vadd.f32 0.0, %v338
  %340 = vmatmul.bf16.gmra.mxu0 %v182
  %v341 = vpop.f32.mrf.mxu0
  %v342 = vadd.f32 0.0, %v341
  %v343 = vpop.f32.mrf.mxu0
  %v344 = vadd.f32 0.0, %v343
  %345 = vmatmul.bf16.gmra.mxu0 %v185
  %v346 = vpop.f32.mrf.mxu0
  %v347 = vadd.f32 0.0, %v346
  %v348 = vpop.f32.mrf.mxu0
  %v349 = vadd.f32 0.0, %v348
  %350 = vmatmul.bf16.gmra.mxu0 %v188
  %v351 = vpop.f32.mrf.mxu0
  %v352 = vadd.f32 0.0, %v351
  %v353 = vpop.f32.mrf.mxu0
  %v354 = vadd.f32 0.0, %v353
  %355 = vmatmul.bf16.gmra.mxu0 %v191
  %v356 = vpop.f32.mrf.mxu0
  %v357 = vadd.f32 0.0, %v356
  %v358 = vpop.f32.mrf.mxu0
  %v359 = vadd.f32 0.0, %v358
  %360 = vmatmul.bf16.gmra.mxu0 %v194
  %v361 = vpop.f32.mrf.mxu0
  %v362 = vadd.f32 0.0, %v361
  %v363 = vpop.f32.mrf.mxu0
  %v364 = vadd.f32 0.0, %v363
  %365 = vmatmul.bf16.gmra.mxu0 %v197
  %v366 = vpop.f32.mrf.mxu0
  %v367 = vadd.f32 0.0, %v366
  %v368 = vpop.f32.mrf.mxu0
  %v369 = vadd.f32 0.0, %v368
  %370 = vmatmul.bf16.gmra.mxu0 %v200
  %v371 = vpop.f32.mrf.mxu0
  %v372 = vadd.f32 0.0, %v371
  %v373 = vpop.f32.mrf.mxu0
  %v374 = vadd.f32 0.0, %v373
  %375 = vmatmul.bf16.gmra.mxu0 %v203
  %v376 = vpop.f32.mrf.mxu0
  %v377 = vadd.f32 0.0, %v376
  %v378 = vpop.f32.mrf.mxu0
  %v379 = vadd.f32 0.0, %v378
  %380 = vmatmul.bf16.gmra.mxu0 %v206
  %v381 = vpop.f32.mrf.mxu0
  %v382 = vadd.f32 0.0, %v381
  %v383 = vpop.f32.mrf.mxu0
  %v384 = vadd.f32 0.0, %v383
  %385 = vdwg.mxu0
  %386 = vst [vmem:[#allocation2] sm:$0xff] %v218
  %387 = vst [vmem:[#allocation2 + $0x8] sm:$0xff] %v307
  %388 = vst [vmem:[#allocation2 + $0x10] sm:$0xff] %v220
  %389 = vst [vmem:[#allocation2 + $0x18] sm:$0xff] %v309
  %390 = vst [vmem:[#allocation2 + $0x20] sm:$0xff] %v223
  %391 = vst [vmem:[#allocation2 + $0x28] sm:$0xff] %v312
  %392 = vst [vmem:[#allocation2 + $0x30] sm:$0xff] %v225
  %393 = vst [vmem:[#allocation2 + $0x38] sm:$0xff] %v314
  %394 = vst [vmem:[#allocation2 + $0x40] sm:$0xff] %v228
  %395 = vst [vmem:[#allocation2 + $0x48] sm:$0xff] %v317
  %396 = vst [vmem:[#allocation2 + $0x50] sm:$0xff] %v230
  %397 = vst [vmem:[#allocation2 + $0x58] sm:$0xff] %v319
  %398 = vst [vmem:[#allocation2 + $0x60] sm:$0xff] %v233
  %399 = vst [vmem:[#allocation2 + $0x68] sm:$0xff] %v322
  %400 = vst [vmem:[#allocation2 + $0x70] sm:$0xff] %v235
  %401 = vst [vmem:[#allocation2 + $0x78] sm:$0xff] %v324
  %402 = vst [vmem:[#allocation2 + $0x80] sm:$0xff] %v238
  %403 = vst [vmem:[#allocation2 + $0x88] sm:$0xff] %v327
  %404 = vst [vmem:[#allocation2 + $0x90] sm:$0xff] %v240
  %405 = vst [vmem:[#allocation2 + $0x98] sm:$0xff] %v329
  %406 = vst [vmem:[#allocation2 + $0xa0] sm:$0xff] %v243
  %407 = vst [vmem:[#allocation2 + $0xa8] sm:$0xff] %v332
  %408 = vst [vmem:[#allocation2 + $0xb0] sm:$0xff] %v245
  %409 = vst [vmem:[#allocation2 + $0xb8] sm:$0xff] %v334
  %410 = vst [vmem:[#allocation2 + $0xc0] sm:$0xff] %v248
  %411 = vst [vmem:[#allocation2 + $0xc8] sm:$0xff] %v337
  %412 = vst [vmem:[#allocation2 + $0xd0] sm:$0xff] %v250
  %413 = vst [vmem:[#allocation2 + $0xd8] sm:$0xff] %v339
  %414 = vst [vmem:[#allocation2 + $0xe0] sm:$0xff] %v253
  %415 = vst [vmem:[#allocation2 + $0xe8] sm:$0xff] %v342
  %416 = vst [vmem:[#allocation2 + $0xf0] sm:$0xff] %v255
  %417 = vst [vmem:[#allocation2 + $0xf8] sm:$0xff] %v344
  %418 = vst [vmem:[#allocation2 + $0x100] sm:$0xff] %v258
  %419 = vst [vmem:[#allocation2 + $0x108] sm:$0xff] %v347
  %420 = vst [vmem:[#allocation2 + $0x110] sm:$0xff] %v260
  %421 = vst [vmem:[#allocation2 + $0x118] sm:$0xff] %v349
  %422 = vst [vmem:[#allocation2 + $0x120] sm:$0xff] %v263
  %423 = vst [vmem:[#allocation2 + $0x128] sm:$0xff] %v352
  %424 = vst [vmem:[#allocation2 + $0x130] sm:$0xff] %v265
  %425 = vst [vmem:[#allocation2 + $0x138] sm:$0xff] %v354
  %426 = vst [vmem:[#allocation2 + $0x140] sm:$0xff] %v268
  %427 = vst [vmem:[#allocation2 + $0x148] sm:$0xff] %v357
  %428 = vst [vmem:[#allocation2 + $0x150] sm:$0xff] %v270
  %429 = vst [vmem:[#allocation2 + $0x158] sm:$0xff] %v359
  %430 = vst [vmem:[#allocation2 + $0x160] sm:$0xff] %v273
  %431 = vst [vmem:[#allocation2 + $0x168] sm:$0xff] %v362
  %432 = vst [vmem:[#allocation2 + $0x170] sm:$0xff] %v275
  %433 = vst [vmem:[#allocation2 + $0x178] sm:$0xff] %v364
  %434 = vst [vmem:[#allocation2 + $0x180] sm:$0xff] %v278
  %435 = vst [vmem:[#allocation2 + $0x188] sm:$0xff] %v367
  %436 = vst [vmem:[#allocation2 + $0x190] sm:$0xff] %v280
  %437 = vst [vmem:[#allocation2 + $0x198] sm:$0xff] %v369
  %438 = vst [vmem:[#allocation2 + $0x1a0] sm:$0xff] %v283
  %439 = vst [vmem:[#allocation2 + $0x1a8] sm:$0xff] %v372
  %440 = vst [vmem:[#allocation2 + $0x1b0] sm:$0xff] %v285
  %441 = vst [vmem:[#allocation2 + $0x1b8] sm:$0xff] %v374
  %442 = vst [vmem:[#allocation2 + $0x1c0] sm:$0xff] %v288
  %443 = vst [vmem:[#allocation2 + $0x1c8] sm:$0xff] %v377
  %444 = vst [vmem:[#allocation2 + $0x1d0] sm:$0xff] %v290
  %445 = vst [vmem:[#allocation2 + $0x1d8] sm:$0xff] %v379
  %446 = vst [vmem:[#allocation2 + $0x1e0] sm:$0xff] %v293
  %447 = vst [vmem:[#allocation2 + $0x1e8] sm:$0xff] %v382
  %448 = vst [vmem:[#allocation2 + $0x1f0] sm:$0xf] %v295
  %449 = vst [vmem:[#allocation2 + $0x1f8] sm:$0xf] %v384
  %v450 = vld [vmem:[%s0 + $0x1] sm:$0xff]
  %v451 = vld [vmem:[%s0 + $0x9] sm:$0xff]
  %v452 = vld [vmem:[%s0 + $0x11] sm:$0xff]
  %v453 = vld [vmem:[%s0 + $0x19] sm:$0xff]
  %v454 = vld [vmem:[%s0 + $0x21] sm:$0xff]
  %v455 = vld [vmem:[%s0 + $0x29] sm:$0xff]
  %v456 = vld [vmem:[%s0 + $0x31] sm:$0xff]
  %v457 = vld [vmem:[%s0 + $0x39] sm:$0xff]
  %v458 = vld [vmem:[%s0 + $0x41] sm:$0xff]
  %v459 = vld [vmem:[%s0 + $0x49] sm:$0xff]
  %v460 = vld [vmem:[%s0 + $0x51] sm:$0xff]
  %v461 = vld [vmem:[%s0 + $0x59] sm:$0xff]
  %v462 = vld [vmem:[%s0 + $0x61] sm:$0xff]
  %v463 = vld [vmem:[%s0 + $0x69] sm:$0xff]
  %v464 = vld [vmem:[%s0 + $0x71] sm:$0xff]
  %v465 = vld [vmem:[%s0 + $0x79] sm:$0xff]
  %v466 = vld [vmem:[%s0 + $0x81] sm:$0xff]
  %v467 = vld [vmem:[%s0 + $0x89] sm:$0xff]
  %v468 = vld [vmem:[%s0 + $0x91] sm:$0xff]
  %v469 = vld [vmem:[%s0 + $0x99] sm:$0xff]
  %v470 = vld [vmem:[%s0 + $0xa1] sm:$0xff]
  %v471 = vld [vmem:[%s0 + $0xa9] sm:$0xff]
  %v472 = vld [vmem:[%s0 + $0xb1] sm:$0xff]
  %v473 = vld [vmem:[%s0 + $0xb9] sm:$0xff]
  %v474 = vld [vmem:[%s0 + $0xc1] sm:$0xff]
  %v475 = vld [vmem:[%s0 + $0xc9] sm:$0xff]
  %v476 = vld [vmem:[%s0 + $0xd1] sm:$0xff]
  %v477 = vld [vmem:[%s0 + $0xd9] sm:$0xff]
  %v478 = vld [vmem:[%s0 + $0xe1] sm:$0xff]
  %v479 = vld [vmem:[%s0 + $0xe9] sm:$0xff]
  %v480 = vld [vmem:[%s0 + $0xf1] sm:$0xff]
  %v481 = vld [vmem:[%s0 + $0xf9] sm:$0xf]
  %v482 = vpack.c.bf16 %v451, %v450
  %v483 = vpack.c.bf16 %v453, %v452
  %v484 = vpack.c.bf16 %v455, %v454
  %v485 = vpack.c.bf16 %v457, %v456
  %v486 = vpack.c.bf16 %v459, %v458
  %v487 = vpack.c.bf16 %v461, %v460
  %v488 = vpack.c.bf16 %v463, %v462
  %v489 = vpack.c.bf16 %v465, %v464
  %v490 = vpack.c.bf16 %v467, %v466
  %v491 = vpack.c.bf16 %v469, %v468
  %v492 = vpack.c.bf16 %v471, %v470
  %v493 = vpack.c.bf16 %v473, %v472
  %v494 = vpack.c.bf16 %v475, %v474
  %v495 = vpack.c.bf16 %v477, %v476
  %v496 = vpack.c.bf16 %v479, %v478
  %v497 = vpack.c.bf16 %v481, %v480
  %s498 = scalar_lea.vmem %s1, 96
  %v499 = vld [vmem:[%s498] sm:$0xff]
  %v500 = vld [vmem:[%s498 + $0x8] sm:$0xff]
  %v501 = vld [vmem:[%s498 + $0x10] sm:$0xff]
  %v502 = vld [vmem:[%s498 + $0x18] sm:$0xff]
  %v503 = vld [vmem:[%s498 + $0x20] sm:$0xff]
  %v504 = vld [vmem:[%s498 + $0x28] sm:$0xff]
  %v505 = vld [vmem:[%s498 + $0x30] sm:$0xff]
  %v506 = vld [vmem:[%s498 + $0x38] sm:$0xff]
  %v507 = vld [vmem:[%s498 + $0x40] sm:$0xff]
  %v508 = vld [vmem:[%s498 + $0x48] sm:$0xff]
  %v509 = vld [vmem:[%s498 + $0x50] sm:$0xff]
  %v510 = vld [vmem:[%s498 + $0x58] sm:$0xff]
  %v523 = vunpack.c.l.b16 %v499
  %v524 = vunpack.c.h.b16 %v499
  %v525 = vunpack.c.l.b16 %v500
  %v526 = vunpack.c.h.b16 %v500
  %v527 = vunpack.c.l.b16 %v501
  %v528 = vunpack.c.h.b16 %v501
  %v529 = vunpack.c.l.b16 %v502
  %v530 = vunpack.c.h.b16 %v502
  %v531 = vunpack.c.l.b16 %v503
  %v532 = vunpack.c.h.b16 %v503
  %v533 = vunpack.c.l.b16 %v504
  %v534 = vunpack.c.h.b16 %v504
  %v535 = vunpack.c.l.b16 %v505
  %v536 = vunpack.c.h.b16 %v505
  %v537 = vunpack.c.l.b16 %v506
  %v538 = vunpack.c.h.b16 %v506
  %v539 = vunpack.c.l.b16 %v507
  %v540 = vunpack.c.h.b16 %v507
  %v541 = vunpack.c.l.b16 %v508
  %v542 = vunpack.c.h.b16 %v508
  %v543 = vunpack.c.l.b16 %v509
  %v544 = vunpack.c.h.b16 %v509
  %v545 = vunpack.c.l.b16 %v510
  %v546 = vunpack.c.h.b16 %v510
  %v547 = vpack.c.b16 %v525, %v523
  %v548 = vpack.c.b16 %v526, %v524
  %v549 = vpack.c.b16 %v529, %v527
  %v550 = vpack.c.b16 %v530, %v528
  %v551 = vpack.c.b16 %v533, %v531
  %v552 = vpack.c.b16 %v534, %v532
  %v553 = vpack.c.b16 %v537, %v535
  %v554 = vpack.c.b16 %v538, %v536
  %v555 = vpack.c.b16 %v541, %v539
  %v556 = vpack.c.b16 %v542, %v540
  %v557 = vpack.c.b16 %v545, %v543
  %v558 = vpack.c.b16 %v546, %v544
  %v572 = vsel %vm159, %v482, 0
  %v575 = vsel %vm159, %v483, 0
  %v578 = vsel %vm159, %v484, 0
  %v581 = vsel %vm159, %v485, 0
  %v584 = vsel %vm159, %v486, 0
  %v587 = vsel %vm159, %v487, 0
  %v590 = vsel %vm159, %v488, 0
  %v593 = vsel %vm159, %v489, 0
  %v596 = vsel %vm159, %v490, 0
  %v599 = vsel %vm159, %v491, 0
  %v602 = vsel %vm159, %v492, 0
  %v605 = vsel %vm159, %v493, 0
  %v608 = vsel %vm159, %v494, 0
  %v611 = vsel %vm159, %v495, 0
  %v614 = vsel %vm159, %v496, 0
  %v617 = vsel %vm159, %v497, 0
  %619 = vmatpush.bf16.msra.mxu0 0
  %620 = vmatpush.bf16.msra.mxu0 0
  %621 = vmatpush.bf16.msra.mxu0 %v557
  %622 = vmatpush.bf16.msra.mxu0 %v555
  %623 = vmatpush.bf16.msra.mxu0 %v553
  %624 = vmatpush.bf16.msra.mxu0 %v551
  %625 = vmatpush.bf16.msra.mxu0 %v549
  %626 = vmatpush.bf16.msra.mxu0 %v547
  %627 = vmatmul.bf16.gmra.mxu0 %v572
  %v628 = vpop.f32.mrf.mxu0
  %v629 = vadd.f32 0.0, %v628
  %v630 = vpop.f32.mrf.mxu0
  %v631 = vadd.f32 0.0, %v630
  %632 = vmatmul.bf16.gmra.mxu0 %v575
  %v633 = vpop.f32.mrf.mxu0
  %v634 = vadd.f32 0.0, %v633
  %v635 = vpop.f32.mrf.mxu0
  %v636 = vadd.f32 0.0, %v635
  %637 = vmatmul.bf16.gmra.mxu0 %v578
  %v638 = vpop.f32.mrf.mxu0
  %v639 = vadd.f32 0.0, %v638
  %v640 = vpop.f32.mrf.mxu0
  %v641 = vadd.f32 0.0, %v640
  %642 = vmatmul.bf16.gmra.mxu0 %v581
  %v643 = vpop.f32.mrf.mxu0
  %v644 = vadd.f32 0.0, %v643
  %v645 = vpop.f32.mrf.mxu0
  %v646 = vadd.f32 0.0, %v645
  %647 = vmatmul.bf16.gmra.mxu0 %v584
  %v648 = vpop.f32.mrf.mxu0
  %v649 = vadd.f32 0.0, %v648
  %v650 = vpop.f32.mrf.mxu0
  %v651 = vadd.f32 0.0, %v650
  %652 = vmatmul.bf16.gmra.mxu0 %v587
  %v653 = vpop.f32.mrf.mxu0
  %v654 = vadd.f32 0.0, %v653
  %v655 = vpop.f32.mrf.mxu0
  %v656 = vadd.f32 0.0, %v655
  %657 = vmatmul.bf16.gmra.mxu0 %v590
  %v658 = vpop.f32.mrf.mxu0
  %v659 = vadd.f32 0.0, %v658
  %v660 = vpop.f32.mrf.mxu0
  %v661 = vadd.f32 0.0, %v660
  %662 = vmatmul.bf16.gmra.mxu0 %v593
  %v663 = vpop.f32.mrf.mxu0
  %v664 = vadd.f32 0.0, %v663
  %v665 = vpop.f32.mrf.mxu0
  %v666 = vadd.f32 0.0, %v665
  %667 = vmatmul.bf16.gmra.mxu0 %v596
  %v668 = vpop.f32.mrf.mxu0
  %v669 = vadd.f32 0.0, %v668
  %v670 = vpop.f32.mrf.mxu0
  %v671 = vadd.f32 0.0, %v670
  %672 = vmatmul.bf16.gmra.mxu0 %v599
  %v673 = vpop.f32.mrf.mxu0
  %v674 = vadd.f32 0.0, %v673
  %v675 = vpop.f32.mrf.mxu0
  %v676 = vadd.f32 0.0, %v675
  %677 = vmatmul.bf16.gmra.mxu0 %v602
  %v678 = vpop.f32.mrf.mxu0
  %v679 = vadd.f32 0.0, %v678
  %v680 = vpop.f32.mrf.mxu0
  %v681 = vadd.f32 0.0, %v680
  %682 = vmatmul.bf16.gmra.mxu0 %v605
  %v683 = vpop.f32.mrf.mxu0
  %v684 = vadd.f32 0.0, %v683
  %v685 = vpop.f32.mrf.mxu0
  %v686 = vadd.f32 0.0, %v685
  %687 = vmatmul.bf16.gmra.mxu0 %v608
  %v688 = vpop.f32.mrf.mxu0
  %v689 = vadd.f32 0.0, %v688
  %v690 = vpop.f32.mrf.mxu0
  %v691 = vadd.f32 0.0, %v690
  %692 = vmatmul.bf16.gmra.mxu0 %v611
  %v693 = vpop.f32.mrf.mxu0
  %v694 = vadd.f32 0.0, %v693
  %v695 = vpop.f32.mrf.mxu0
  %v696 = vadd.f32 0.0, %v695
  %697 = vmatmul.bf16.gmra.mxu0 %v614
  %v698 = vpop.f32.mrf.mxu0
  %v699 = vadd.f32 0.0, %v698
  %v700 = vpop.f32.mrf.mxu0
  %v701 = vadd.f32 0.0, %v700
  %702 = vmatmul.bf16.gmra.mxu0 %v617
  %v703 = vpop.f32.mrf.mxu0
  %v704 = vadd.f32 0.0, %v703
  %v705 = vpop.f32.mrf.mxu0
  %v706 = vadd.f32 0.0, %v705
  %707 = vdwg.mxu0
  %708 = vmatpush.bf16.msra.mxu0 0
  %709 = vmatpush.bf16.msra.mxu0 0
  %710 = vmatpush.bf16.msra.mxu0 %v558
  %711 = vmatpush.bf16.msra.mxu0 %v556
  %712 = vmatpush.bf16.msra.mxu0 %v554
  %713 = vmatpush.bf16.msra.mxu0 %v552
  %714 = vmatpush.bf16.msra.mxu0 %v550
  %715 = vmatpush.bf16.msra.mxu0 %v548
  %716 = vmatmul.bf16.gmra.mxu0 %v572
  %v717 = vpop.f32.mrf.mxu0
  %v718 = vadd.f32 0.0, %v717
  %v719 = vpop.f32.mrf.mxu0
  %v720 = vadd.f32 0.0, %v719
  %721 = vmatmul.bf16.gmra.mxu0 %v575
  %v722 = vpop.f32.mrf.mxu0
  %v723 = vadd.f32 0.0, %v722
  %v724 = vpop.f32.mrf.mxu0
  %v725 = vadd.f32 0.0, %v724
  %726 = vmatmul.bf16.gmra.mxu0 %v578
  %v727 = vpop.f32.mrf.mxu0
  %v728 = vadd.f32 0.0, %v727
  %v729 = vpop.f32.mrf.mxu0
  %v730 = vadd.f32 0.0, %v729
  %731 = vmatmul.bf16.gmra.mxu0 %v581
  %v732 = vpop.f32.mrf.mxu0
  %v733 = vadd.f32 0.0, %v732
  %v734 = vpop.f32.mrf.mxu0
  %v735 = vadd.f32 0.0, %v734
  %736 = vmatmul.bf16.gmra.mxu0 %v584
  %v737 = vpop.f32.mrf.mxu0
  %v738 = vadd.f32 0.0, %v737
  %v739 = vpop.f32.mrf.mxu0
  %v740 = vadd.f32 0.0, %v739
  %741 = vmatmul.bf16.gmra.mxu0 %v587
  %v742 = vpop.f32.mrf.mxu0
  %v743 = vadd.f32 0.0, %v742
  %v744 = vpop.f32.mrf.mxu0
  %v745 = vadd.f32 0.0, %v744
  %746 = vmatmul.bf16.gmra.mxu0 %v590
  %v747 = vpop.f32.mrf.mxu0
  %v748 = vadd.f32 0.0, %v747
  %v749 = vpop.f32.mrf.mxu0
  %v750 = vadd.f32 0.0, %v749
  %751 = vmatmul.bf16.gmra.mxu0 %v593
  %v752 = vpop.f32.mrf.mxu0
  %v753 = vadd.f32 0.0, %v752
  %v754 = vpop.f32.mrf.mxu0
  %v755 = vadd.f32 0.0, %v754
  %756 = vmatmul.bf16.gmra.mxu0 %v596
  %v757 = vpop.f32.mrf.mxu0
  %v758 = vadd.f32 0.0, %v757
  %v759 = vpop.f32.mrf.mxu0
  %v760 = vadd.f32 0.0, %v759
  %761 = vmatmul.bf16.gmra.mxu0 %v599
  %v762 = vpop.f32.mrf.mxu0
  %v763 = vadd.f32 0.0, %v762
  %v764 = vpop.f32.mrf.mxu0
  %v765 = vadd.f32 0.0, %v764
  %766 = vmatmul.bf16.gmra.mxu0 %v602
  %v767 = vpop.f32.mrf.mxu0
  %v768 = vadd.f32 0.0, %v767
  %v769 = vpop.f32.mrf.mxu0
  %v770 = vadd.f32 0.0, %v769
  %771 = vmatmul.bf16.gmra.mxu0 %v605
  %v772 = vpop.f32.mrf.mxu0
  %v773 = vadd.f32 0.0, %v772
  %v774 = vpop.f32.mrf.mxu0
  %v775 = vadd.f32 0.0, %v774
  %776 = vmatmul.bf16.gmra.mxu0 %v608
  %v777 = vpop.f32.mrf.mxu0
  %v778 = vadd.f32 0.0, %v777
  %v779 = vpop.f32.mrf.mxu0
  %v780 = vadd.f32 0.0, %v779
  %781 = vmatmul.bf16.gmra.mxu0 %v611
  %v782 = vpop.f32.mrf.mxu0
  %v783 = vadd.f32 0.0, %v782
  %v784 = vpop.f32.mrf.mxu0
  %v785 = vadd.f32 0.0, %v784
  %786 = vmatmul.bf16.gmra.mxu0 %v614
  %v787 = vpop.f32.mrf.mxu0
  %v788 = vadd.f32 0.0, %v787
  %v789 = vpop.f32.mrf.mxu0
  %v790 = vadd.f32 0.0, %v789
  %791 = vmatmul.bf16.gmra.mxu0 %v617
  %v792 = vpop.f32.mrf.mxu0
  %v793 = vadd.f32 0.0, %v792
  %v794 = vpop.f32.mrf.mxu0
  %v795 = vadd.f32 0.0, %v794
  %796 = vdwg.mxu0
  %v797 = vld [vmem:[#allocation2] sm:$0xff]
  %v798 = vld [vmem:[#allocation2 + $0x8] sm:$0xff]
  %v799 = vld [vmem:[#allocation2 + $0x10] sm:$0xff]
  %v800 = vld [vmem:[#allocation2 + $0x18] sm:$0xff]
  %v801 = vld [vmem:[#allocation2 + $0x20] sm:$0xff]
  %v802 = vld [vmem:[#allocation2 + $0x28] sm:$0xff]
  %v803 = vld [vmem:[#allocation2 + $0x30] sm:$0xff]
  %v804 = vld [vmem:[#allocation2 + $0x38] sm:$0xff]
  %v805 = vld [vmem:[#allocation2 + $0x40] sm:$0xff]
  %v806 = vld [vmem:[#allocation2 + $0x48] sm:$0xff]
  %v807 = vld [vmem:[#allocation2 + $0x50] sm:$0xff]
  %v808 = vld [vmem:[#allocation2 + $0x58] sm:$0xff]
  %v809 = vld [vmem:[#allocation2 + $0x60] sm:$0xff]
  %v810 = vld [vmem:[#allocation2 + $0x68] sm:$0xff]
  %v811 = vld [vmem:[#allocation2 + $0x70] sm:$0xff]
  %v812 = vld [vmem:[#allocation2 + $0x78] sm:$0xff]
  %v813 = vld [vmem:[#allocation2 + $0x80] sm:$0xff]
  %v814 = vld [vmem:[#allocation2 + $0x88] sm:$0xff]
  %v815 = vld [vmem:[#allocation2 + $0x90] sm:$0xff]
  %v816 = vld [vmem:[#allocation2 + $0x98] sm:$0xff]
  %v817 = vld [vmem:[#allocation2 + $0xa0] sm:$0xff]
  %v818 = vld [vmem:[#allocation2 + $0xa8] sm:$0xff]
  %v819 = vld [vmem:[#allocation2 + $0xb0] sm:$0xff]
  %v820 = vld [vmem:[#allocation2 + $0xb8] sm:$0xff]
  %v821 = vld [vmem:[#allocation2 + $0xc0] sm:$0xff]
  %v822 = vld [vmem:[#allocation2 + $0xc8] sm:$0xff]
  %v823 = vld [vmem:[#allocation2 + $0xd0] sm:$0xff]
  %v824 = vld [vmem:[#allocation2 + $0xd8] sm:$0xff]
  %v825 = vld [vmem:[#allocation2 + $0xe0] sm:$0xff]
  %v826 = vld [vmem:[#allocation2 + $0xe8] sm:$0xff]
  %v827 = vld [vmem:[#allocation2 + $0xf0] sm:$0xff]
  %v828 = vld [vmem:[#allocation2 + $0xf8] sm:$0xff]
  %v829 = vld [vmem:[#allocation2 + $0x100] sm:$0xff]
  %v830 = vld [vmem:[#allocation2 + $0x108] sm:$0xff]
  %v831 = vld [vmem:[#allocation2 + $0x110] sm:$0xff]
  %v832 = vld [vmem:[#allocation2 + $0x118] sm:$0xff]
  %v833 = vld [vmem:[#allocation2 + $0x120] sm:$0xff]
  %v834 = vld [vmem:[#allocation2 + $0x128] sm:$0xff]
  %v835 = vld [vmem:[#allocation2 + $0x130] sm:$0xff]
  %v836 = vld [vmem:[#allocation2 + $0x138] sm:$0xff]
  %v837 = vld [vmem:[#allocation2 + $0x140] sm:$0xff]
  %v838 = vld [vmem:[#allocation2 + $0x148] sm:$0xff]
  %v839 = vld [vmem:[#allocation2 + $0x150] sm:$0xff]
  %v840 = vld [vmem:[#allocation2 + $0x158] sm:$0xff]
  %v841 = vld [vmem:[#allocation2 + $0x160] sm:$0xff]
  %v842 = vld [vmem:[#allocation2 + $0x168] sm:$0xff]
  %v843 = vld [vmem:[#allocation2 + $0x170] sm:$0xff]
  %v844 = vld [vmem:[#allocation2 + $0x178] sm:$0xff]
  %v845 = vld [vmem:[#allocation2 + $0x180] sm:$0xff]
  %v846 = vld [vmem:[#allocation2 + $0x188] sm:$0xff]
  %v847 = vld [vmem:[#allocation2 + $0x190] sm:$0xff]
  %v848 = vld [vmem:[#allocation2 + $0x198] sm:$0xff]
  %v849 = vld [vmem:[#allocation2 + $0x1a0] sm:$0xff]
  %v850 = vld [vmem:[#allocation2 + $0x1a8] sm:$0xff]
  %v851 = vld [vmem:[#allocation2 + $0x1b0] sm:$0xff]
  %v852 = vld [vmem:[#allocation2 + $0x1b8] sm:$0xff]
  %v853 = vld [vmem:[#allocation2 + $0x1c0] sm:$0xff]
  %v854 = vld [vmem:[#allocation2 + $0x1c8] sm:$0xff]
  %v855 = vld [vmem:[#allocation2 + $0x1d0] sm:$0xff]
  %v856 = vld [vmem:[#allocation2 + $0x1d8] sm:$0xff]
  %v857 = vld [vmem:[#allocation2 + $0x1e0] sm:$0xff]
  %v858 = vld [vmem:[#allocation2 + $0x1e8] sm:$0xff]
  %v859 = vld [vmem:[#allocation2 + $0x1f0] sm:$0xf]
  %v860 = vld [vmem:[#allocation2 + $0x1f8] sm:$0xf]
  %v861 = vadd.f32 %v797, %v629
  %v862 = vadd.f32 %v798, %v718
  %v863 = vadd.f32 %v799, %v631
  %v864 = vadd.f32 %v800, %v720
  %v865 = vadd.f32 %v801, %v634
  %v866 = vadd.f32 %v802, %v723
  %v867 = vadd.f32 %v803, %v636
  %v868 = vadd.f32 %v804, %v725
  %v869 = vadd.f32 %v805, %v639
  %v870 = vadd.f32 %v806, %v728
  %v871 = vadd.f32 %v807, %v641
  %v872 = vadd.f32 %v808, %v730
  %v873 = vadd.f32 %v809, %v644
  %v874 = vadd.f32 %v810, %v733
  %v875 = vadd.f32 %v811, %v646
  %v876 = vadd.f32 %v812, %v735
  %v877 = vadd.f32 %v813, %v649
  %v878 = vadd.f32 %v814, %v738
  %v879 = vadd.f32 %v815, %v651
  %v880 = vadd.f32 %v816, %v740
  %v881 = vadd.f32 %v817, %v654
  %v882 = vadd.f32 %v818, %v743
  %v883 = vadd.f32 %v819, %v656
  %v884 = vadd.f32 %v820, %v745
  %v885 = vadd.f32 %v821, %v659
  %v886 = vadd.f32 %v822, %v748
  %v887 = vadd.f32 %v823, %v661
  %v888 = vadd.f32 %v824, %v750
  %v889 = vadd.f32 %v825, %v664
  %v890 = vadd.f32 %v826, %v753
  %v891 = vadd.f32 %v827, %v666
  %v892 = vadd.f32 %v828, %v755
  %v893 = vadd.f32 %v829, %v669
  %v894 = vadd.f32 %v830, %v758
  %v895 = vadd.f32 %v831, %v671
  %v896 = vadd.f32 %v832, %v760
  %v897 = vadd.f32 %v833, %v674
  %v898 = vadd.f32 %v834, %v763
  %v899 = vadd.f32 %v835, %v676
  %v900 = vadd.f32 %v836, %v765
  %v901 = vadd.f32 %v837, %v679
  %v902 = vadd.f32 %v838, %v768
  %v903 = vadd.f32 %v839, %v681
  %v904 = vadd.f32 %v840, %v770
  %v905 = vadd.f32 %v841, %v684
  %v906 = vadd.f32 %v842, %v773
  %v907 = vadd.f32 %v843, %v686
  %v908 = vadd.f32 %v844, %v775
  %v909 = vadd.f32 %v845, %v689
  %v910 = vadd.f32 %v846, %v778
  %v911 = vadd.f32 %v847, %v691
  %v912 = vadd.f32 %v848, %v780
  %v913 = vadd.f32 %v849, %v694
  %v914 = vadd.f32 %v850, %v783
  %v915 = vadd.f32 %v851, %v696
  %v916 = vadd.f32 %v852, %v785
  %v917 = vadd.f32 %v853, %v699
  %v918 = vadd.f32 %v854, %v788
  %v919 = vadd.f32 %v855, %v701
  %v920 = vadd.f32 %v856, %v790
  %v921 = vadd.f32 %v857, %v704
  %v922 = vadd.f32 %v858, %v793
  %v923 = vadd.f32 %v859, %v706
  %v924 = vadd.f32 %v860, %v795
  %925 = vst [vmem:[#allocation2] sm:$0xff] %v861
  %926 = vst [vmem:[#allocation2 + $0x8] sm:$0xff] %v862
  %927 = vst [vmem:[#allocation2 + $0x10] sm:$0xff] %v863
  %928 = vst [vmem:[#allocation2 + $0x18] sm:$0xff] %v864
  %929 = vst [vmem:[#allocation2 + $0x20] sm:$0xff] %v865
  %930 = vst [vmem:[#allocation2 + $0x28] sm:$0xff] %v866
  %931 = vst [vmem:[#allocation2 + $0x30] sm:$0xff] %v867
  %932 = vst [vmem:[#allocation2 + $0x38] sm:$0xff] %v868
  %933 = vst [vmem:[#allocation2 + $0x40] sm:$0xff] %v869
  %934 = vst [vmem:[#allocation2 + $0x48] sm:$0xff] %v870
  %935 = vst [vmem:[#allocation2 + $0x50] sm:$0xff] %v871
  %936 = vst [vmem:[#allocation2 + $0x58] sm:$0xff] %v872
  %937 = vst [vmem:[#allocation2 + $0x60] sm:$0xff] %v873
  %938 = vst [vmem:[#allocation2 + $0x68] sm:$0xff] %v874
  %939 = vst [vmem:[#allocation2 + $0x70] sm:$0xff] %v875
  %940 = vst [vmem:[#allocation2 + $0x78] sm:$0xff] %v876
  %941 = vst [vmem:[#allocation2 + $0x80] sm:$0xff] %v877
  %942 = vst [vmem:[#allocation2 + $0x88] sm:$0xff] %v878
  %943 = vst [vmem:[#allocation2 + $0x90] sm:$0xff] %v879
  %944 = vst [vmem:[#allocation2 + $0x98] sm:$0xff] %v880
  %945 = vst [vmem:[#allocation2 + $0xa0] sm:$0xff] %v881
  %946 = vst [vmem:[#allocation2 + $0xa8] sm:$0xff] %v882
  %947 = vst [vmem:[#allocation2 + $0xb0] sm:$0xff] %v883
  %948 = vst [vmem:[#allocation2 + $0xb8] sm:$0xff] %v884
  %949 = vst [vmem:[#allocation2 + $0xc0] sm:$0xff] %v885
  %950 = vst [vmem:[#allocation2 + $0xc8] sm:$0xff] %v886
  %951 = vst [vmem:[#allocation2 + $0xd0] sm:$0xff] %v887
  %952 = vst [vmem:[#allocation2 + $0xd8] sm:$0xff] %v888
  %953 = vst [vmem:[#allocation2 + $0xe0] sm:$0xff] %v889
  %954 = vst [vmem:[#allocation2 + $0xe8] sm:$0xff] %v890
  %955 = vst [vmem:[#allocation2 + $0xf0] sm:$0xff] %v891
  %956 = vst [vmem:[#allocation2 + $0xf8] sm:$0xff] %v892
  %957 = vst [vmem:[#allocation2 + $0x100] sm:$0xff] %v893
  %958 = vst [vmem:[#allocation2 + $0x108] sm:$0xff] %v894
  %959 = vst [vmem:[#allocation2 + $0x110] sm:$0xff] %v895
  %960 = vst [vmem:[#allocation2 + $0x118] sm:$0xff] %v896
  %961 = vst [vmem:[#allocation2 + $0x120] sm:$0xff] %v897
  %962 = vst [vmem:[#allocation2 + $0x128] sm:$0xff] %v898
  %963 = vst [vmem:[#allocation2 + $0x130] sm:$0xff] %v899
  %964 = vst [vmem:[#allocation2 + $0x138] sm:$0xff] %v900
  %965 = vst [vmem:[#allocation2 + $0x140] sm:$0xff] %v901
  %966 = vst [vmem:[#allocation2 + $0x148] sm:$0xff] %v902
  %967 = vst [vmem:[#allocation2 + $0x150] sm:$0xff] %v903
  %968 = vst [vmem:[#allocation2 + $0x158] sm:$0xff] %v904
  %969 = vst [vmem:[#allocation2 + $0x160] sm:$0xff] %v905
  %970 = vst [vmem:[#allocation2 + $0x168] sm:$0xff] %v906
  %971 = vst [vmem:[#allocation2 + $0x170] sm:$0xff] %v907
  %972 = vst [vmem:[#allocation2 + $0x178] sm:$0xff] %v908
  %973 = vst [vmem:[#allocation2 + $0x180] sm:$0xff] %v909
  %974 = vst [vmem:[#allocation2 + $0x188] sm:$0xff] %v910
  %975 = vst [vmem:[#allocation2 + $0x190] sm:$0xff] %v911
  %976 = vst [vmem:[#allocation2 + $0x198] sm:$0xff] %v912
  %977 = vst [vmem:[#allocation2 + $0x1a0] sm:$0xff] %v913
  %978 = vst [vmem:[#allocation2 + $0x1a8] sm:$0xff] %v914
  %979 = vst [vmem:[#allocation2 + $0x1b0] sm:$0xff] %v915
  %980 = vst [vmem:[#allocation2 + $0x1b8] sm:$0xff] %v916
  %981 = vst [vmem:[#allocation2 + $0x1c0] sm:$0xff] %v917
  %982 = vst [vmem:[#allocation2 + $0x1c8] sm:$0xff] %v918
  %983 = vst [vmem:[#allocation2 + $0x1d0] sm:$0xff] %v919
  %984 = vst [vmem:[#allocation2 + $0x1d8] sm:$0xff] %v920
  %985 = vst [vmem:[#allocation2 + $0x1e0] sm:$0xff] %v921
  %986 = vst [vmem:[#allocation2 + $0x1e8] sm:$0xff] %v922
  %987 = vst [vmem:[#allocation2 + $0x1f0] sm:$0xf] %v923
  %988 = vst [vmem:[#allocation2 + $0x1f8] sm:$0xf] %v924
  %v989 = vld [vmem:[%s0 + $0x2] sm:$0xff]
  %v990 = vld [vmem:[%s0 + $0xa] sm:$0xff]
  %v991 = vld [vmem:[%s0 + $0x12] sm:$0xff]
  %v992 = vld [vmem:[%s0 + $0x1a] sm:$0xff]
  %v993 = vld [vmem:[%s0 + $0x22] sm:$0xff]
  %v994 = vld [vmem:[%s0 + $0x2a] sm:$0xff]
  %v995 = vld [vmem:[%s0 + $0x32] sm:$0xff]
  %v996 = vld [vmem:[%s0 + $0x3a] sm:$0xff]
  %v997 = vld [vmem:[%s0 + $0x42] sm:$0xff]
  %v998 = vld [vmem:[%s0 + $0x4a] sm:$0xff]
  %v999 = vld [vmem:[%s0 + $0x52] sm:$0xff]
  %v1000 = vld [vmem:[%s0 + $0x5a] sm:$0xff]
  %v1001 = vld [vmem:[%s0 + $0x62] sm:$0xff]
  %v1002 = vld [vmem:[%s0 + $0x6a] sm:$0xff]
  %v1003 = vld [vmem:[%s0 + $0x72] sm:$0xff]
  %v1004 = vld [vmem:[%s0 + $0x7a] sm:$0xff]
  %v1005 = vld [vmem:[%s0 + $0x82] sm:$0xff]
  %v1006 = vld [vmem:[%s0 + $0x8a] sm:$0xff]
  %v1007 = vld [vmem:[%s0 + $0x92] sm:$0xff]
  %v1008 = vld [vmem:[%s0 + $0x9a] sm:$0xff]
  %v1009 = vld [vmem:[%s0 + $0xa2] sm:$0xff]
  %v1010 = vld [vmem:[%s0 + $0xaa] sm:$0xff]
  %v1011 = vld [vmem:[%s0 + $0xb2] sm:$0xff]
  %v1012 = vld [vmem:[%s0 + $0xba] sm:$0xff]
  %v1013 = vld [vmem:[%s0 + $0xc2] sm:$0xff]
  %v1014 = vld [vmem:[%s0 + $0xca] sm:$0xff]
  %v1015 = vld [vmem:[%s0 + $0xd2] sm:$0xff]
  %v1016 = vld [vmem:[%s0 + $0xda] sm:$0xff]
  %v1017 = vld [vmem:[%s0 + $0xe2] sm:$0xff]
  %v1018 = vld [vmem:[%s0 + $0xea] sm:$0xff]
  %v1019 = vld [vmem:[%s0 + $0xf2] sm:$0xff]
  %v1020 = vld [vmem:[%s0 + $0xfa] sm:$0xf]
  %v1021 = vpack.c.bf16 %v990, %v989
  %v1022 = vpack.c.bf16 %v992, %v991
  %v1023 = vpack.c.bf16 %v994, %v993
  %v1024 = vpack.c.bf16 %v996, %v995
  %v1025 = vpack.c.bf16 %v998, %v997
  %v1026 = vpack.c.bf16 %v1000, %v999
  %v1027 = vpack.c.bf16 %v1002, %v1001
  %v1028 = vpack.c.bf16 %v1004, %v1003
  %v1029 = vpack.c.bf16 %v1006, %v1005
  %v1030 = vpack.c.bf16 %v1008, %v1007
  %v1031 = vpack.c.bf16 %v1010, %v1009
  %v1032 = vpack.c.bf16 %v1012, %v1011
  %v1033 = vpack.c.bf16 %v1014, %v1013
  %v1034 = vpack.c.bf16 %v1016, %v1015
  %v1035 = vpack.c.bf16 %v1018, %v1017
  %v1036 = vpack.c.bf16 %v1020, %v1019
  %s1037 = scalar_lea.vmem %s1, 192
  %v1038 = vld [vmem:[%s1037] sm:$0xff]
  %v1039 = vld [vmem:[%s1037 + $0x8] sm:$0xff]
  %v1040 = vld [vmem:[%s1037 + $0x10] sm:$0xff]
  %v1041 = vld [vmem:[%s1037 + $0x18] sm:$0xff]
  %v1042 = vld [vmem:[%s1037 + $0x20] sm:$0xff]
  %v1043 = vld [vmem:[%s1037 + $0x28] sm:$0xff]
  %v1044 = vld [vmem:[%s1037 + $0x30] sm:$0xff]
  %v1045 = vld [vmem:[%s1037 + $0x38] sm:$0xff]
  %v1046 = vld [vmem:[%s1037 + $0x40] sm:$0xff]
  %v1047 = vld [vmem:[%s1037 + $0x48] sm:$0xff]
  %v1048 = vld [vmem:[%s1037 + $0x50] sm:$0xff]
  %v1049 = vld [vmem:[%s1037 + $0x58] sm:$0xff]
  %v1062 = vunpack.c.l.b16 %v1038
  %v1063 = vunpack.c.h.b16 %v1038
  %v1064 = vunpack.c.l.b16 %v1039
  %v1065 = vunpack.c.h.b16 %v1039
  %v1066 = vunpack.c.l.b16 %v1040
  %v1067 = vunpack.c.h.b16 %v1040
  %v1068 = vunpack.c.l.b16 %v1041
  %v1069 = vunpack.c.h.b16 %v1041
  %v1070 = vunpack.c.l.b16 %v1042
  %v1071 = vunpack.c.h.b16 %v1042
  %v1072 = vunpack.c.l.b16 %v1043
  %v1073 = vunpack.c.h.b16 %v1043
  %v1074 = vunpack.c.l.b16 %v1044
  %v1075 = vunpack.c.h.b16 %v1044
  %v1076 = vunpack.c.l.b16 %v1045
  %v1077 = vunpack.c.h.b16 %v1045
  %v1078 = vunpack.c.l.b16 %v1046
  %v1079 = vunpack.c.h.b16 %v1046
  %v1080 = vunpack.c.l.b16 %v1047
  %v1081 = vunpack.c.h.b16 %v1047
  %v1082 = vunpack.c.l.b16 %v1048
  %v1083 = vunpack.c.h.b16 %v1048
  %v1084 = vunpack.c.l.b16 %v1049
  %v1085 = vunpack.c.h.b16 %v1049
  %v1086 = vpack.c.b16 %v1064, %v1062
  %v1087 = vpack.c.b16 %v1065, %v1063
  %v1088 = vpack.c.b16 %v1068, %v1066
  %v1089 = vpack.c.b16 %v1069, %v1067
  %v1090 = vpack.c.b16 %v1072, %v1070
  %v1091 = vpack.c.b16 %v1073, %v1071
  %v1092 = vpack.c.b16 %v1076, %v1074
  %v1093 = vpack.c.b16 %v1077, %v1075
  %v1094 = vpack.c.b16 %v1080, %v1078
  %v1095 = vpack.c.b16 %v1081, %v1079
  %v1096 = vpack.c.b16 %v1084, %v1082
  %v1097 = vpack.c.b16 %v1085, %v1083
  %v1111 = vsel %vm159, %v1021, 0
  %v1114 = vsel %vm159, %v1022, 0
  %v1117 = vsel %vm159, %v1023, 0
  %v1120 = vsel %vm159, %v1024, 0
  %v1123 = vsel %vm159, %v1025, 0
  %v1126 = vsel %vm159, %v1026, 0
  %v1129 = vsel %vm159, %v1027, 0
  %v1132 = vsel %vm159, %v1028, 0
  %v1135 = vsel %vm159, %v1029, 0
  %v1138 = vsel %vm159, %v1030, 0
  %v1141 = vsel %vm159, %v1031, 0
  %v1144 = vsel %vm159, %v1032, 0
  %v1147 = vsel %vm159, %v1033, 0
  %v1150 = vsel %vm159, %v1034, 0
  %v1153 = vsel %vm159, %v1035, 0
  %v1156 = vsel %vm159, %v1036, 0
  %1158 = vmatpush.bf16.msra.mxu0 0
  %1159 = vmatpush.bf16.msra.mxu0 0
  %1160 = vmatpush.bf16.msra.mxu0 %v1096
  %1161 = vmatpush.bf16.msra.mxu0 %v1094
  %1162 = vmatpush.bf16.msra.mxu0 %v1092
  %1163 = vmatpush.bf16.msra.mxu0 %v1090
  %1164 = vmatpush.bf16.msra.mxu0 %v1088
  %1165 = vmatpush.bf16.msra.mxu0 %v1086
  %1166 = vmatmul.bf16.gmra.mxu0 %v1111
  %v1167 = vpop.f32.mrf.mxu0
  %v1168 = vadd.f32 0.0, %v1167
  %v1169 = vpop.f32.mrf.mxu0
  %v1170 = vadd.f32 0.0, %v1169
  %1171 = vmatmul.bf16.gmra.mxu0 %v1114
  %v1172 = vpop.f32.mrf.mxu0
  %v1173 = vadd.f32 0.0, %v1172
  %v1174 = vpop.f32.mrf.mxu0
  %v1175 = vadd.f32 0.0, %v1174
  %1176 = vmatmul.bf16.gmra.mxu0 %v1117
  %v1177 = vpop.f32.mrf.mxu0
  %v1178 = vadd.f32 0.0, %v1177
  %v1179 = vpop.f32.mrf.mxu0
  %v1180 = vadd.f32 0.0, %v1179
  %1181 = vmatmul.bf16.gmra.mxu0 %v1120
  %v1182 = vpop.f32.mrf.mxu0
  %v1183 = vadd.f32 0.0, %v1182
  %v1184 = vpop.f32.mrf.mxu0
  %v1185 = vadd.f32 0.0, %v1184
  %1186 = vmatmul.bf16.gmra.mxu0 %v1123
  %v1187 = vpop.f32.mrf.mxu0
  %v1188 = vadd.f32 0.0, %v1187
  %v1189 = vpop.f32.mrf.mxu0
  %v1190 = vadd.f32 0.0, %v1189
  %1191 = vmatmul.bf16.gmra.mxu0 %v1126
  %v1192 = vpop.f32.mrf.mxu0
  %v1193 = vadd.f32 0.0, %v1192
  %v1194 = vpop.f32.mrf.mxu0
  %v1195 = vadd.f32 0.0, %v1194
  %1196 = vmatmul.bf16.gmra.mxu0 %v1129
  %v1197 = vpop.f32.mrf.mxu0
  %v1198 = vadd.f32 0.0, %v1197
  %v1199 = vpop.f32.mrf.mxu0
  %v1200 = vadd.f32 0.0, %v1199
  %1201 = vmatmul.bf16.gmra.mxu0 %v1132
  %v1202 = vpop.f32.mrf.mxu0
  %v1203 = vadd.f32 0.0, %v1202
  %v1204 = vpop.f32.mrf.mxu0
  %v1205 = vadd.f32 0.0, %v1204
  %1206 = vmatmul.bf16.gmra.mxu0 %v1135
  %v1207 = vpop.f32.mrf.mxu0
  %v1208 = vadd.f32 0.0, %v1207
  %v1209 = vpop.f32.mrf.mxu0
  %v1210 = vadd.f32 0.0, %v1209
  %1211 = vmatmul.bf16.gmra.mxu0 %v1138
  %v1212 = vpop.f32.mrf.mxu0
  %v1213 = vadd.f32 0.0, %v1212
  %v1214 = vpop.f32.mrf.mxu0
  %v1215 = vadd.f32 0.0, %v1214
  %1216 = vmatmul.bf16.gmra.mxu0 %v1141
  %v1217 = vpop.f32.mrf.mxu0
  %v1218 = vadd.f32 0.0, %v1217
  %v1219 = vpop.f32.mrf.mxu0
  %v1220 = vadd.f32 0.0, %v1219
  %1221 = vmatmul.bf16.gmra.mxu0 %v1144
  %v1222 = vpop.f32.mrf.mxu0
  %v1223 = vadd.f32 0.0, %v1222
  %v1224 = vpop.f32.mrf.mxu0
  %v1225 = vadd.f32 0.0, %v1224
  %1226 = vmatmul.bf16.gmra.mxu0 %v1147
  %v1227 = vpop.f32.mrf.mxu0
  %v1228 = vadd.f32 0.0, %v1227
  %v1229 = vpop.f32.mrf.mxu0
  %v1230 = vadd.f32 0.0, %v1229
  %1231 = vmatmul.bf16.gmra.mxu0 %v1150
  %v1232 = vpop.f32.mrf.mxu0
  %v1233 = vadd.f32 0.0, %v1232
  %v1234 = vpop.f32.mrf.mxu0
  %v1235 = vadd.f32 0.0, %v1234
  %1236 = vmatmul.bf16.gmra.mxu0 %v1153
  %v1237 = vpop.f32.mrf.mxu0
  %v1238 = vadd.f32 0.0, %v1237
  %v1239 = vpop.f32.mrf.mxu0
  %v1240 = vadd.f32 0.0, %v1239
  %1241 = vmatmul.bf16.gmra.mxu0 %v1156
  %v1242 = vpop.f32.mrf.mxu0
  %v1243 = vadd.f32 0.0, %v1242
  %v1244 = vpop.f32.mrf.mxu0
  %v1245 = vadd.f32 0.0, %v1244
  %1246 = vdwg.mxu0
  %1247 = vmatpush.bf16.msra.mxu0 0
  %1248 = vmatpush.bf16.msra.mxu0 0
  %1249 = vmatpush.bf16.msra.mxu0 %v1097
  %1250 = vmatpush.bf16.msra.mxu0 %v1095
  %1251 = vmatpush.bf16.msra.mxu0 %v1093
  %1252 = vmatpush.bf16.msra.mxu0 %v1091
  %1253 = vmatpush.bf16.msra.mxu0 %v1089
  %1254 = vmatpush.bf16.msra.mxu0 %v1087
  %1255 = vmatmul.bf16.gmra.mxu0 %v1111
  %v1256 = vpop.f32.mrf.mxu0
  %v1257 = vadd.f32 0.0, %v1256
  %v1258 = vpop.f32.mrf.mxu0
  %v1259 = vadd.f32 0.0, %v1258
  %1260 = vmatmul.bf16.gmra.mxu0 %v1114
  %v1261 = vpop.f32.mrf.mxu0
  %v1262 = vadd.f32 0.0, %v1261
  %v1263 = vpop.f32.mrf.mxu0
  %v1264 = vadd.f32 0.0, %v1263
  %1265 = vmatmul.bf16.gmra.mxu0 %v1117
  %v1266 = vpop.f32.mrf.mxu0
  %v1267 = vadd.f32 0.0, %v1266
  %v1268 = vpop.f32.mrf.mxu0
  %v1269 = vadd.f32 0.0, %v1268
  %1270 = vmatmul.bf16.gmra.mxu0 %v1120
  %v1271 = vpop.f32.mrf.mxu0
  %v1272 = vadd.f32 0.0, %v1271
  %v1273 = vpop.f32.mrf.mxu0
  %v1274 = vadd.f32 0.0, %v1273
  %1275 = vmatmul.bf16.gmra.mxu0 %v1123
  %v1276 = vpop.f32.mrf.mxu0
  %v1277 = vadd.f32 0.0, %v1276
  %v1278 = vpop.f32.mrf.mxu0
  %v1279 = vadd.f32 0.0, %v1278
  %1280 = vmatmul.bf16.gmra.mxu0 %v1126
  %v1281 = vpop.f32.mrf.mxu0
  %v1282 = vadd.f32 0.0, %v1281
  %v1283 = vpop.f32.mrf.mxu0
  %v1284 = vadd.f32 0.0, %v1283
  %1285 = vmatmul.bf16.gmra.mxu0 %v1129
  %v1286 = vpop.f32.mrf.mxu0
  %v1287 = vadd.f32 0.0, %v1286
  %v1288 = vpop.f32.mrf.mxu0
  %v1289 = vadd.f32 0.0, %v1288
  %1290 = vmatmul.bf16.gmra.mxu0 %v1132
  %v1291 = vpop.f32.mrf.mxu0
  %v1292 = vadd.f32 0.0, %v1291
  %v1293 = vpop.f32.mrf.mxu0
  %v1294 = vadd.f32 0.0, %v1293
  %1295 = vmatmul.bf16.gmra.mxu0 %v1135
  %v1296 = vpop.f32.mrf.mxu0
  %v1297 = vadd.f32 0.0, %v1296
  %v1298 = vpop.f32.mrf.mxu0
  %v1299 = vadd.f32 0.0, %v1298
  %1300 = vmatmul.bf16.gmra.mxu0 %v1138
  %v1301 = vpop.f32.mrf.mxu0
  %v1302 = vadd.f32 0.0, %v1301
  %v1303 = vpop.f32.mrf.mxu0
  %v1304 = vadd.f32 0.0, %v1303
  %1305 = vmatmul.bf16.gmra.mxu0 %v1141
  %v1306 = vpop.f32.mrf.mxu0
  %v1307 = vadd.f32 0.0, %v1306
  %v1308 = vpop.f32.mrf.mxu0
  %v1309 = vadd.f32 0.0, %v1308
  %1310 = vmatmul.bf16.gmra.mxu0 %v1144
  %v1311 = vpop.f32.mrf.mxu0
  %v1312 = vadd.f32 0.0, %v1311
  %v1313 = vpop.f32.mrf.mxu0
  %v1314 = vadd.f32 0.0, %v1313
  %1315 = vmatmul.bf16.gmra.mxu0 %v1147
  %v1316 = vpop.f32.mrf.mxu0
  %v1317 = vadd.f32 0.0, %v1316
  %v1318 = vpop.f32.mrf.mxu0
  %v1319 = vadd.f32 0.0, %v1318
  %1320 = vmatmul.bf16.gmra.mxu0 %v1150
  %v1321 = vpop.f32.mrf.mxu0
  %v1322 = vadd.f32 0.0, %v1321
  %v1323 = vpop.f32.mrf.mxu0
  %v1324 = vadd.f32 0.0, %v1323
  %1325 = vmatmul.bf16.gmra.mxu0 %v1153
  %v1326 = vpop.f32.mrf.mxu0
  %v1327 = vadd.f32 0.0, %v1326
  %v1328 = vpop.f32.mrf.mxu0
  %v1329 = vadd.f32 0.0, %v1328
  %1330 = vmatmul.bf16.gmra.mxu0 %v1156
  %v1331 = vpop.f32.mrf.mxu0
  %v1332 = vadd.f32 0.0, %v1331
  %v1333 = vpop.f32.mrf.mxu0
  %v1334 = vadd.f32 0.0, %v1333
  %1335 = vdwg.mxu0
  %v1336 = vld [vmem:[#allocation2] sm:$0xff]
  %v1337 = vld [vmem:[#allocation2 + $0x8] sm:$0xff]
  %v1338 = vld [vmem:[#allocation2 + $0x10] sm:$0xff]
  %v1339 = vld [vmem:[#allocation2 + $0x18] sm:$0xff]
  %v1340 = vld [vmem:[#allocation2 + $0x20] sm:$0xff]
  %v1341 = vld [vmem:[#allocation2 + $0x28] sm:$0xff]
  %v1342 = vld [vmem:[#allocation2 + $0x30] sm:$0xff]
  %v1343 = vld [vmem:[#allocation2 + $0x38] sm:$0xff]
  %v1344 = vld [vmem:[#allocation2 + $0x40] sm:$0xff]
  %v1345 = vld [vmem:[#allocation2 + $0x48] sm:$0xff]
  %v1346 = vld [vmem:[#allocation2 + $0x50] sm:$0xff]
  %v1347 = vld [vmem:[#allocation2 + $0x58] sm:$0xff]
  %v1348 = vld [vmem:[#allocation2 + $0x60] sm:$0xff]
  %v1349 = vld [vmem:[#allocation2 + $0x68] sm:$0xff]
  %v1350 = vld [vmem:[#allocation2 + $0x70] sm:$0xff]
  %v1351 = vld [vmem:[#allocation2 + $0x78] sm:$0xff]
  %v1352 = vld [vmem:[#allocation2 + $0x80] sm:$0xff]
  %v1353 = vld [vmem:[#allocation2 + $0x88] sm:$0xff]
  %v1354 = vld [vmem:[#allocation2 + $0x90] sm:$0xff]
  %v1355 = vld [vmem:[#allocation2 + $0x98] sm:$0xff]
  %v1356 = vld [vmem:[#allocation2 + $0xa0] sm:$0xff]
  %v1357 = vld [vmem:[#allocation2 + $0xa8] sm:$0xff]
  %v1358 = vld [vmem:[#allocation2 + $0xb0] sm:$0xff]
  %v1359 = vld [vmem:[#allocation2 + $0xb8] sm:$0xff]
  %v1360 = vld [vmem:[#allocation2 + $0xc0] sm:$0xff]
  %v1361 = vld [vmem:[#allocation2 + $0xc8] sm:$0xff]
  %v1362 = vld [vmem:[#allocation2 + $0xd0] sm:$0xff]
  %v1363 = vld [vmem:[#allocation2 + $0xd8] sm:$0xff]
  %v1364 = vld [vmem:[#allocation2 + $0xe0] sm:$0xff]
  %v1365 = vld [vmem:[#allocation2 + $0xe8] sm:$0xff]
  %v1366 = vld [vmem:[#allocation2 + $0xf0] sm:$0xff]
  %v1367 = vld [vmem:[#allocation2 + $0xf8] sm:$0xff]
  %v1368 = vld [vmem:[#allocation2 + $0x100] sm:$0xff]
  %v1369 = vld [vmem:[#allocation2 + $0x108] sm:$0xff]
  %v1370 = vld [vmem:[#allocation2 + $0x110] sm:$0xff]
  %v1371 = vld [vmem:[#allocation2 + $0x118] sm:$0xff]
  %v1372 = vld [vmem:[#allocation2 + $0x120] sm:$0xff]
  %v1373 = vld [vmem:[#allocation2 + $0x128] sm:$0xff]
  %v1374 = vld [vmem:[#allocation2 + $0x130] sm:$0xff]
  %v1375 = vld [vmem:[#allocation2 + $0x138] sm:$0xff]
  %v1376 = vld [vmem:[#allocation2 + $0x140] sm:$0xff]
  %v1377 = vld [vmem:[#allocation2 + $0x148] sm:$0xff]
  %v1378 = vld [vmem:[#allocation2 + $0x150] sm:$0xff]
  %v1379 = vld [vmem:[#allocation2 + $0x158] sm:$0xff]
  %v1380 = vld [vmem:[#allocation2 + $0x160] sm:$0xff]
  %v1381 = vld [vmem:[#allocation2 + $0x168] sm:$0xff]
  %v1382 = vld [vmem:[#allocation2 + $0x170] sm:$0xff]
  %v1383 = vld [vmem:[#allocation2 + $0x178] sm:$0xff]
  %v1384 = vld [vmem:[#allocation2 + $0x180] sm:$0xff]
  %v1385 = vld [vmem:[#allocation2 + $0x188] sm:$0xff]
  %v1386 = vld [vmem:[#allocation2 + $0x190] sm:$0xff]
  %v1387 = vld [vmem:[#allocation2 + $0x198] sm:$0xff]
  %v1388 = vld [vmem:[#allocation2 + $0x1a0] sm:$0xff]
  %v1389 = vld [vmem:[#allocation2 + $0x1a8] sm:$0xff]
  %v1390 = vld [vmem:[#allocation2 + $0x1b0] sm:$0xff]
  %v1391 = vld [vmem:[#allocation2 + $0x1b8] sm:$0xff]
  %v1392 = vld [vmem:[#allocation2 + $0x1c0] sm:$0xff]
  %v1393 = vld [vmem:[#allocation2 + $0x1c8] sm:$0xff]
  %v1394 = vld [vmem:[#allocation2 + $0x1d0] sm:$0xff]
  %v1395 = vld [vmem:[#allocation2 + $0x1d8] sm:$0xff]
  %v1396 = vld [vmem:[#allocation2 + $0x1e0] sm:$0xff]
  %v1397 = vld [vmem:[#allocation2 + $0x1e8] sm:$0xff]
  %v1398 = vld [vmem:[#allocation2 + $0x1f0] sm:$0xf]
  %v1399 = vld [vmem:[#allocation2 + $0x1f8] sm:$0xf]
  %v1400 = vadd.f32 %v1336, %v1168
  %v1401 = vadd.f32 %v1337, %v1257
  %v1402 = vadd.f32 %v1338, %v1170
  %v1403 = vadd.f32 %v1339, %v1259
  %v1404 = vadd.f32 %v1340, %v1173
  %v1405 = vadd.f32 %v1341, %v1262
  %v1406 = vadd.f32 %v1342, %v1175
  %v1407 = vadd.f32 %v1343, %v1264
  %v1408 = vadd.f32 %v1344, %v1178
  %v1409 = vadd.f32 %v1345, %v1267
  %v1410 = vadd.f32 %v1346, %v1180
  %v1411 = vadd.f32 %v1347, %v1269
  %v1412 = vadd.f32 %v1348, %v1183
  %v1413 = vadd.f32 %v1349, %v1272
  %v1414 = vadd.f32 %v1350, %v1185
  %v1415 = vadd.f32 %v1351, %v1274
  %v1416 = vadd.f32 %v1352, %v1188
  %v1417 = vadd.f32 %v1353, %v1277
  %v1418 = vadd.f32 %v1354, %v1190
  %v1419 = vadd.f32 %v1355, %v1279
  %v1420 = vadd.f32 %v1356, %v1193
  %v1421 = vadd.f32 %v1357, %v1282
  %v1422 = vadd.f32 %v1358, %v1195
  %v1423 = vadd.f32 %v1359, %v1284
  %v1424 = vadd.f32 %v1360, %v1198
  %v1425 = vadd.f32 %v1361, %v1287
  %v1426 = vadd.f32 %v1362, %v1200
  %v1427 = vadd.f32 %v1363, %v1289
  %v1428 = vadd.f32 %v1364, %v1203
  %v1429 = vadd.f32 %v1365, %v1292
  %v1430 = vadd.f32 %v1366, %v1205
  %v1431 = vadd.f32 %v1367, %v1294
  %v1432 = vadd.f32 %v1368, %v1208
  %v1433 = vadd.f32 %v1369, %v1297
  %v1434 = vadd.f32 %v1370, %v1210
  %v1435 = vadd.f32 %v1371, %v1299
  %v1436 = vadd.f32 %v1372, %v1213
  %v1437 = vadd.f32 %v1373, %v1302
  %v1438 = vadd.f32 %v1374, %v1215
  %v1439 = vadd.f32 %v1375, %v1304
  %v1440 = vadd.f32 %v1376, %v1218
  %v1441 = vadd.f32 %v1377, %v1307
  %v1442 = vadd.f32 %v1378, %v1220
  %v1443 = vadd.f32 %v1379, %v1309
  %v1444 = vadd.f32 %v1380, %v1223
  %v1445 = vadd.f32 %v1381, %v1312
  %v1446 = vadd.f32 %v1382, %v1225
  %v1447 = vadd.f32 %v1383, %v1314
  %v1448 = vadd.f32 %v1384, %v1228
  %v1449 = vadd.f32 %v1385, %v1317
  %v1450 = vadd.f32 %v1386, %v1230
  %v1451 = vadd.f32 %v1387, %v1319
  %v1452 = vadd.f32 %v1388, %v1233
  %v1453 = vadd.f32 %v1389, %v1322
  %v1454 = vadd.f32 %v1390, %v1235
  %v1455 = vadd.f32 %v1391, %v1324
  %v1456 = vadd.f32 %v1392, %v1238
  %v1457 = vadd.f32 %v1393, %v1327
  %v1458 = vadd.f32 %v1394, %v1240
  %v1459 = vadd.f32 %v1395, %v1329
  %v1460 = vadd.f32 %v1396, %v1243
  %v1461 = vadd.f32 %v1397, %v1332
  %v1462 = vadd.f32 %v1398, %v1245
  %v1463 = vadd.f32 %v1399, %v1334
  %1464 = vst [vmem:[#allocation2] sm:$0xff] %v1400
  %1465 = vst [vmem:[#allocation2 + $0x8] sm:$0xff] %v1401
  %1466 = vst [vmem:[#allocation2 + $0x10] sm:$0xff] %v1402
  %1467 = vst [vmem:[#allocation2 + $0x18] sm:$0xff] %v1403
  %1468 = vst [vmem:[#allocation2 + $0x20] sm:$0xff] %v1404
  %1469 = vst [vmem:[#allocation2 + $0x28] sm:$0xff] %v1405
  %1470 = vst [vmem:[#allocation2 + $0x30] sm:$0xff] %v1406
  %1471 = vst [vmem:[#allocation2 + $0x38] sm:$0xff] %v1407
  %1472 = vst [vmem:[#allocation2 + $0x40] sm:$0xff] %v1408
  %1473 = vst [vmem:[#allocation2 + $0x48] sm:$0xff] %v1409
  %1474 = vst [vmem:[#allocation2 + $0x50] sm:$0xff] %v1410
  %1475 = vst [vmem:[#allocation2 + $0x58] sm:$0xff] %v1411
  %1476 = vst [vmem:[#allocation2 + $0x60] sm:$0xff] %v1412
  %1477 = vst [vmem:[#allocation2 + $0x68] sm:$0xff] %v1413
  %1478 = vst [vmem:[#allocation2 + $0x70] sm:$0xff] %v1414
  %1479 = vst [vmem:[#allocation2 + $0x78] sm:$0xff] %v1415
  %1480 = vst [vmem:[#allocation2 + $0x80] sm:$0xff] %v1416
  %1481 = vst [vmem:[#allocation2 + $0x88] sm:$0xff] %v1417
  %1482 = vst [vmem:[#allocation2 + $0x90] sm:$0xff] %v1418
  %1483 = vst [vmem:[#allocation2 + $0x98] sm:$0xff] %v1419
  %1484 = vst [vmem:[#allocation2 + $0xa0] sm:$0xff] %v1420
  %1485 = vst [vmem:[#allocation2 + $0xa8] sm:$0xff] %v1421
  %1486 = vst [vmem:[#allocation2 + $0xb0] sm:$0xff] %v1422
  %1487 = vst [vmem:[#allocation2 + $0xb8] sm:$0xff] %v1423
  %1488 = vst [vmem:[#allocation2 + $0xc0] sm:$0xff] %v1424
  %1489 = vst [vmem:[#allocation2 + $0xc8] sm:$0xff] %v1425
  %1490 = vst [vmem:[#allocation2 + $0xd0] sm:$0xff] %v1426
  %1491 = vst [vmem:[#allocation2 + $0xd8] sm:$0xff] %v1427
  %1492 = vst [vmem:[#allocation2 + $0xe0] sm:$0xff] %v1428
  %1493 = vst [vmem:[#allocation2 + $0xe8] sm:$0xff] %v1429
  %1494 = vst [vmem:[#allocation2 + $0xf0] sm:$0xff] %v1430
  %1495 = vst [vmem:[#allocation2 + $0xf8] sm:$0xff] %v1431
  %1496 = vst [vmem:[#allocation2 + $0x100] sm:$0xff] %v1432
  %1497 = vst [vmem:[#allocation2 + $0x108] sm:$0xff] %v1433
  %1498 = vst [vmem:[#allocation2 + $0x110] sm:$0xff] %v1434
  %1499 = vst [vmem:[#allocation2 + $0x118] sm:$0xff] %v1435
  %1500 = vst [vmem:[#allocation2 + $0x120] sm:$0xff] %v1436
  %1501 = vst [vmem:[#allocation2 + $0x128] sm:$0xff] %v1437
  %1502 = vst [vmem:[#allocation2 + $0x130] sm:$0xff] %v1438
  %1503 = vst [vmem:[#allocation2 + $0x138] sm:$0xff] %v1439
  %1504 = vst [vmem:[#allocation2 + $0x140] sm:$0xff] %v1440
  %1505 = vst [vmem:[#allocation2 + $0x148] sm:$0xff] %v1441
  %1506 = vst [vmem:[#allocation2 + $0x150] sm:$0xff] %v1442
  %1507 = vst [vmem:[#allocation2 + $0x158] sm:$0xff] %v1443
  %1508 = vst [vmem:[#allocation2 + $0x160] sm:$0xff] %v1444
  %1509 = vst [vmem:[#allocation2 + $0x168] sm:$0xff] %v1445
  %1510 = vst [vmem:[#allocation2 + $0x170] sm:$0xff] %v1446
  %1511 = vst [vmem:[#allocation2 + $0x178] sm:$0xff] %v1447
  %1512 = vst [vmem:[#allocation2 + $0x180] sm:$0xff] %v1448
  %1513 = vst [vmem:[#allocation2 + $0x188] sm:$0xff] %v1449
  %1514 = vst [vmem:[#allocation2 + $0x190] sm:$0xff] %v1450
  %1515 = vst [vmem:[#allocation2 + $0x198] sm:$0xff] %v1451
  %1516 = vst [vmem:[#allocation2 + $0x1a0] sm:$0xff] %v1452
  %1517 = vst [vmem:[#allocation2 + $0x1a8] sm:$0xff] %v1453
  %1518 = vst [vmem:[#allocation2 + $0x1b0] sm:$0xff] %v1454
  %1519 = vst [vmem:[#allocation2 + $0x1b8] sm:$0xff] %v1455
  %1520 = vst [vmem:[#allocation2 + $0x1c0] sm:$0xff] %v1456
  %1521 = vst [vmem:[#allocation2 + $0x1c8] sm:$0xff] %v1457
  %1522 = vst [vmem:[#allocation2 + $0x1d0] sm:$0xff] %v1458
  %1523 = vst [vmem:[#allocation2 + $0x1d8] sm:$0xff] %v1459
  %1524 = vst [vmem:[#allocation2 + $0x1e0] sm:$0xff] %v1460
  %1525 = vst [vmem:[#allocation2 + $0x1e8] sm:$0xff] %v1461
  %1526 = vst [vmem:[#allocation2 + $0x1f0] sm:$0xf] %v1462
  %1527 = vst [vmem:[#allocation2 + $0x1f8] sm:$0xf] %v1463
  %v1528 = vld [vmem:[%s0 + $0x3] sm:$0xff]
  %v1529 = vld [vmem:[%s0 + $0xb] sm:$0xff]
  %v1530 = vld [vmem:[%s0 + $0x13] sm:$0xff]
  %v1531 = vld [vmem:[%s0 + $0x1b] sm:$0xff]
  %v1532 = vld [vmem:[%s0 + $0x23] sm:$0xff]
  %v1533 = vld [vmem:[%s0 + $0x2b] sm:$0xff]
  %v1534 = vld [vmem:[%s0 + $0x33] sm:$0xff]
  %v1535 = vld [vmem:[%s0 + $0x3b] sm:$0xff]
  %v1536 = vld [vmem:[%s0 + $0x43] sm:$0xff]
  %v1537 = vld [vmem:[%s0 + $0x4b] sm:$0xff]
  %v1538 = vld [vmem:[%s0 + $0x53] sm:$0xff]
  %v1539 = vld [vmem:[%s0 + $0x5b] sm:$0xff]
  %v1540 = vld [vmem:[%s0 + $0x63] sm:$0xff]
  %v1541 = vld [vmem:[%s0 + $0x6b] sm:$0xff]
  %v1542 = vld [vmem:[%s0 + $0x73] sm:$0xff]
  %v1543 = vld [vmem:[%s0 + $0x7b] sm:$0xff]
  %v1544 = vld [vmem:[%s0 + $0x83] sm:$0xff]
  %v1545 = vld [vmem:[%s0 + $0x8b] sm:$0xff]
  %v1546 = vld [vmem:[%s0 + $0x93] sm:$0xff]
  %v1547 = vld [vmem:[%s0 + $0x9b] sm:$0xff]
  %v1548 = vld [vmem:[%s0 + $0xa3] sm:$0xff]
  %v1549 = vld [vmem:[%s0 + $0xab] sm:$0xff]
  %v1550 = vld [vmem:[%s0 + $0xb3] sm:$0xff]
  %v1551 = vld [vmem:[%s0 + $0xbb] sm:$0xff]
  %v1552 = vld [vmem:[%s0 + $0xc3] sm:$0xff]
  %v1553 = vld [vmem:[%s0 + $0xcb] sm:$0xff]
  %v1554 = vld [vmem:[%s0 + $0xd3] sm:$0xff]
  %v1555 = vld [vmem:[%s0 + $0xdb] sm:$0xff]
  %v1556 = vld [vmem:[%s0 + $0xe3] sm:$0xff]
  %v1557 = vld [vmem:[%s0 + $0xeb] sm:$0xff]
  %v1558 = vld [vmem:[%s0 + $0xf3] sm:$0xff]
  %v1559 = vld [vmem:[%s0 + $0xfb] sm:$0xf]
  %v1560 = vpack.c.bf16 %v1529, %v1528
  %v1561 = vpack.c.bf16 %v1531, %v1530
  %v1562 = vpack.c.bf16 %v1533, %v1532
  %v1563 = vpack.c.bf16 %v1535, %v1534
  %v1564 = vpack.c.bf16 %v1537, %v1536
  %v1565 = vpack.c.bf16 %v1539, %v1538
  %v1566 = vpack.c.bf16 %v1541, %v1540
  %v1567 = vpack.c.bf16 %v1543, %v1542
  %v1568 = vpack.c.bf16 %v1545, %v1544
  %v1569 = vpack.c.bf16 %v1547, %v1546
  %v1570 = vpack.c.bf16 %v1549, %v1548
  %v1571 = vpack.c.bf16 %v1551, %v1550
  %v1572 = vpack.c.bf16 %v1553, %v1552
  %v1573 = vpack.c.bf16 %v1555, %v1554
  %v1574 = vpack.c.bf16 %v1557, %v1556
  %v1575 = vpack.c.bf16 %v1559, %v1558
  %s1576 = scalar_lea.vmem %s1, 288
  %v1577 = vld [vmem:[%s1576] sm:$0xff]
  %v1578 = vld [vmem:[%s1576 + $0x8] sm:$0xff]
  %v1579 = vld [vmem:[%s1576 + $0x10] sm:$0xff]
  %v1580 = vld [vmem:[%s1576 + $0x18] sm:$0xff]
  %v1581 = vld [vmem:[%s1576 + $0x20] sm:$0xff]
  %v1582 = vld [vmem:[%s1576 + $0x28] sm:$0xff]
  %v1583 = vld [vmem:[%s1576 + $0x30] sm:$0xff]
  %v1584 = vld [vmem:[%s1576 + $0x38] sm:$0xff]
  %v1585 = vld [vmem:[%s1576 + $0x40] sm:$0xff]
  %v1586 = vld [vmem:[%s1576 + $0x48] sm:$0xff]
  %v1587 = vld [vmem:[%s1576 + $0x50] sm:$0xff]
  %v1588 = vld [vmem:[%s1576 + $0x58] sm:$0xff]
  %v1601 = vunpack.c.l.b16 %v1577
  %v1602 = vunpack.c.h.b16 %v1577
  %v1603 = vunpack.c.l.b16 %v1578
  %v1604 = vunpack.c.h.b16 %v1578
  %v1605 = vunpack.c.l.b16 %v1579
  %v1606 = vunpack.c.h.b16 %v1579
  %v1607 = vunpack.c.l.b16 %v1580
  %v1608 = vunpack.c.h.b16 %v1580
  %v1609 = vunpack.c.l.b16 %v1581
  %v1610 = vunpack.c.h.b16 %v1581
  %v1611 = vunpack.c.l.b16 %v1582
  %v1612 = vunpack.c.h.b16 %v1582
  %v1613 = vunpack.c.l.b16 %v1583
  %v1614 = vunpack.c.h.b16 %v1583
  %v1615 = vunpack.c.l.b16 %v1584
  %v1616 = vunpack.c.h.b16 %v1584
  %v1617 = vunpack.c.l.b16 %v1585
  %v1618 = vunpack.c.h.b16 %v1585
  %v1619 = vunpack.c.l.b16 %v1586
  %v1620 = vunpack.c.h.b16 %v1586
  %v1621 = vunpack.c.l.b16 %v1587
  %v1622 = vunpack.c.h.b16 %v1587
  %v1623 = vunpack.c.l.b16 %v1588
  %v1624 = vunpack.c.h.b16 %v1588
  %v1625 = vpack.c.b16 %v1603, %v1601
  %v1626 = vpack.c.b16 %v1604, %v1602
  %v1627 = vpack.c.b16 %v1607, %v1605
  %v1628 = vpack.c.b16 %v1608, %v1606
  %v1629 = vpack.c.b16 %v1611, %v1609
  %v1630 = vpack.c.b16 %v1612, %v1610
  %v1631 = vpack.c.b16 %v1615, %v1613
  %v1632 = vpack.c.b16 %v1616, %v1614
  %v1633 = vpack.c.b16 %v1619, %v1617
  %v1634 = vpack.c.b16 %v1620, %v1618
  %v1635 = vpack.c.b16 %v1623, %v1621
  %v1636 = vpack.c.b16 %v1624, %v1622
  %v1650 = vsel %vm159, %v1560, 0
  %v1653 = vsel %vm159, %v1561, 0
  %v1656 = vsel %vm159, %v1562, 0
  %v1659 = vsel %vm159, %v1563, 0
  %v1662 = vsel %vm159, %v1564, 0
  %v1665 = vsel %vm159, %v1565, 0
  %v1668 = vsel %vm159, %v1566, 0
  %v1671 = vsel %vm159, %v1567, 0
  %v1674 = vsel %vm159, %v1568, 0
  %v1677 = vsel %vm159, %v1569, 0
  %v1680 = vsel %vm159, %v1570, 0
  %v1683 = vsel %vm159, %v1571, 0
  %v1686 = vsel %vm159, %v1572, 0
  %v1689 = vsel %vm159, %v1573, 0
  %v1692 = vsel %vm159, %v1574, 0
  %v1695 = vsel %vm159, %v1575, 0
  %1697 = vmatpush.bf16.msra.mxu0 0
  %1698 = vmatpush.bf16.msra.mxu0 0
  %1699 = vmatpush.bf16.msra.mxu0 %v1635
  %1700 = vmatpush.bf16.msra.mxu0 %v1633
  %1701 = vmatpush.bf16.msra.mxu0 %v1631
  %1702 = vmatpush.bf16.msra.mxu0 %v1629
  %1703 = vmatpush.bf16.msra.mxu0 %v1627
  %1704 = vmatpush.bf16.msra.mxu0 %v1625
  %1705 = vmatmul.bf16.gmra.mxu0 %v1650
  %v1706 = vpop.f32.mrf.mxu0
  %v1707 = vadd.f32 0.0, %v1706
  %v1708 = vpop.f32.mrf.mxu0
  %v1709 = vadd.f32 0.0, %v1708
  %1710 = vmatmul.bf16.gmra.mxu0 %v1653
  %v1711 = vpop.f32.mrf.mxu0
  %v1712 = vadd.f32 0.0, %v1711
  %v1713 = vpop.f32.mrf.mxu0
  %v1714 = vadd.f32 0.0, %v1713
  %1715 = vmatmul.bf16.gmra.mxu0 %v1656
  %v1716 = vpop.f32.mrf.mxu0
  %v1717 = vadd.f32 0.0, %v1716
  %v1718 = vpop.f32.mrf.mxu0
  %v1719 = vadd.f32 0.0, %v1718
  %1720 = vmatmul.bf16.gmra.mxu0 %v1659
  %v1721 = vpop.f32.mrf.mxu0
  %v1722 = vadd.f32 0.0, %v1721
  %v1723 = vpop.f32.mrf.mxu0
  %v1724 = vadd.f32 0.0, %v1723
  %1725 = vmatmul.bf16.gmra.mxu0 %v1662
  %v1726 = vpop.f32.mrf.mxu0
  %v1727 = vadd.f32 0.0, %v1726
  %v1728 = vpop.f32.mrf.mxu0
  %v1729 = vadd.f32 0.0, %v1728
  %1730 = vmatmul.bf16.gmra.mxu0 %v1665
  %v1731 = vpop.f32.mrf.mxu0
  %v1732 = vadd.f32 0.0, %v1731
  %v1733 = vpop.f32.mrf.mxu0
  %v1734 = vadd.f32 0.0, %v1733
  %1735 = vmatmul.bf16.gmra.mxu0 %v1668
  %v1736 = vpop.f32.mrf.mxu0
  %v1737 = vadd.f32 0.0, %v1736
  %v1738 = vpop.f32.mrf.mxu0
  %v1739 = vadd.f32 0.0, %v1738
  %1740 = vmatmul.bf16.gmra.mxu0 %v1671
  %v1741 = vpop.f32.mrf.mxu0
  %v1742 = vadd.f32 0.0, %v1741
  %v1743 = vpop.f32.mrf.mxu0
  %v1744 = vadd.f32 0.0, %v1743
  %1745 = vmatmul.bf16.gmra.mxu0 %v1674
  %v1746 = vpop.f32.mrf.mxu0
  %v1747 = vadd.f32 0.0, %v1746
  %v1748 = vpop.f32.mrf.mxu0
  %v1749 = vadd.f32 0.0, %v1748
  %1750 = vmatmul.bf16.gmra.mxu0 %v1677
  %v1751 = vpop.f32.mrf.mxu0
  %v1752 = vadd.f32 0.0, %v1751
  %v1753 = vpop.f32.mrf.mxu0
  %v1754 = vadd.f32 0.0, %v1753
  %1755 = vmatmul.bf16.gmra.mxu0 %v1680
  %v1756 = vpop.f32.mrf.mxu0
  %v1757 = vadd.f32 0.0, %v1756
  %v1758 = vpop.f32.mrf.mxu0
  %v1759 = vadd.f32 0.0, %v1758
  %1760 = vmatmul.bf16.gmra.mxu0 %v1683
  %v1761 = vpop.f32.mrf.mxu0
  %v1762 = vadd.f32 0.0, %v1761
  %v1763 = vpop.f32.mrf.mxu0
  %v1764 = vadd.f32 0.0, %v1763
  %1765 = vmatmul.bf16.gmra.mxu0 %v1686
  %v1766 = vpop.f32.mrf.mxu0
  %v1767 = vadd.f32 0.0, %v1766
  %v1768 = vpop.f32.mrf.mxu0
  %v1769 = vadd.f32 0.0, %v1768
  %1770 = vmatmul.bf16.gmra.mxu0 %v1689
  %v1771 = vpop.f32.mrf.mxu0
  %v1772 = vadd.f32 0.0, %v1771
  %v1773 = vpop.f32.mrf.mxu0
  %v1774 = vadd.f32 0.0, %v1773
  %1775 = vmatmul.bf16.gmra.mxu0 %v1692
  %v1776 = vpop.f32.mrf.mxu0
  %v1777 = vadd.f32 0.0, %v1776
  %v1778 = vpop.f32.mrf.mxu0
  %v1779 = vadd.f32 0.0, %v1778
  %1780 = vmatmul.bf16.gmra.mxu0 %v1695
  %v1781 = vpop.f32.mrf.mxu0
  %v1782 = vadd.f32 0.0, %v1781
  %v1783 = vpop.f32.mrf.mxu0
  %v1784 = vadd.f32 0.0, %v1783
  %1785 = vdwg.mxu0
  %1786 = vmatpush.bf16.msra.mxu0 0
  %1787 = vmatpush.bf16.msra.mxu0 0
  %1788 = vmatpush.bf16.msra.mxu0 %v1636
  %1789 = vmatpush.bf16.msra.mxu0 %v1634
  %1790 = vmatpush.bf16.msra.mxu0 %v1632
  %1791 = vmatpush.bf16.msra.mxu0 %v1630
  %1792 = vmatpush.bf16.msra.mxu0 %v1628
  %1793 = vmatpush.bf16.msra.mxu0 %v1626
  %1794 = vmatmul.bf16.gmra.mxu0 %v1650
  %v1795 = vpop.f32.mrf.mxu0
  %v1796 = vadd.f32 0.0, %v1795
  %v1797 = vpop.f32.mrf.mxu0
  %v1798 = vadd.f32 0.0, %v1797
  %1799 = vmatmul.bf16.gmra.mxu0 %v1653
  %v1800 = vpop.f32.mrf.mxu0
  %v1801 = vadd.f32 0.0, %v1800
  %v1802 = vpop.f32.mrf.mxu0
  %v1803 = vadd.f32 0.0, %v1802
  %1804 = vmatmul.bf16.gmra.mxu0 %v1656
  %v1805 = vpop.f32.mrf.mxu0
  %v1806 = vadd.f32 0.0, %v1805
  %v1807 = vpop.f32.mrf.mxu0
  %v1808 = vadd.f32 0.0, %v1807
  %1809 = vmatmul.bf16.gmra.mxu0 %v1659
  %v1810 = vpop.f32.mrf.mxu0
  %v1811 = vadd.f32 0.0, %v1810
  %v1812 = vpop.f32.mrf.mxu0
  %v1813 = vadd.f32 0.0, %v1812
  %1814 = vmatmul.bf16.gmra.mxu0 %v1662
  %v1815 = vpop.f32.mrf.mxu0
  %v1816 = vadd.f32 0.0, %v1815
  %v1817 = vpop.f32.mrf.mxu0
  %v1818 = vadd.f32 0.0, %v1817
  %1819 = vmatmul.bf16.gmra.mxu0 %v1665
  %v1820 = vpop.f32.mrf.mxu0
  %v1821 = vadd.f32 0.0, %v1820
  %v1822 = vpop.f32.mrf.mxu0
  %v1823 = vadd.f32 0.0, %v1822
  %1824 = vmatmul.bf16.gmra.mxu0 %v1668
  %v1825 = vpop.f32.mrf.mxu0
  %v1826 = vadd.f32 0.0, %v1825
  %v1827 = vpop.f32.mrf.mxu0
  %v1828 = vadd.f32 0.0, %v1827
  %1829 = vmatmul.bf16.gmra.mxu0 %v1671
  %v1830 = vpop.f32.mrf.mxu0
  %v1831 = vadd.f32 0.0, %v1830
  %v1832 = vpop.f32.mrf.mxu0
  %v1833 = vadd.f32 0.0, %v1832
  %1834 = vmatmul.bf16.gmra.mxu0 %v1674
  %v1835 = vpop.f32.mrf.mxu0
  %v1836 = vadd.f32 0.0, %v1835
  %v1837 = vpop.f32.mrf.mxu0
  %v1838 = vadd.f32 0.0, %v1837
  %1839 = vmatmul.bf16.gmra.mxu0 %v1677
  %v1840 = vpop.f32.mrf.mxu0
  %v1841 = vadd.f32 0.0, %v1840
  %v1842 = vpop.f32.mrf.mxu0
  %v1843 = vadd.f32 0.0, %v1842
  %1844 = vmatmul.bf16.gmra.mxu0 %v1680
  %v1845 = vpop.f32.mrf.mxu0
  %v1846 = vadd.f32 0.0, %v1845
  %v1847 = vpop.f32.mrf.mxu0
  %v1848 = vadd.f32 0.0, %v1847
  %1849 = vmatmul.bf16.gmra.mxu0 %v1683
  %v1850 = vpop.f32.mrf.mxu0
  %v1851 = vadd.f32 0.0, %v1850
  %v1852 = vpop.f32.mrf.mxu0
  %v1853 = vadd.f32 0.0, %v1852
  %1854 = vmatmul.bf16.gmra.mxu0 %v1686
  %v1855 = vpop.f32.mrf.mxu0
  %v1856 = vadd.f32 0.0, %v1855
  %v1857 = vpop.f32.mrf.mxu0
  %v1858 = vadd.f32 0.0, %v1857
  %1859 = vmatmul.bf16.gmra.mxu0 %v1689
  %v1860 = vpop.f32.mrf.mxu0
  %v1861 = vadd.f32 0.0, %v1860
  %v1862 = vpop.f32.mrf.mxu0
  %v1863 = vadd.f32 0.0, %v1862
  %1864 = vmatmul.bf16.gmra.mxu0 %v1692
  %v1865 = vpop.f32.mrf.mxu0
  %v1866 = vadd.f32 0.0, %v1865
  %v1867 = vpop.f32.mrf.mxu0
  %v1868 = vadd.f32 0.0, %v1867
  %1869 = vmatmul.bf16.gmra.mxu0 %v1695
  %v1870 = vpop.f32.mrf.mxu0
  %v1871 = vadd.f32 0.0, %v1870
  %v1872 = vpop.f32.mrf.mxu0
  %v1873 = vadd.f32 0.0, %v1872
  %1874 = vdwg.mxu0
  %v1875 = vld [vmem:[#allocation2] sm:$0xff]
  %v1876 = vld [vmem:[#allocation2 + $0x8] sm:$0xff]
  %v1877 = vld [vmem:[#allocation2 + $0x10] sm:$0xff]
  %v1878 = vld [vmem:[#allocation2 + $0x18] sm:$0xff]
  %v1879 = vld [vmem:[#allocation2 + $0x20] sm:$0xff]
  %v1880 = vld [vmem:[#allocation2 + $0x28] sm:$0xff]
  %v1881 = vld [vmem:[#allocation2 + $0x30] sm:$0xff]
  %v1882 = vld [vmem:[#allocation2 + $0x38] sm:$0xff]
  %v1883 = vld [vmem:[#allocation2 + $0x40] sm:$0xff]
  %v1884 = vld [vmem:[#allocation2 + $0x48] sm:$0xff]
  %v1885 = vld [vmem:[#allocation2 + $0x50] sm:$0xff]
  %v1886 = vld [vmem:[#allocation2 + $0x58] sm:$0xff]
  %v1887 = vld [vmem:[#allocation2 + $0x60] sm:$0xff]
  %v1888 = vld [vmem:[#allocation2 + $0x68] sm:$0xff]
  %v1889 = vld [vmem:[#allocation2 + $0x70] sm:$0xff]
  %v1890 = vld [vmem:[#allocation2 + $0x78] sm:$0xff]
  %v1891 = vld [vmem:[#allocation2 + $0x80] sm:$0xff]
  %v1892 = vld [vmem:[#allocation2 + $0x88] sm:$0xff]
  %v1893 = vld [vmem:[#allocation2 + $0x90] sm:$0xff]
  %v1894 = vld [vmem:[#allocation2 + $0x98] sm:$0xff]
  %v1895 = vld [vmem:[#allocation2 + $0xa0] sm:$0xff]
  %v1896 = vld [vmem:[#allocation2 + $0xa8] sm:$0xff]
  %v1897 = vld [vmem:[#allocation2 + $0xb0] sm:$0xff]
  %v1898 = vld [vmem:[#allocation2 + $0xb8] sm:$0xff]
  %v1899 = vld [vmem:[#allocation2 + $0xc0] sm:$0xff]
  %v1900 = vld [vmem:[#allocation2 + $0xc8] sm:$0xff]
  %v1901 = vld [vmem:[#allocation2 + $0xd0] sm:$0xff]
  %v1902 = vld [vmem:[#allocation2 + $0xd8] sm:$0xff]
  %v1903 = vld [vmem:[#allocation2 + $0xe0] sm:$0xff]
  %v1904 = vld [vmem:[#allocation2 + $0xe8] sm:$0xff]
  %v1905 = vld [vmem:[#allocation2 + $0xf0] sm:$0xff]
  %v1906 = vld [vmem:[#allocation2 + $0xf8] sm:$0xff]
  %v1907 = vld [vmem:[#allocation2 + $0x100] sm:$0xff]
  %v1908 = vld [vmem:[#allocation2 + $0x108] sm:$0xff]
  %v1909 = vld [vmem:[#allocation2 + $0x110] sm:$0xff]
  %v1910 = vld [vmem:[#allocation2 + $0x118] sm:$0xff]
  %v1911 = vld [vmem:[#allocation2 + $0x120] sm:$0xff]
  %v1912 = vld [vmem:[#allocation2 + $0x128] sm:$0xff]
  %v1913 = vld [vmem:[#allocation2 + $0x130] sm:$0xff]
  %v1914 = vld [vmem:[#allocation2 + $0x138] sm:$0xff]
  %v1915 = vld [vmem:[#allocation2 + $0x140] sm:$0xff]
  %v1916 = vld [vmem:[#allocation2 + $0x148] sm:$0xff]
  %v1917 = vld [vmem:[#allocation2 + $0x150] sm:$0xff]
  %v1918 = vld [vmem:[#allocation2 + $0x158] sm:$0xff]
  %v1919 = vld [vmem:[#allocation2 + $0x160] sm:$0xff]
  %v1920 = vld [vmem:[#allocation2 + $0x168] sm:$0xff]
  %v1921 = vld [vmem:[#allocation2 + $0x170] sm:$0xff]
  %v1922 = vld [vmem:[#allocation2 + $0x178] sm:$0xff]
  %v1923 = vld [vmem:[#allocation2 + $0x180] sm:$0xff]
  %v1924 = vld [vmem:[#allocation2 + $0x188] sm:$0xff]
  %v1925 = vld [vmem:[#allocation2 + $0x190] sm:$0xff]
  %v1926 = vld [vmem:[#allocation2 + $0x198] sm:$0xff]
  %v1927 = vld [vmem:[#allocation2 + $0x1a0] sm:$0xff]
  %v1928 = vld [vmem:[#allocation2 + $0x1a8] sm:$0xff]
  %v1929 = vld [vmem:[#allocation2 + $0x1b0] sm:$0xff]
  %v1930 = vld [vmem:[#allocation2 + $0x1b8] sm:$0xff]
  %v1931 = vld [vmem:[#allocation2 + $0x1c0] sm:$0xff]
  %v1932 = vld [vmem:[#allocation2 + $0x1c8] sm:$0xff]
  %v1933 = vld [vmem:[#allocation2 + $0x1d0] sm:$0xff]
  %v1934 = vld [vmem:[#allocation2 + $0x1d8] sm:$0xff]
  %v1935 = vld [vmem:[#allocation2 + $0x1e0] sm:$0xff]
  %v1936 = vld [vmem:[#allocation2 + $0x1e8] sm:$0xff]
  %v1937 = vld [vmem:[#allocation2 + $0x1f0] sm:$0xf]
  %v1938 = vld [vmem:[#allocation2 + $0x1f8] sm:$0xf]
  %v1939 = vadd.f32 %v1875, %v1707
  %v1940 = vadd.f32 %v1876, %v1796
  %v1941 = vadd.f32 %v1877, %v1709
  %v1942 = vadd.f32 %v1878, %v1798
  %v1943 = vadd.f32 %v1879, %v1712
  %v1944 = vadd.f32 %v1880, %v1801
  %v1945 = vadd.f32 %v1881, %v1714
  %v1946 = vadd.f32 %v1882, %v1803
  %v1947 = vadd.f32 %v1883, %v1717
  %v1948 = vadd.f32 %v1884, %v1806
  %v1949 = vadd.f32 %v1885, %v1719
  %v1950 = vadd.f32 %v1886, %v1808
  %v1951 = vadd.f32 %v1887, %v1722
  %v1952 = vadd.f32 %v1888, %v1811
  %v1953 = vadd.f32 %v1889, %v1724
  %v1954 = vadd.f32 %v1890, %v1813
  %v1955 = vadd.f32 %v1891, %v1727
  %v1956 = vadd.f32 %v1892, %v1816
  %v1957 = vadd.f32 %v1893, %v1729
  %v1958 = vadd.f32 %v1894, %v1818
  %v1959 = vadd.f32 %v1895, %v1732
  %v1960 = vadd.f32 %v1896, %v1821
  %v1961 = vadd.f32 %v1897, %v1734
  %v1962 = vadd.f32 %v1898, %v1823
  %v1963 = vadd.f32 %v1899, %v1737
  %v1964 = vadd.f32 %v1900, %v1826
  %v1965 = vadd.f32 %v1901, %v1739
  %v1966 = vadd.f32 %v1902, %v1828
  %v1967 = vadd.f32 %v1903, %v1742
  %v1968 = vadd.f32 %v1904, %v1831
  %v1969 = vadd.f32 %v1905, %v1744
  %v1970 = vadd.f32 %v1906, %v1833
  %v1971 = vadd.f32 %v1907, %v1747
  %v1972 = vadd.f32 %v1908, %v1836
  %v1973 = vadd.f32 %v1909, %v1749
  %v1974 = vadd.f32 %v1910, %v1838
  %v1975 = vadd.f32 %v1911, %v1752
  %v1976 = vadd.f32 %v1912, %v1841
  %v1977 = vadd.f32 %v1913, %v1754
  %v1978 = vadd.f32 %v1914, %v1843
  %v1979 = vadd.f32 %v1915, %v1757
  %v1980 = vadd.f32 %v1916, %v1846
  %v1981 = vadd.f32 %v1917, %v1759
  %v1982 = vadd.f32 %v1918, %v1848
  %v1983 = vadd.f32 %v1919, %v1762
  %v1984 = vadd.f32 %v1920, %v1851
  %v1985 = vadd.f32 %v1921, %v1764
  %v1986 = vadd.f32 %v1922, %v1853
  %v1987 = vadd.f32 %v1923, %v1767
  %v1988 = vadd.f32 %v1924, %v1856
  %v1989 = vadd.f32 %v1925, %v1769
  %v1990 = vadd.f32 %v1926, %v1858
  %v1991 = vadd.f32 %v1927, %v1772
  %v1992 = vadd.f32 %v1928, %v1861
  %v1993 = vadd.f32 %v1929, %v1774
  %v1994 = vadd.f32 %v1930, %v1863
  %v1995 = vadd.f32 %v1931, %v1777
  %v1996 = vadd.f32 %v1932, %v1866
  %v1997 = vadd.f32 %v1933, %v1779
  %v1998 = vadd.f32 %v1934, %v1868
  %v1999 = vadd.f32 %v1935, %v1782
  %v2000 = vadd.f32 %v1936, %v1871
  %v2001 = vadd.f32 %v1937, %v1784
  %v2002 = vadd.f32 %v1938, %v1873
  %2003 = vst [vmem:[#allocation2] sm:$0xff] %v1939
  %2004 = vst [vmem:[#allocation2 + $0x8] sm:$0xff] %v1940
  %2005 = vst [vmem:[#allocation2 + $0x10] sm:$0xff] %v1941
  %2006 = vst [vmem:[#allocation2 + $0x18] sm:$0xff] %v1942
  %2007 = vst [vmem:[#allocation2 + $0x20] sm:$0xff] %v1943
  %2008 = vst [vmem:[#allocation2 + $0x28] sm:$0xff] %v1944
  %2009 = vst [vmem:[#allocation2 + $0x30] sm:$0xff] %v1945
  %2010 = vst [vmem:[#allocation2 + $0x38] sm:$0xff] %v1946
  %2011 = vst [vmem:[#allocation2 + $0x40] sm:$0xff] %v1947
  %2012 = vst [vmem:[#allocation2 + $0x48] sm:$0xff] %v1948
  %2013 = vst [vmem:[#allocation2 + $0x50] sm:$0xff] %v1949
  %2014 = vst [vmem:[#allocation2 + $0x58] sm:$0xff] %v1950
  %2015 = vst [vmem:[#allocation2 + $0x60] sm:$0xff] %v1951
  %2016 = vst [vmem:[#allocation2 + $0x68] sm:$0xff] %v1952
  %2017 = vst [vmem:[#allocation2 + $0x70] sm:$0xff] %v1953
  %2018 = vst [vmem:[#allocation2 + $0x78] sm:$0xff] %v1954
  %2019 = vst [vmem:[#allocation2 + $0x80] sm:$0xff] %v1955
  %2020 = vst [vmem:[#allocation2 + $0x88] sm:$0xff] %v1956
  %2021 = vst [vmem:[#allocation2 + $0x90] sm:$0xff] %v1957
  %2022 = vst [vmem:[#allocation2 + $0x98] sm:$0xff] %v1958
  %2023 = vst [vmem:[#allocation2 + $0xa0] sm:$0xff] %v1959
  %2024 = vst [vmem:[#allocation2 + $0xa8] sm:$0xff] %v1960
  %2025 = vst [vmem:[#allocation2 + $0xb0] sm:$0xff] %v1961
  %2026 = vst [vmem:[#allocation2 + $0xb8] sm:$0xff] %v1962
  %2027 = vst [vmem:[#allocation2 + $0xc0] sm:$0xff] %v1963
  %2028 = vst [vmem:[#allocation2 + $0xc8] sm:$0xff] %v1964
  %2029 = vst [vmem:[#allocation2 + $0xd0] sm:$0xff] %v1965
  %2030 = vst [vmem:[#allocation2 + $0xd8] sm:$0xff] %v1966
  %2031 = vst [vmem:[#allocation2 + $0xe0] sm:$0xff] %v1967
  %2032 = vst [vmem:[#allocation2 + $0xe8] sm:$0xff] %v1968
  %2033 = vst [vmem:[#allocation2 + $0xf0] sm:$0xff] %v1969
  %2034 = vst [vmem:[#allocation2 + $0xf8] sm:$0xff] %v1970
  %2035 = vst [vmem:[#allocation2 + $0x100] sm:$0xff] %v1971
  %2036 = vst [vmem:[#allocation2 + $0x108] sm:$0xff] %v1972
  %2037 = vst [vmem:[#allocation2 + $0x110] sm:$0xff] %v1973
  %2038 = vst [vmem:[#allocation2 + $0x118] sm:$0xff] %v1974
  %2039 = vst [vmem:[#allocation2 + $0x120] sm:$0xff] %v1975
  %2040 = vst [vmem:[#allocation2 + $0x128] sm:$0xff] %v1976
  %2041 = vst [vmem:[#allocation2 + $0x130] sm:$0xff] %v1977
  %2042 = vst [vmem:[#allocation2 + $0x138] sm:$0xff] %v1978
  %2043 = vst [vmem:[#allocation2 + $0x140] sm:$0xff] %v1979
  %2044 = vst [vmem:[#allocation2 + $0x148] sm:$0xff] %v1980
  %2045 = vst [vmem:[#allocation2 + $0x150] sm:$0xff] %v1981
  %2046 = vst [vmem:[#allocation2 + $0x158] sm:$0xff] %v1982
  %2047 = vst [vmem:[#allocation2 + $0x160] sm:$0xff] %v1983
  %2048 = vst [vmem:[#allocation2 + $0x168] sm:$0xff] %v1984
  %2049 = vst [vmem:[#allocation2 + $0x170] sm:$0xff] %v1985
  %2050 = vst [vmem:[#allocation2 + $0x178] sm:$0xff] %v1986
  %2051 = vst [vmem:[#allocation2 + $0x180] sm:$0xff] %v1987
  %2052 = vst [vmem:[#allocation2 + $0x188] sm:$0xff] %v1988
  %2053 = vst [vmem:[#allocation2 + $0x190] sm:$0xff] %v1989
  %2054 = vst [vmem:[#allocation2 + $0x198] sm:$0xff] %v1990
  %2055 = vst [vmem:[#allocation2 + $0x1a0] sm:$0xff] %v1991
  %2056 = vst [vmem:[#allocation2 + $0x1a8] sm:$0xff] %v1992
  %2057 = vst [vmem:[#allocation2 + $0x1b0] sm:$0xff] %v1993
  %2058 = vst [vmem:[#allocation2 + $0x1b8] sm:$0xff] %v1994
  %2059 = vst [vmem:[#allocation2 + $0x1c0] sm:$0xff] %v1995
  %2060 = vst [vmem:[#allocation2 + $0x1c8] sm:$0xff] %v1996
  %2061 = vst [vmem:[#allocation2 + $0x1d0] sm:$0xff] %v1997
  %2062 = vst [vmem:[#allocation2 + $0x1d8] sm:$0xff] %v1998
  %2063 = vst [vmem:[#allocation2 + $0x1e0] sm:$0xff] %v1999
  %2064 = vst [vmem:[#allocation2 + $0x1e8] sm:$0xff] %v2000
  %2065 = vst [vmem:[#allocation2 + $0x1f0] sm:$0xf] %v2001
  %2066 = vst [vmem:[#allocation2 + $0x1f8] sm:$0xf] %v2002
  %v2067 = vld [vmem:[%s0 + $0x4] sm:$0xff]
  %v2068 = vld [vmem:[%s0 + $0xc] sm:$0xff]
  %v2069 = vld [vmem:[%s0 + $0x14] sm:$0xff]
  %v2070 = vld [vmem:[%s0 + $0x1c] sm:$0xff]
  %v2071 = vld [vmem:[%s0 + $0x24] sm:$0xff]
  %v2072 = vld [vmem:[%s0 + $0x2c] sm:$0xff]
  %v2073 = vld [vmem:[%s0 + $0x34] sm:$0xff]
  %v2074 = vld [vmem:[%s0 + $0x3c] sm:$0xff]
  %v2075 = vld [vmem:[%s0 + $0x44] sm:$0xff]
  %v2076 = vld [vmem:[%s0 + $0x4c] sm:$0xff]
  %v2077 = vld [vmem:[%s0 + $0x54] sm:$0xff]
  %v2078 = vld [vmem:[%s0 + $0x5c] sm:$0xff]
  %v2079 = vld [vmem:[%s0 + $0x64] sm:$0xff]
  %v2080 = vld [vmem:[%s0 + $0x6c] sm:$0xff]
  %v2081 = vld [vmem:[%s0 + $0x74] sm:$0xff]
  %v2082 = vld [vmem:[%s0 + $0x7c] sm:$0xff]
  %v2083 = vld [vmem:[%s0 + $0x84] sm:$0xff]
  %v2084 = vld [vmem:[%s0 + $0x8c] sm:$0xff]
  %v2085 = vld [vmem:[%s0 + $0x94] sm:$0xff]
  %v2086 = vld [vmem:[%s0 + $0x9c] sm:$0xff]
  %v2087 = vld [vmem:[%s0 + $0xa4] sm:$0xff]
  %v2088 = vld [vmem:[%s0 + $0xac] sm:$0xff]
  %v2089 = vld [vmem:[%s0 + $0xb4] sm:$0xff]
  %v2090 = vld [vmem:[%s0 + $0xbc] sm:$0xff]
  %v2091 = vld [vmem:[%s0 + $0xc4] sm:$0xff]
  %v2092 = vld [vmem:[%s0 + $0xcc] sm:$0xff]
  %v2093 = vld [vmem:[%s0 + $0xd4] sm:$0xff]
  %v2094 = vld [vmem:[%s0 + $0xdc] sm:$0xff]
  %v2095 = vld [vmem:[%s0 + $0xe4] sm:$0xff]
  %v2096 = vld [vmem:[%s0 + $0xec] sm:$0xff]
  %v2097 = vld [vmem:[%s0 + $0xf4] sm:$0xff]
  %v2098 = vld [vmem:[%s0 + $0xfc] sm:$0xf]
  %v2099 = vpack.c.bf16 %v2068, %v2067
  %v2100 = vpack.c.bf16 %v2070, %v2069
  %v2101 = vpack.c.bf16 %v2072, %v2071
  %v2102 = vpack.c.bf16 %v2074, %v2073
  %v2103 = vpack.c.bf16 %v2076, %v2075
  %v2104 = vpack.c.bf16 %v2078, %v2077
  %v2105 = vpack.c.bf16 %v2080, %v2079
  %v2106 = vpack.c.bf16 %v2082, %v2081
  %v2107 = vpack.c.bf16 %v2084, %v2083
  %v2108 = vpack.c.bf16 %v2086, %v2085
  %v2109 = vpack.c.bf16 %v2088, %v2087
  %v2110 = vpack.c.bf16 %v2090, %v2089
  %v2111 = vpack.c.bf16 %v2092, %v2091
  %v2112 = vpack.c.bf16 %v2094, %v2093
  %v2113 = vpack.c.bf16 %v2096, %v2095
  %v2114 = vpack.c.bf16 %v2098, %v2097
  %s2115 = scalar_lea.vmem %s1, 384
  %v2116 = vld [vmem:[%s2115] sm:$0xff]
  %v2117 = vld [vmem:[%s2115 + $0x8] sm:$0xff]
  %v2118 = vld [vmem:[%s2115 + $0x10] sm:$0xff]
  %v2119 = vld [vmem:[%s2115 + $0x18] sm:$0xff]
  %v2120 = vld [vmem:[%s2115 + $0x20] sm:$0xff]
  %v2121 = vld [vmem:[%s2115 + $0x28] sm:$0xff]
  %v2122 = vld [vmem:[%s2115 + $0x30] sm:$0xff]
  %v2123 = vld [vmem:[%s2115 + $0x38] sm:$0xff]
  %v2124 = vld [vmem:[%s2115 + $0x40] sm:$0xff]
  %v2125 = vld [vmem:[%s2115 + $0x48] sm:$0xff]
  %v2126 = vld [vmem:[%s2115 + $0x50] sm:$0xff]
  %v2127 = vld [vmem:[%s2115 + $0x58] sm:$0xff]
  %v2140 = vunpack.c.l.b16 %v2116
  %v2141 = vunpack.c.h.b16 %v2116
  %v2142 = vunpack.c.l.b16 %v2117
  %v2143 = vunpack.c.h.b16 %v2117
  %v2144 = vunpack.c.l.b16 %v2118
  %v2145 = vunpack.c.h.b16 %v2118
  %v2146 = vunpack.c.l.b16 %v2119
  %v2147 = vunpack.c.h.b16 %v2119
  %v2148 = vunpack.c.l.b16 %v2120
  %v2149 = vunpack.c.h.b16 %v2120
  %v2150 = vunpack.c.l.b16 %v2121
  %v2151 = vunpack.c.h.b16 %v2121
  %v2152 = vunpack.c.l.b16 %v2122
  %v2153 = vunpack.c.h.b16 %v2122
  %v2154 = vunpack.c.l.b16 %v2123
  %v2155 = vunpack.c.h.b16 %v2123
  %v2156 = vunpack.c.l.b16 %v2124
  %v2157 = vunpack.c.h.b16 %v2124
  %v2158 = vunpack.c.l.b16 %v2125
  %v2159 = vunpack.c.h.b16 %v2125
  %v2160 = vunpack.c.l.b16 %v2126
  %v2161 = vunpack.c.h.b16 %v2126
  %v2162 = vunpack.c.l.b16 %v2127
  %v2163 = vunpack.c.h.b16 %v2127
  %v2164 = vpack.c.b16 %v2142, %v2140
  %v2165 = vpack.c.b16 %v2143, %v2141
  %v2166 = vpack.c.b16 %v2146, %v2144
  %v2167 = vpack.c.b16 %v2147, %v2145
  %v2168 = vpack.c.b16 %v2150, %v2148
  %v2169 = vpack.c.b16 %v2151, %v2149
  %v2170 = vpack.c.b16 %v2154, %v2152
  %v2171 = vpack.c.b16 %v2155, %v2153
  %v2172 = vpack.c.b16 %v2158, %v2156
  %v2173 = vpack.c.b16 %v2159, %v2157
  %v2174 = vpack.c.b16 %v2162, %v2160
  %v2175 = vpack.c.b16 %v2163, %v2161
  %v2189 = vsel %vm159, %v2099, 0
  %v2192 = vsel %vm159, %v2100, 0
  %v2195 = vsel %vm159, %v2101, 0
  %v2198 = vsel %vm159, %v2102, 0
  %v2201 = vsel %vm159, %v2103, 0
  %v2204 = vsel %vm159, %v2104, 0
  %v2207 = vsel %vm159, %v2105, 0
  %v2210 = vsel %vm159, %v2106, 0
  %v2213 = vsel %vm159, %v2107, 0
  %v2216 = vsel %vm159, %v2108, 0
  %v2219 = vsel %vm159, %v2109, 0
  %v2222 = vsel %vm159, %v2110, 0
  %v2225 = vsel %vm159, %v2111, 0
  %v2228 = vsel %vm159, %v2112, 0
  %v2231 = vsel %vm159, %v2113, 0
  %v2234 = vsel %vm159, %v2114, 0
  %2236 = vmatpush.bf16.msra.mxu0 0
  %2237 = vmatpush.bf16.msra.mxu0 0
  %2238 = vmatpush.bf16.msra.mxu0 %v2174
  %2239 = vmatpush.bf16.msra.mxu0 %v2172
  %2240 = vmatpush.bf16.msra.mxu0 %v2170
  %2241 = vmatpush.bf16.msra.mxu0 %v2168
  %2242 = vmatpush.bf16.msra.mxu0 %v2166
  %2243 = vmatpush.bf16.msra.mxu0 %v2164
  %2244 = vmatmul.bf16.gmra.mxu0 %v2189
  %v2245 = vpop.f32.mrf.mxu0
  %v2246 = vadd.f32 0.0, %v2245
  %v2247 = vpop.f32.mrf.mxu0
  %v2248 = vadd.f32 0.0, %v2247
  %2249 = vmatmul.bf16.gmra.mxu0 %v2192
  %v2250 = vpop.f32.mrf.mxu0
  %v2251 = vadd.f32 0.0, %v2250
  %v2252 = vpop.f32.mrf.mxu0
  %v2253 = vadd.f32 0.0, %v2252
  %2254 = vmatmul.bf16.gmra.mxu0 %v2195
  %v2255 = vpop.f32.mrf.mxu0
  %v2256 = vadd.f32 0.0, %v2255
  %v2257 = vpop.f32.mrf.mxu0
  %v2258 = vadd.f32 0.0, %v2257
  %2259 = vmatmul.bf16.gmra.mxu0 %v2198
  %v2260 = vpop.f32.mrf.mxu0
  %v2261 = vadd.f32 0.0, %v2260
  %v2262 = vpop.f32.mrf.mxu0
  %v2263 = vadd.f32 0.0, %v2262
  %2264 = vmatmul.bf16.gmra.mxu0 %v2201
  %v2265 = vpop.f32.mrf.mxu0
  %v2266 = vadd.f32 0.0, %v2265
  %v2267 = vpop.f32.mrf.mxu0
  %v2268 = vadd.f32 0.0, %v2267
  %2269 = vmatmul.bf16.gmra.mxu0 %v2204
  %v2270 = vpop.f32.mrf.mxu0
  %v2271 = vadd.f32 0.0, %v2270
  %v2272 = vpop.f32.mrf.mxu0
  %v2273 = vadd.f32 0.0, %v2272
  %2274 = vmatmul.bf16.gmra.mxu0 %v2207
  %v2275 = vpop.f32.mrf.mxu0
  %v2276 = vadd.f32 0.0, %v2275
  %v2277 = vpop.f32.mrf.mxu0
  %v2278 = vadd.f32 0.0, %v2277
  %2279 = vmatmul.bf16.gmra.mxu0 %v2210
  %v2280 = vpop.f32.mrf.mxu0
  %v2281 = vadd.f32 0.0, %v2280
  %v2282 = vpop.f32.mrf.mxu0
  %v2283 = vadd.f32 0.0, %v2282
  %2284 = vmatmul.bf16.gmra.mxu0 %v2213
  %v2285 = vpop.f32.mrf.mxu0
  %v2286 = vadd.f32 0.0, %v2285
  %v2287 = vpop.f32.mrf.mxu0
  %v2288 = vadd.f32 0.0, %v2287
  %2289 = vmatmul.bf16.gmra.mxu0 %v2216
  %v2290 = vpop.f32.mrf.mxu0
  %v2291 = vadd.f32 0.0, %v2290
  %v2292 = vpop.f32.mrf.mxu0
  %v2293 = vadd.f32 0.0, %v2292
  %2294 = vmatmul.bf16.gmra.mxu0 %v2219
  %v2295 = vpop.f32.mrf.mxu0
  %v2296 = vadd.f32 0.0, %v2295
  %v2297 = vpop.f32.mrf.mxu0
  %v2298 = vadd.f32 0.0, %v2297
  %2299 = vmatmul.bf16.gmra.mxu0 %v2222
  %v2300 = vpop.f32.mrf.mxu0
  %v2301 = vadd.f32 0.0, %v2300
  %v2302 = vpop.f32.mrf.mxu0
  %v2303 = vadd.f32 0.0, %v2302
  %2304 = vmatmul.bf16.gmra.mxu0 %v2225
  %v2305 = vpop.f32.mrf.mxu0
  %v2306 = vadd.f32 0.0, %v2305
  %v2307 = vpop.f32.mrf.mxu0
  %v2308 = vadd.f32 0.0, %v2307
  %2309 = vmatmul.bf16.gmra.mxu0 %v2228
  %v2310 = vpop.f32.mrf.mxu0
  %v2311 = vadd.f32 0.0, %v2310
  %v2312 = vpop.f32.mrf.mxu0
  %v2313 = vadd.f32 0.0, %v2312
  %2314 = vmatmul.bf16.gmra.mxu0 %v2231
  %v2315 = vpop.f32.mrf.mxu0
  %v2316 = vadd.f32 0.0, %v2315
  %v2317 = vpop.f32.mrf.mxu0
  %v2318 = vadd.f32 0.0, %v2317
  %2319 = vmatmul.bf16.gmra.mxu0 %v2234
  %v2320 = vpop.f32.mrf.mxu0
  %v2321 = vadd.f32 0.0, %v2320
  %v2322 = vpop.f32.mrf.mxu0
  %v2323 = vadd.f32 0.0, %v2322
  %2324 = vdwg.mxu0
  %2325 = vmatpush.bf16.msra.mxu0 0
  %2326 = vmatpush.bf16.msra.mxu0 0
  %2327 = vmatpush.bf16.msra.mxu0 %v2175
  %2328 = vmatpush.bf16.msra.mxu0 %v2173
  %2329 = vmatpush.bf16.msra.mxu0 %v2171
  %2330 = vmatpush.bf16.msra.mxu0 %v2169
  %2331 = vmatpush.bf16.msra.mxu0 %v2167
  %2332 = vmatpush.bf16.msra.mxu0 %v2165
  %2333 = vmatmul.bf16.gmra.mxu0 %v2189
  %v2334 = vpop.f32.mrf.mxu0
  %v2335 = vadd.f32 0.0, %v2334
  %v2336 = vpop.f32.mrf.mxu0
  %v2337 = vadd.f32 0.0, %v2336
  %2338 = vmatmul.bf16.gmra.mxu0 %v2192
  %v2339 = vpop.f32.mrf.mxu0
  %v2340 = vadd.f32 0.0, %v2339
  %v2341 = vpop.f32.mrf.mxu0
  %v2342 = vadd.f32 0.0, %v2341
  %2343 = vmatmul.bf16.gmra.mxu0 %v2195
  %v2344 = vpop.f32.mrf.mxu0
  %v2345 = vadd.f32 0.0, %v2344
  %v2346 = vpop.f32.mrf.mxu0
  %v2347 = vadd.f32 0.0, %v2346
  %2348 = vmatmul.bf16.gmra.mxu0 %v2198
  %v2349 = vpop.f32.mrf.mxu0
  %v2350 = vadd.f32 0.0, %v2349
  %v2351 = vpop.f32.mrf.mxu0
  %v2352 = vadd.f32 0.0, %v2351
  %2353 = vmatmul.bf16.gmra.mxu0 %v2201
  %v2354 = vpop.f32.mrf.mxu0
  %v2355 = vadd.f32 0.0, %v2354
  %v2356 = vpop.f32.mrf.mxu0
  %v2357 = vadd.f32 0.0, %v2356
  %2358 = vmatmul.bf16.gmra.mxu0 %v2204
  %v2359 = vpop.f32.mrf.mxu0
  %v2360 = vadd.f32 0.0, %v2359
  %v2361 = vpop.f32.mrf.mxu0
  %v2362 = vadd.f32 0.0, %v2361
  %2363 = vmatmul.bf16.gmra.mxu0 %v2207
  %v2364 = vpop.f32.mrf.mxu0
  %v2365 = vadd.f32 0.0, %v2364
  %v2366 = vpop.f32.mrf.mxu0
  %v2367 = vadd.f32 0.0, %v2366
  %2368 = vmatmul.bf16.gmra.mxu0 %v2210
  %v2369 = vpop.f32.mrf.mxu0
  %v2370 = vadd.f32 0.0, %v2369
  %v2371 = vpop.f32.mrf.mxu0
  %v2372 = vadd.f32 0.0, %v2371
  %2373 = vmatmul.bf16.gmra.mxu0 %v2213
  %v2374 = vpop.f32.mrf.mxu0
  %v2375 = vadd.f32 0.0, %v2374
  %v2376 = vpop.f32.mrf.mxu0
  %v2377 = vadd.f32 0.0, %v2376
  %2378 = vmatmul.bf16.gmra.mxu0 %v2216
  %v2379 = vpop.f32.mrf.mxu0
  %v2380 = vadd.f32 0.0, %v2379
  %v2381 = vpop.f32.mrf.mxu0
  %v2382 = vadd.f32 0.0, %v2381
  %2383 = vmatmul.bf16.gmra.mxu0 %v2219
  %v2384 = vpop.f32.mrf.mxu0
  %v2385 = vadd.f32 0.0, %v2384
  %v2386 = vpop.f32.mrf.mxu0
  %v2387 = vadd.f32 0.0, %v2386
  %2388 = vmatmul.bf16.gmra.mxu0 %v2222
  %v2389 = vpop.f32.mrf.mxu0
  %v2390 = vadd.f32 0.0, %v2389
  %v2391 = vpop.f32.mrf.mxu0
  %v2392 = vadd.f32 0.0, %v2391
  %2393 = vmatmul.bf16.gmra.mxu0 %v2225
  %v2394 = vpop.f32.mrf.mxu0
  %v2395 = vadd.f32 0.0, %v2394
  %v2396 = vpop.f32.mrf.mxu0
  %v2397 = vadd.f32 0.0, %v2396
  %2398 = vmatmul.bf16.gmra.mxu0 %v2228
  %v2399 = vpop.f32.mrf.mxu0
  %v2400 = vadd.f32 0.0, %v2399
  %v2401 = vpop.f32.mrf.mxu0
  %v2402 = vadd.f32 0.0, %v2401
  %2403 = vmatmul.bf16.gmra.mxu0 %v2231
  %v2404 = vpop.f32.mrf.mxu0
  %v2405 = vadd.f32 0.0, %v2404
  %v2406 = vpop.f32.mrf.mxu0
  %v2407 = vadd.f32 0.0, %v2406
  %2408 = vmatmul.bf16.gmra.mxu0 %v2234
  %v2409 = vpop.f32.mrf.mxu0
  %v2410 = vadd.f32 0.0, %v2409
  %v2411 = vpop.f32.mrf.mxu0
  %v2412 = vadd.f32 0.0, %v2411
  %2413 = vdwg.mxu0
  %v2414 = vld [vmem:[#allocation2] sm:$0xff]
  %v2415 = vld [vmem:[#allocation2 + $0x8] sm:$0xff]
  %v2416 = vld [vmem:[#allocation2 + $0x10] sm:$0xff]
  %v2417 = vld [vmem:[#allocation2 + $0x18] sm:$0xff]
  %v2418 = vld [vmem:[#allocation2 + $0x20] sm:$0xff]
  %v2419 = vld [vmem:[#allocation2 + $0x28] sm:$0xff]
  %v2420 = vld [vmem:[#allocation2 + $0x30] sm:$0xff]
  %v2421 = vld [vmem:[#allocation2 + $0x38] sm:$0xff]
  %v2422 = vld [vmem:[#allocation2 + $0x40] sm:$0xff]
  %v2423 = vld [vmem:[#allocation2 + $0x48] sm:$0xff]
  %v2424 = vld [vmem:[#allocation2 + $0x50] sm:$0xff]
  %v2425 = vld [vmem:[#allocation2 + $0x58] sm:$0xff]
  %v2426 = vld [vmem:[#allocation2 + $0x60] sm:$0xff]
  %v2427 = vld [vmem:[#allocation2 + $0x68] sm:$0xff]
  %v2428 = vld [vmem:[#allocation2 + $0x70] sm:$0xff]
  %v2429 = vld [vmem:[#allocation2 + $0x78] sm:$0xff]
  %v2430 = vld [vmem:[#allocation2 + $0x80] sm:$0xff]
  %v2431 = vld [vmem:[#allocation2 + $0x88] sm:$0xff]
  %v2432 = vld [vmem:[#allocation2 + $0x90] sm:$0xff]
  %v2433 = vld [vmem:[#allocation2 + $0x98] sm:$0xff]
  %v2434 = vld [vmem:[#allocation2 + $0xa0] sm:$0xff]
  %v2435 = vld [vmem:[#allocation2 + $0xa8] sm:$0xff]
  %v2436 = vld [vmem:[#allocation2 + $0xb0] sm:$0xff]
  %v2437 = vld [vmem:[#allocation2 + $0xb8] sm:$0xff]
  %v2438 = vld [vmem:[#allocation2 + $0xc0] sm:$0xff]
  %v2439 = vld [vmem:[#allocation2 + $0xc8] sm:$0xff]
  %v2440 = vld [vmem:[#allocation2 + $0xd0] sm:$0xff]
  %v2441 = vld [vmem:[#allocation2 + $0xd8] sm:$0xff]
  %v2442 = vld [vmem:[#allocation2 + $0xe0] sm:$0xff]
  %v2443 = vld [vmem:[#allocation2 + $0xe8] sm:$0xff]
  %v2444 = vld [vmem:[#allocation2 + $0xf0] sm:$0xff]
  %v2445 = vld [vmem:[#allocation2 + $0xf8] sm:$0xff]
  %v2446 = vld [vmem:[#allocation2 + $0x100] sm:$0xff]
  %v2447 = vld [vmem:[#allocation2 + $0x108] sm:$0xff]
  %v2448 = vld [vmem:[#allocation2 + $0x110] sm:$0xff]
  %v2449 = vld [vmem:[#allocation2 + $0x118] sm:$0xff]
  %v2450 = vld [vmem:[#allocation2 + $0x120] sm:$0xff]
  %v2451 = vld [vmem:[#allocation2 + $0x128] sm:$0xff]
  %v2452 = vld [vmem:[#allocation2 + $0x130] sm:$0xff]
  %v2453 = vld [vmem:[#allocation2 + $0x138] sm:$0xff]
  %v2454 = vld [vmem:[#allocation2 + $0x140] sm:$0xff]
  %v2455 = vld [vmem:[#allocation2 + $0x148] sm:$0xff]
  %v2456 = vld [vmem:[#allocation2 + $0x150] sm:$0xff]
  %v2457 = vld [vmem:[#allocation2 + $0x158] sm:$0xff]
  %v2458 = vld [vmem:[#allocation2 + $0x160] sm:$0xff]
  %v2459 = vld [vmem:[#allocation2 + $0x168] sm:$0xff]
  %v2460 = vld [vmem:[#allocation2 + $0x170] sm:$0xff]
  %v2461 = vld [vmem:[#allocation2 + $0x178] sm:$0xff]
  %v2462 = vld [vmem:[#allocation2 + $0x180] sm:$0xff]
  %v2463 = vld [vmem:[#allocation2 + $0x188] sm:$0xff]
  %v2464 = vld [vmem:[#allocation2 + $0x190] sm:$0xff]
  %v2465 = vld [vmem:[#allocation2 + $0x198] sm:$0xff]
  %v2466 = vld [vmem:[#allocation2 + $0x1a0] sm:$0xff]
  %v2467 = vld [vmem:[#allocation2 + $0x1a8] sm:$0xff]
  %v2468 = vld [vmem:[#allocation2 + $0x1b0] sm:$0xff]
  %v2469 = vld [vmem:[#allocation2 + $0x1b8] sm:$0xff]
  %v2470 = vld [vmem:[#allocation2 + $0x1c0] sm:$0xff]
  %v2471 = vld [vmem:[#allocation2 + $0x1c8] sm:$0xff]
  %v2472 = vld [vmem:[#allocation2 + $0x1d0] sm:$0xff]
  %v2473 = vld [vmem:[#allocation2 + $0x1d8] sm:$0xff]
  %v2474 = vld [vmem:[#allocation2 + $0x1e0] sm:$0xff]
  %v2475 = vld [vmem:[#allocation2 + $0x1e8] sm:$0xff]
  %v2476 = vld [vmem:[#allocation2 + $0x1f0] sm:$0xf]
  %v2477 = vld [vmem:[#allocation2 + $0x1f8] sm:$0xf]
  %v2478 = vadd.f32 %v2414, %v2246
  %v2479 = vadd.f32 %v2415, %v2335
  %v2480 = vadd.f32 %v2416, %v2248
  %v2481 = vadd.f32 %v2417, %v2337
  %v2482 = vadd.f32 %v2418, %v2251
  %v2483 = vadd.f32 %v2419, %v2340
  %v2484 = vadd.f32 %v2420, %v2253
  %v2485 = vadd.f32 %v2421, %v2342
  %v2486 = vadd.f32 %v2422, %v2256
  %v2487 = vadd.f32 %v2423, %v2345
  %v2488 = vadd.f32 %v2424, %v2258
  %v2489 = vadd.f32 %v2425, %v2347
  %v2490 = vadd.f32 %v2426, %v2261
  %v2491 = vadd.f32 %v2427, %v2350
  %v2492 = vadd.f32 %v2428, %v2263
  %v2493 = vadd.f32 %v2429, %v2352
  %v2494 = vadd.f32 %v2430, %v2266
  %v2495 = vadd.f32 %v2431, %v2355
  %v2496 = vadd.f32 %v2432, %v2268
  %v2497 = vadd.f32 %v2433, %v2357
  %v2498 = vadd.f32 %v2434, %v2271
  %v2499 = vadd.f32 %v2435, %v2360
  %v2500 = vadd.f32 %v2436, %v2273
  %v2501 = vadd.f32 %v2437, %v2362
  %v2502 = vadd.f32 %v2438, %v2276
  %v2503 = vadd.f32 %v2439, %v2365
  %v2504 = vadd.f32 %v2440, %v2278
  %v2505 = vadd.f32 %v2441, %v2367
  %v2506 = vadd.f32 %v2442, %v2281
  %v2507 = vadd.f32 %v2443, %v2370
  %v2508 = vadd.f32 %v2444, %v2283
  %v2509 = vadd.f32 %v2445, %v2372
  %v2510 = vadd.f32 %v2446, %v2286
  %v2511 = vadd.f32 %v2447, %v2375
  %v2512 = vadd.f32 %v2448, %v2288
  %v2513 = vadd.f32 %v2449, %v2377
  %v2514 = vadd.f32 %v2450, %v2291
  %v2515 = vadd.f32 %v2451, %v2380
  %v2516 = vadd.f32 %v2452, %v2293
  %v2517 = vadd.f32 %v2453, %v2382
  %v2518 = vadd.f32 %v2454, %v2296
  %v2519 = vadd.f32 %v2455, %v2385
  %v2520 = vadd.f32 %v2456, %v2298
  %v2521 = vadd.f32 %v2457, %v2387
  %v2522 = vadd.f32 %v2458, %v2301
  %v2523 = vadd.f32 %v2459, %v2390
  %v2524 = vadd.f32 %v2460, %v2303
  %v2525 = vadd.f32 %v2461, %v2392
  %v2526 = vadd.f32 %v2462, %v2306
  %v2527 = vadd.f32 %v2463, %v2395
  %v2528 = vadd.f32 %v2464, %v2308
  %v2529 = vadd.f32 %v2465, %v2397
  %v2530 = vadd.f32 %v2466, %v2311
  %v2531 = vadd.f32 %v2467, %v2400
  %v2532 = vadd.f32 %v2468, %v2313
  %v2533 = vadd.f32 %v2469, %v2402
  %v2534 = vadd.f32 %v2470, %v2316
  %v2535 = vadd.f32 %v2471, %v2405
  %v2536 = vadd.f32 %v2472, %v2318
  %v2537 = vadd.f32 %v2473, %v2407
  %v2538 = vadd.f32 %v2474, %v2321
  %v2539 = vadd.f32 %v2475, %v2410
  %v2540 = vadd.f32 %v2476, %v2323
  %v2541 = vadd.f32 %v2477, %v2412
  %2542 = vst [vmem:[#allocation2] sm:$0xff] %v2478
  %2543 = vst [vmem:[#allocation2 + $0x8] sm:$0xff] %v2479
  %2544 = vst [vmem:[#allocation2 + $0x10] sm:$0xff] %v2480
  %2545 = vst [vmem:[#allocation2 + $0x18] sm:$0xff] %v2481
  %2546 = vst [vmem:[#allocation2 + $0x20] sm:$0xff] %v2482
  %2547 = vst [vmem:[#allocation2 + $0x28] sm:$0xff] %v2483
  %2548 = vst [vmem:[#allocation2 + $0x30] sm:$0xff] %v2484
  %2549 = vst [vmem:[#allocation2 + $0x38] sm:$0xff] %v2485
  %2550 = vst [vmem:[#allocation2 + $0x40] sm:$0xff] %v2486
  %2551 = vst [vmem:[#allocation2 + $0x48] sm:$0xff] %v2487
  %2552 = vst [vmem:[#allocation2 + $0x50] sm:$0xff] %v2488
  %2553 = vst [vmem:[#allocation2 + $0x58] sm:$0xff] %v2489
  %2554 = vst [vmem:[#allocation2 + $0x60] sm:$0xff] %v2490
  %2555 = vst [vmem:[#allocation2 + $0x68] sm:$0xff] %v2491
  %2556 = vst [vmem:[#allocation2 + $0x70] sm:$0xff] %v2492
  %2557 = vst [vmem:[#allocation2 + $0x78] sm:$0xff] %v2493
  %2558 = vst [vmem:[#allocation2 + $0x80] sm:$0xff] %v2494
  %2559 = vst [vmem:[#allocation2 + $0x88] sm:$0xff] %v2495
  %2560 = vst [vmem:[#allocation2 + $0x90] sm:$0xff] %v2496
  %2561 = vst [vmem:[#allocation2 + $0x98] sm:$0xff] %v2497
  %2562 = vst [vmem:[#allocation2 + $0xa0] sm:$0xff] %v2498
  %2563 = vst [vmem:[#allocation2 + $0xa8] sm:$0xff] %v2499
  %2564 = vst [vmem:[#allocation2 + $0xb0] sm:$0xff] %v2500
  %2565 = vst [vmem:[#allocation2 + $0xb8] sm:$0xff] %v2501
  %2566 = vst [vmem:[#allocation2 + $0xc0] sm:$0xff] %v2502
  %2567 = vst [vmem:[#allocation2 + $0xc8] sm:$0xff] %v2503
  %2568 = vst [vmem:[#allocation2 + $0xd0] sm:$0xff] %v2504
  %2569 = vst [vmem:[#allocation2 + $0xd8] sm:$0xff] %v2505
  %2570 = vst [vmem:[#allocation2 + $0xe0] sm:$0xff] %v2506
  %2571 = vst [vmem:[#allocation2 + $0xe8] sm:$0xff] %v2507
  %2572 = vst [vmem:[#allocation2 + $0xf0] sm:$0xff] %v2508
  %2573 = vst [vmem:[#allocation2 + $0xf8] sm:$0xff] %v2509
  %2574 = vst [vmem:[#allocation2 + $0x100] sm:$0xff] %v2510
  %2575 = vst [vmem:[#allocation2 + $0x108] sm:$0xff] %v2511
  %2576 = vst [vmem:[#allocation2 + $0x110] sm:$0xff] %v2512
  %2577 = vst [vmem:[#allocation2 + $0x118] sm:$0xff] %v2513
  %2578 = vst [vmem:[#allocation2 + $0x120] sm:$0xff] %v2514
  %2579 = vst [vmem:[#allocation2 + $0x128] sm:$0xff] %v2515
  %2580 = vst [vmem:[#allocation2 + $0x130] sm:$0xff] %v2516
  %2581 = vst [vmem:[#allocation2 + $0x138] sm:$0xff] %v2517
  %2582 = vst [vmem:[#allocation2 + $0x140] sm:$0xff] %v2518
  %2583 = vst [vmem:[#allocation2 + $0x148] sm:$0xff] %v2519
  %2584 = vst [vmem:[#allocation2 + $0x150] sm:$0xff] %v2520
  %2585 = vst [vmem:[#allocation2 + $0x158] sm:$0xff] %v2521
  %2586 = vst [vmem:[#allocation2 + $0x160] sm:$0xff] %v2522
  %2587 = vst [vmem:[#allocation2 + $0x168] sm:$0xff] %v2523
  %2588 = vst [vmem:[#allocation2 + $0x170] sm:$0xff] %v2524
  %2589 = vst [vmem:[#allocation2 + $0x178] sm:$0xff] %v2525
  %2590 = vst [vmem:[#allocation2 + $0x180] sm:$0xff] %v2526
  %2591 = vst [vmem:[#allocation2 + $0x188] sm:$0xff] %v2527
  %2592 = vst [vmem:[#allocation2 + $0x190] sm:$0xff] %v2528
  %2593 = vst [vmem:[#allocation2 + $0x198] sm:$0xff] %v2529
  %2594 = vst [vmem:[#allocation2 + $0x1a0] sm:$0xff] %v2530
  %2595 = vst [vmem:[#allocation2 + $0x1a8] sm:$0xff] %v2531
  %2596 = vst [vmem:[#allocation2 + $0x1b0] sm:$0xff] %v2532
  %2597 = vst [vmem:[#allocation2 + $0x1b8] sm:$0xff] %v2533
  %2598 = vst [vmem:[#allocation2 + $0x1c0] sm:$0xff] %v2534
  %2599 = vst [vmem:[#allocation2 + $0x1c8] sm:$0xff] %v2535
  %2600 = vst [vmem:[#allocation2 + $0x1d0] sm:$0xff] %v2536
  %2601 = vst [vmem:[#allocation2 + $0x1d8] sm:$0xff] %v2537
  %2602 = vst [vmem:[#allocation2 + $0x1e0] sm:$0xff] %v2538
  %2603 = vst [vmem:[#allocation2 + $0x1e8] sm:$0xff] %v2539
  %2604 = vst [vmem:[#allocation2 + $0x1f0] sm:$0xf] %v2540
  %2605 = vst [vmem:[#allocation2 + $0x1f8] sm:$0xf] %v2541
  %v2606 = vld [vmem:[#allocation2] sm:$0xff]
  %v2607 = vld [vmem:[#allocation2 + $0x10] sm:$0xff]
  %v2608 = vld [vmem:[#allocation2 + $0x20] sm:$0xff]
  %v2609 = vld [vmem:[#allocation2 + $0x30] sm:$0xff]
  %v2610 = vld [vmem:[#allocation2 + $0x40] sm:$0xff]
  %v2611 = vld [vmem:[#allocation2 + $0x50] sm:$0xff]
  %v2612 = vld [vmem:[#allocation2 + $0x60] sm:$0xff]
  %v2613 = vld [vmem:[#allocation2 + $0x70] sm:$0xff]
  %v2614 = vld [vmem:[#allocation2 + $0x80] sm:$0xff]
  %v2615 = vld [vmem:[#allocation2 + $0x90] sm:$0xff]
  %v2616 = vld [vmem:[#allocation2 + $0xa0] sm:$0xff]
  %v2617 = vld [vmem:[#allocation2 + $0xb0] sm:$0xff]
  %v2618 = vld [vmem:[#allocation2 + $0xc0] sm:$0xff]
  %v2619 = vld [vmem:[#allocation2 + $0xd0] sm:$0xff]
  %v2620 = vld [vmem:[#allocation2 + $0xe0] sm:$0xff]
  %v2621 = vld [vmem:[#allocation2 + $0xf0] sm:$0xff]
  %v2622 = vld [vmem:[#allocation2 + $0x100] sm:$0xff]
  %v2623 = vld [vmem:[#allocation2 + $0x110] sm:$0xff]
  %v2624 = vld [vmem:[#allocation2 + $0x120] sm:$0xff]
  %v2625 = vld [vmem:[#allocation2 + $0x130] sm:$0xff]
  %v2626 = vld [vmem:[#allocation2 + $0x140] sm:$0xff]
  %v2627 = vld [vmem:[#allocation2 + $0x150] sm:$0xff]
  %v2628 = vld [vmem:[#allocation2 + $0x160] sm:$0xff]
  %v2629 = vld [vmem:[#allocation2 + $0x170] sm:$0xff]
  %v2630 = vld [vmem:[#allocation2 + $0x180] sm:$0xff]
  %v2631 = vld [vmem:[#allocation2 + $0x190] sm:$0xff]
  %v2632 = vld [vmem:[#allocation2 + $0x1a0] sm:$0xff]
  %v2633 = vld [vmem:[#allocation2 + $0x1b0] sm:$0xff]
  %v2634 = vld [vmem:[#allocation2 + $0x1c0] sm:$0xff]
  %v2635 = vld [vmem:[#allocation2 + $0x1d0] sm:$0xff]
  %v2636 = vld [vmem:[#allocation2 + $0x1e0] sm:$0xff]
  %v2637 = vld [vmem:[#allocation2 + $0x1f0] sm:$0xf]
  %v2638 = vld [vmem:[#allocation2 + $0x8] sm:$0xff]
  %v2639 = vld [vmem:[#allocation2 + $0x18] sm:$0xff]
  %v2640 = vld [vmem:[#allocation2 + $0x28] sm:$0xff]
  %v2641 = vld [vmem:[#allocation2 + $0x38] sm:$0xff]
  %v2642 = vld [vmem:[#allocation2 + $0x48] sm:$0xff]
  %v2643 = vld [vmem:[#allocation2 + $0x58] sm:$0xff]
  %v2644 = vld [vmem:[#allocation2 + $0x68] sm:$0xff]
  %v2645 = vld [vmem:[#allocation2 + $0x78] sm:$0xff]
  %v2646 = vld [vmem:[#allocation2 + $0x88] sm:$0xff]
  %v2647 = vld [vmem:[#allocation2 + $0x98] sm:$0xff]
  %v2648 = vld [vmem:[#allocation2 + $0xa8] sm:$0xff]
  %v2649 = vld [vmem:[#allocation2 + $0xb8] sm:$0xff]
  %v2650 = vld [vmem:[#allocation2 + $0xc8] sm:$0xff]
  %v2651 = vld [vmem:[#allocation2 + $0xd8] sm:$0xff]
  %v2652 = vld [vmem:[#allocation2 + $0xe8] sm:$0xff]
  %v2653 = vld [vmem:[#allocation2 + $0xf8] sm:$0xff]
  %v2654 = vld [vmem:[#allocation2 + $0x108] sm:$0xff]
  %v2655 = vld [vmem:[#allocation2 + $0x118] sm:$0xff]
  %v2656 = vld [vmem:[#allocation2 + $0x128] sm:$0xff]
  %v2657 = vld [vmem:[#allocation2 + $0x138] sm:$0xff]
  %v2658 = vld [vmem:[#allocation2 + $0x148] sm:$0xff]
  %v2659 = vld [vmem:[#allocation2 + $0x158] sm:$0xff]
  %v2660 = vld [vmem:[#allocation2 + $0x168] sm:$0xff]
  %v2661 = vld [vmem:[#allocation2 + $0x178] sm:$0xff]
  %v2662 = vld [vmem:[#allocation2 + $0x188] sm:$0xff]
  %v2663 = vld [vmem:[#allocation2 + $0x198] sm:$0xff]
  %v2664 = vld [vmem:[#allocation2 + $0x1a8] sm:$0xff]
  %v2665 = vld [vmem:[#allocation2 + $0x1b8] sm:$0xff]
  %v2666 = vld [vmem:[#allocation2 + $0x1c8] sm:$0xff]
  %v2667 = vld [vmem:[#allocation2 + $0x1d8] sm:$0xff]
  %v2668 = vld [vmem:[#allocation2 + $0x1e8] sm:$0xff]
  %v2669 = vld [vmem:[#allocation2 + $0x1f8] sm:$0xf]
  %v2670 = vmax.f32 %v2606, %v2638
  %v2671 = vmax.f32 %v2607, %v2639
  %v2672 = vmax.f32 %v2608, %v2640
  %v2673 = vmax.f32 %v2609, %v2641
  %v2674 = vmax.f32 %v2610, %v2642
  %v2675 = vmax.f32 %v2611, %v2643
  %v2676 = vmax.f32 %v2612, %v2644
  %v2677 = vmax.f32 %v2613, %v2645
  %v2678 = vmax.f32 %v2614, %v2646
  %v2679 = vmax.f32 %v2615, %v2647
  %v2680 = vmax.f32 %v2616, %v2648
  %v2681 = vmax.f32 %v2617, %v2649
  %v2682 = vmax.f32 %v2618, %v2650
  %v2683 = vmax.f32 %v2619, %v2651
  %v2684 = vmax.f32 %v2620, %v2652
  %v2685 = vmax.f32 %v2621, %v2653
  %v2686 = vmax.f32 %v2622, %v2654
  %v2687 = vmax.f32 %v2623, %v2655
  %v2688 = vmax.f32 %v2624, %v2656
  %v2689 = vmax.f32 %v2625, %v2657
  %v2690 = vmax.f32 %v2626, %v2658
  %v2691 = vmax.f32 %v2627, %v2659
  %v2692 = vmax.f32 %v2628, %v2660
  %v2693 = vmax.f32 %v2629, %v2661
  %v2694 = vmax.f32 %v2630, %v2662
  %v2695 = vmax.f32 %v2631, %v2663
  %v2696 = vmax.f32 %v2632, %v2664
  %v2697 = vmax.f32 %v2633, %v2665
  %v2698 = vmax.f32 %v2634, %v2666
  %v2699 = vmax.f32 %v2635, %v2667
  %v2700 = vmax.f32 %v2636, %v2668
  %v2701 = vmax.f32 %v2637, %v2669
  %v2702 = vld [vmem:[%s2] sm:$0x1]
  %v2704 = vperm.slane %v2702, 0
  %v2706 = vadd.f32 %v2670, %v2704
  %v2707 = vadd.f32 %v2671, %v2704
  %v2708 = vadd.f32 %v2672, %v2704
  %v2709 = vadd.f32 %v2673, %v2704
  %v2710 = vadd.f32 %v2674, %v2704
  %v2711 = vadd.f32 %v2675, %v2704
  %v2712 = vadd.f32 %v2676, %v2704
  %v2713 = vadd.f32 %v2677, %v2704
  %v2714 = vadd.f32 %v2678, %v2704
  %v2715 = vadd.f32 %v2679, %v2704
  %v2716 = vadd.f32 %v2680, %v2704
  %v2717 = vadd.f32 %v2681, %v2704
  %v2718 = vadd.f32 %v2682, %v2704
  %v2719 = vadd.f32 %v2683, %v2704
  %v2720 = vadd.f32 %v2684, %v2704
  %v2721 = vadd.f32 %v2685, %v2704
  %v2722 = vadd.f32 %v2686, %v2704
  %v2723 = vadd.f32 %v2687, %v2704
  %v2724 = vadd.f32 %v2688, %v2704
  %v2725 = vadd.f32 %v2689, %v2704
  %v2726 = vadd.f32 %v2690, %v2704
  %v2727 = vadd.f32 %v2691, %v2704
  %v2728 = vadd.f32 %v2692, %v2704
  %v2729 = vadd.f32 %v2693, %v2704
  %v2730 = vadd.f32 %v2694, %v2704
  %v2731 = vadd.f32 %v2695, %v2704
  %v2732 = vadd.f32 %v2696, %v2704
  %v2733 = vadd.f32 %v2697, %v2704
  %v2734 = vadd.f32 %v2698, %v2704
  %v2735 = vadd.f32 %v2699, %v2704
  %v2736 = vadd.f32 %v2700, %v2704
  %v2737 = vadd.f32 %v2701, %v2704
  %v2738 = vmax.f32 %v2706, 0.0
  %v2739 = vmax.f32 %v2707, 0.0
  %v2740 = vmax.f32 %v2708, 0.0
  %v2741 = vmax.f32 %v2709, 0.0
  %v2742 = vmax.f32 %v2710, 0.0
  %v2743 = vmax.f32 %v2711, 0.0
  %v2744 = vmax.f32 %v2712, 0.0
  %v2745 = vmax.f32 %v2713, 0.0
  %v2746 = vmax.f32 %v2714, 0.0
  %v2747 = vmax.f32 %v2715, 0.0
  %v2748 = vmax.f32 %v2716, 0.0
  %v2749 = vmax.f32 %v2717, 0.0
  %v2750 = vmax.f32 %v2718, 0.0
  %v2751 = vmax.f32 %v2719, 0.0
  %v2752 = vmax.f32 %v2720, 0.0
  %v2753 = vmax.f32 %v2721, 0.0
  %v2754 = vmax.f32 %v2722, 0.0
  %v2755 = vmax.f32 %v2723, 0.0
  %v2756 = vmax.f32 %v2724, 0.0
  %v2757 = vmax.f32 %v2725, 0.0
  %v2758 = vmax.f32 %v2726, 0.0
  %v2759 = vmax.f32 %v2727, 0.0
  %v2760 = vmax.f32 %v2728, 0.0
  %v2761 = vmax.f32 %v2729, 0.0
  %v2762 = vmax.f32 %v2730, 0.0
  %v2763 = vmax.f32 %v2731, 0.0
  %v2764 = vmax.f32 %v2732, 0.0
  %v2765 = vmax.f32 %v2733, 0.0
  %v2766 = vmax.f32 %v2734, 0.0
  %v2767 = vmax.f32 %v2735, 0.0
  %v2768 = vmax.f32 %v2736, 0.0
  %v2769 = vmax.f32 %v2737, 0.0
  %2770 = vst [vmem:[#allocation3] sm:$0xff] %v2738
  %2771 = vst [vmem:[#allocation3 + $0x8] sm:$0xff] %v2739
  %2772 = vst [vmem:[#allocation3 + $0x10] sm:$0xff] %v2740
  %2773 = vst [vmem:[#allocation3 + $0x18] sm:$0xff] %v2741
  %2774 = vst [vmem:[#allocation3 + $0x20] sm:$0xff] %v2742
  %2775 = vst [vmem:[#allocation3 + $0x28] sm:$0xff] %v2743
  %2776 = vst [vmem:[#allocation3 + $0x30] sm:$0xff] %v2744
  %2777 = vst [vmem:[#allocation3 + $0x38] sm:$0xff] %v2745
  %2778 = vst [vmem:[#allocation3 + $0x40] sm:$0xff] %v2746
  %2779 = vst [vmem:[#allocation3 + $0x48] sm:$0xff] %v2747
  %2780 = vst [vmem:[#allocation3 + $0x50] sm:$0xff] %v2748
  %2781 = vst [vmem:[#allocation3 + $0x58] sm:$0xff] %v2749
  %2782 = vst [vmem:[#allocation3 + $0x60] sm:$0xff] %v2750
  %2783 = vst [vmem:[#allocation3 + $0x68] sm:$0xff] %v2751
  %2784 = vst [vmem:[#allocation3 + $0x70] sm:$0xff] %v2752
  %2785 = vst [vmem:[#allocation3 + $0x78] sm:$0xff] %v2753
  %2786 = vst [vmem:[#allocation3 + $0x80] sm:$0xff] %v2754
  %2787 = vst [vmem:[#allocation3 + $0x88] sm:$0xff] %v2755
  %2788 = vst [vmem:[#allocation3 + $0x90] sm:$0xff] %v2756
  %2789 = vst [vmem:[#allocation3 + $0x98] sm:$0xff] %v2757
  %2790 = vst [vmem:[#allocation3 + $0xa0] sm:$0xff] %v2758
  %2791 = vst [vmem:[#allocation3 + $0xa8] sm:$0xff] %v2759
  %2792 = vst [vmem:[#allocation3 + $0xb0] sm:$0xff] %v2760
  %2793 = vst [vmem:[#allocation3 + $0xb8] sm:$0xff] %v2761
  %2794 = vst [vmem:[#allocation3 + $0xc0] sm:$0xff] %v2762
  %2795 = vst [vmem:[#allocation3 + $0xc8] sm:$0xff] %v2763
  %2796 = vst [vmem:[#allocation3 + $0xd0] sm:$0xff] %v2764
  %2797 = vst [vmem:[#allocation3 + $0xd8] sm:$0xff] %v2765
  %2798 = vst [vmem:[#allocation3 + $0xe0] sm:$0xff] %v2766
  %2799 = vst [vmem:[#allocation3 + $0xe8] sm:$0xff] %v2767
  %2800 = vst [vmem:[#allocation3 + $0xf0] sm:$0xff] %v2768
  %2801 = vst [vmem:[#allocation3 + $0xf8] sm:$0xf] %v2769
  %2802 = vst [vmem:[#allocation3 + $0xfc] sm:$0xf] 0.0
  %v2803 = vld [vmem:[#allocation3] ss:$2 sm:$0xff]
  %s2804 = scalar_lea.vmem [#allocation3], 16
  %v2805 = vld [vmem:[%s2804] ss:$2 sm:$0xff]
  %s2806 = scalar_lea.vmem [#allocation3], 32
  %v2807 = vld [vmem:[%s2806] ss:$2 sm:$0xff]
  %s2808 = scalar_lea.vmem [#allocation3], 48
  %v2809 = vld [vmem:[%s2808] ss:$2 sm:$0xff]
  %s2810 = scalar_lea.vmem [#allocation3], 64
  %v2811 = vld [vmem:[%s2810] ss:$2 sm:$0xff]
  %s2812 = scalar_lea.vmem [#allocation3], 80
  %v2813 = vld [vmem:[%s2812] ss:$2 sm:$0xff]
  %s2814 = scalar_lea.vmem [#allocation3], 96
  %v2815 = vld [vmem:[%s2814] ss:$2 sm:$0xff]
  %s2816 = scalar_lea.vmem [#allocation3], 112
  %v2817 = vld [vmem:[%s2816] ss:$2 sm:$0xff]
  %s2818 = scalar_lea.vmem [#allocation3], 128
  %v2819 = vld [vmem:[%s2818] ss:$2 sm:$0xff]
  %s2820 = scalar_lea.vmem [#allocation3], 144
  %v2821 = vld [vmem:[%s2820] ss:$2 sm:$0xff]
  %s2822 = scalar_lea.vmem [#allocation3], 160
  %v2823 = vld [vmem:[%s2822] ss:$2 sm:$0xff]
  %s2824 = scalar_lea.vmem [#allocation3], 176
  %v2825 = vld [vmem:[%s2824] ss:$2 sm:$0xff]
  %s2826 = scalar_lea.vmem [#allocation3], 192
  %v2827 = vld [vmem:[%s2826] ss:$2 sm:$0xff]
  %s2828 = scalar_lea.vmem [#allocation3], 208
  %v2829 = vld [vmem:[%s2828] ss:$2 sm:$0xff]
  %s2830 = scalar_lea.vmem [#allocation3], 224
  %v2831 = vld [vmem:[%s2830] ss:$2 sm:$0xff]
  %s2832 = scalar_lea.vmem [#allocation3], 240
  %v2833 = vld [vmem:[%s2832] ss:$2 sm:$0xff]
  %s2834 = scalar_lea.vmem [#allocation3], 1
  %v2835 = vld [vmem:[%s2834] ss:$2 sm:$0xff]
  %s2836 = scalar_lea.vmem [#allocation3], 17
  %v2837 = vld [vmem:[%s2836] ss:$2 sm:$0xff]
  %s2838 = scalar_lea.vmem [#allocation3], 33
  %v2839 = vld [vmem:[%s2838] ss:$2 sm:$0xff]
  %s2840 = scalar_lea.vmem [#allocation3], 49
  %v2841 = vld [vmem:[%s2840] ss:$2 sm:$0xff]
  %s2842 = scalar_lea.vmem [#allocation3], 65
  %v2843 = vld [vmem:[%s2842] ss:$2 sm:$0xff]
  %s2844 = scalar_lea.vmem [#allocation3], 81
  %v2845 = vld [vmem:[%s2844] ss:$2 sm:$0xff]
  %s2846 = scalar_lea.vmem [#allocation3], 97
  %v2847 = vld [vmem:[%s2846] ss:$2 sm:$0xff]
  %s2848 = scalar_lea.vmem [#allocation3], 113
  %v2849 = vld [vmem:[%s2848] ss:$2 sm:$0xff]
  %s2850 = scalar_lea.vmem [#allocation3], 129
  %v2851 = vld [vmem:[%s2850] ss:$2 sm:$0xff]
  %s2852 = scalar_lea.vmem [#allocation3], 145
  %v2853 = vld [vmem:[%s2852] ss:$2 sm:$0xff]
  %s2854 = scalar_lea.vmem [#allocation3], 161
  %v2855 = vld [vmem:[%s2854] ss:$2 sm:$0xff]
  %s2856 = scalar_lea.vmem [#allocation3], 177
  %v2857 = vld [vmem:[%s2856] ss:$2 sm:$0xff]
  %s2858 = scalar_lea.vmem [#allocation3], 193
  %v2859 = vld [vmem:[%s2858] ss:$2 sm:$0xff]
  %s2860 = scalar_lea.vmem [#allocation3], 209
  %v2861 = vld [vmem:[%s2860] ss:$2 sm:$0xff]
  %s2862 = scalar_lea.vmem [#allocation3], 225
  %v2863 = vld [vmem:[%s2862] ss:$2 sm:$0xff]
  %s2864 = scalar_lea.vmem [#allocation3], 241
  %v2865 = vld [vmem:[%s2864] ss:$2 sm:$0xff]
  %v2866 = vmax.f32 %v2803, %v2835
  %v2867 = vmax.f32 %v2805, %v2837
  %v2868 = vmax.f32 %v2807, %v2839
  %v2869 = vmax.f32 %v2809, %v2841
  %v2870 = vmax.f32 %v2811, %v2843
  %v2871 = vmax.f32 %v2813, %v2845
  %v2872 = vmax.f32 %v2815, %v2847
  %v2873 = vmax.f32 %v2817, %v2849
  %v2874 = vmax.f32 %v2819, %v2851
  %v2875 = vmax.f32 %v2821, %v2853
  %v2876 = vmax.f32 %v2823, %v2855
  %v2877 = vmax.f32 %v2825, %v2857
  %v2878 = vmax.f32 %v2827, %v2859
  %v2879 = vmax.f32 %v2829, %v2861
  %v2880 = vmax.f32 %v2831, %v2863
  %v2881 = vmax.f32 %v2833, %v2865
  %2882 = vst [vmem:[#allocation4] sm:$0xff] %v2866
  %2883 = vst [vmem:[#allocation4 + $0x8] sm:$0xff] %v2867
  %2884 = vst [vmem:[#allocation4 + $0x10] sm:$0xff] %v2868
  %2885 = vst [vmem:[#allocation4 + $0x18] sm:$0xff] %v2869
  %2886 = vst [vmem:[#allocation4 + $0x20] sm:$0xff] %v2870
  %2887 = vst [vmem:[#allocation4 + $0x28] sm:$0xff] %v2871
  %2888 = vst [vmem:[#allocation4 + $0x30] sm:$0xff] %v2872
  %2889 = vst [vmem:[#allocation4 + $0x38] sm:$0xff] %v2873
  %2890 = vst [vmem:[#allocation4 + $0x40] sm:$0xff] %v2874
  %2891 = vst [vmem:[#allocation4 + $0x48] sm:$0xff] %v2875
  %2892 = vst [vmem:[#allocation4 + $0x50] sm:$0xff] %v2876
  %2893 = vst [vmem:[#allocation4 + $0x58] sm:$0xff] %v2877
  %2894 = vst [vmem:[#allocation4 + $0x60] sm:$0xff] %v2878
  %2895 = vst [vmem:[#allocation4 + $0x68] sm:$0xff] %v2879
  %2896 = vst [vmem:[#allocation4 + $0x70] sm:$0xff] %v2880
  %2897 = vst [vmem:[#allocation4 + $0x78] sm:$0xff] %v2881
  %v2898 = vld [vmem:[#allocation4] sm:$0xff]
  %v2899 = vld [vmem:[#allocation4 + $0x8] sm:$0xff]
  %v2900 = vld [vmem:[#allocation4 + $0x10] sm:$0xff]
  %v2901 = vld [vmem:[#allocation4 + $0x18] sm:$0xff]
  %v2902 = vld [vmem:[#allocation4 + $0x20] sm:$0xff]
  %v2903 = vld [vmem:[#allocation4 + $0x28] sm:$0xff]
  %v2904 = vld [vmem:[#allocation4 + $0x30] sm:$0xff]
  %v2905 = vld [vmem:[#allocation4 + $0x38] sm:$0xff]
  %v2906 = vld [vmem:[#allocation4 + $0x40] sm:$0xff]
  %v2907 = vld [vmem:[#allocation4 + $0x48] sm:$0xff]
  %v2908 = vld [vmem:[#allocation4 + $0x50] sm:$0xff]
  %v2909 = vld [vmem:[#allocation4 + $0x58] sm:$0xff]
  %v2910 = vld [vmem:[#allocation4 + $0x60] sm:$0xff]
  %v2911 = vld [vmem:[#allocation4 + $0x68] sm:$0xff]
  %v2912 = vld [vmem:[#allocation4 + $0x70] sm:$0xff]
  %v2913 = vld [vmem:[#allocation4 + $0x78] sm:$0xf]
  %v2914 = vpack.c.bf16 %v2899, %v2898
  %v2915 = vpack.c.bf16 %v2901, %v2900
  %v2916 = vpack.c.bf16 %v2903, %v2902
  %v2917 = vpack.c.bf16 %v2905, %v2904
  %v2918 = vpack.c.bf16 %v2907, %v2906
  %v2919 = vpack.c.bf16 %v2909, %v2908
  %v2920 = vpack.c.bf16 %v2911, %v2910
  %v2921 = vpack.c.bf16 %v2913, %v2912
  %v2922 = vld [vmem:[%s3] sm:$0xff]
  %v2923 = vld [vmem:[%s3 + $0x8] sm:$0xff]
  %v2924 = vld [vmem:[%s3 + $0x10] sm:$0xff]
  %v2925 = vld [vmem:[%s3 + $0x18] sm:$0xff]
  %v2926 = vld [vmem:[%s3 + $0x20] sm:$0xff]
  %v2927 = vld [vmem:[%s3 + $0x28] sm:$0xff]
  %v2928 = vld [vmem:[%s3 + $0x30] sm:$0xff]
  %v2929 = vld [vmem:[%s3 + $0x38] sm:$0xff]
  %v2930 = vld [vmem:[%s3 + $0x40] sm:$0xff]
  %v2931 = vld [vmem:[%s3 + $0x48] sm:$0xff]
  %v2932 = vld [vmem:[%s3 + $0x50] sm:$0xff]
  %v2933 = vld [vmem:[%s3 + $0x58] sm:$0xff]
  %v2934 = vld [vmem:[%s3 + $0x60] sm:$0xff]
  %v2935 = vld [vmem:[%s3 + $0x68] sm:$0xff]
  %v2936 = vld [vmem:[%s3 + $0x70] sm:$0xff]
  %v2937 = vld [vmem:[%s3 + $0x78] sm:$0xff]
  %v2954 = vunpack.c.l.b16 %v2922
  %v2955 = vunpack.c.h.b16 %v2922
  %v2956 = vunpack.c.l.b16 %v2923
  %v2957 = vunpack.c.h.b16 %v2923
  %v2958 = vunpack.c.l.b16 %v2924
  %v2959 = vunpack.c.h.b16 %v2924
  %v2960 = vunpack.c.l.b16 %v2925
  %v2961 = vunpack.c.h.b16 %v2925
  %v2962 = vunpack.c.l.b16 %v2926
  %v2963 = vunpack.c.h.b16 %v2926
  %v2964 = vunpack.c.l.b16 %v2927
  %v2965 = vunpack.c.h.b16 %v2927
  %v2966 = vunpack.c.l.b16 %v2928
  %v2967 = vunpack.c.h.b16 %v2928
  %v2968 = vunpack.c.l.b16 %v2929
  %v2969 = vunpack.c.h.b16 %v2929
  %v2970 = vunpack.c.l.b16 %v2930
  %v2971 = vunpack.c.h.b16 %v2930
  %v2972 = vunpack.c.l.b16 %v2931
  %v2973 = vunpack.c.h.b16 %v2931
  %v2974 = vunpack.c.l.b16 %v2932
  %v2975 = vunpack.c.h.b16 %v2932
  %v2976 = vunpack.c.l.b16 %v2933
  %v2977 = vunpack.c.h.b16 %v2933
  %v2978 = vunpack.c.l.b16 %v2934
  %v2979 = vunpack.c.h.b16 %v2934
  %v2980 = vunpack.c.l.b16 %v2935
  %v2981 = vunpack.c.h.b16 %v2935
  %v2982 = vunpack.c.l.b16 %v2936
  %v2983 = vunpack.c.h.b16 %v2936
  %v2984 = vunpack.c.l.b16 %v2937
  %v2985 = vunpack.c.h.b16 %v2937
  %v2986 = vpack.c.b16 %v2956, %v2954
  %v2987 = vpack.c.b16 %v2957, %v2955
  %v2988 = vpack.c.b16 %v2960, %v2958
  %v2989 = vpack.c.b16 %v2961, %v2959
  %v2990 = vpack.c.b16 %v2964, %v2962
  %v2991 = vpack.c.b16 %v2965, %v2963
  %v2992 = vpack.c.b16 %v2968, %v2966
  %v2993 = vpack.c.b16 %v2969, %v2967
  %v2994 = vpack.c.b16 %v2972, %v2970
  %v2995 = vpack.c.b16 %v2973, %v2971
  %v2996 = vpack.c.b16 %v2976, %v2974
  %v2997 = vpack.c.b16 %v2977, %v2975
  %v2998 = vpack.c.b16 %v2980, %v2978
  %v2999 = vpack.c.b16 %v2981, %v2979
  %v3000 = vpack.c.b16 %v2984, %v2982
  %v3001 = vpack.c.b16 %v2985, %v2983
  %3018 = vmatpush.bf16.msra.mxu0 %v3000
  %3019 = vmatpush.bf16.msra.mxu0 %v2998
  %3020 = vmatpush.bf16.msra.mxu0 %v2996
  %3021 = vmatpush.bf16.msra.mxu0 %v2994
  %3022 = vmatpush.bf16.msra.mxu0 %v2992
  %3023 = vmatpush.bf16.msra.mxu0 %v2990
  %3024 = vmatpush.bf16.msra.mxu0 %v2988
  %3025 = vmatpush.bf16.msra.mxu0 %v2986
  %3026 = vmatmul.bf16.gmra.mxu0 %v2914
  %v3027 = vpop.f32.mrf.mxu0
  %v3028 = vadd.f32 0.0, %v3027
  %v3029 = vpop.f32.mrf.mxu0
  %v3030 = vadd.f32 0.0, %v3029
  %3031 = vmatmul.bf16.gmra.mxu0 %v2915
  %v3032 = vpop.f32.mrf.mxu0
  %v3033 = vadd.f32 0.0, %v3032
  %v3034 = vpop.f32.mrf.mxu0
  %v3035 = vadd.f32 0.0, %v3034
  %3036 = vmatmul.bf16.gmra.mxu0 %v2916
  %v3037 = vpop.f32.mrf.mxu0
  %v3038 = vadd.f32 0.0, %v3037
  %v3039 = vpop.f32.mrf.mxu0
  %v3040 = vadd.f32 0.0, %v3039
  %3041 = vmatmul.bf16.gmra.mxu0 %v2917
  %v3042 = vpop.f32.mrf.mxu0
  %v3043 = vadd.f32 0.0, %v3042
  %v3044 = vpop.f32.mrf.mxu0
  %v3045 = vadd.f32 0.0, %v3044
  %3046 = vmatmul.bf16.gmra.mxu0 %v2918
  %v3047 = vpop.f32.mrf.mxu0
  %v3048 = vadd.f32 0.0, %v3047
  %v3049 = vpop.f32.mrf.mxu0
  %v3050 = vadd.f32 0.0, %v3049
  %3051 = vmatmul.bf16.gmra.mxu0 %v2919
  %v3052 = vpop.f32.mrf.mxu0
  %v3053 = vadd.f32 0.0, %v3052
  %v3054 = vpop.f32.mrf.mxu0
  %v3055 = vadd.f32 0.0, %v3054
  %3056 = vmatmul.bf16.gmra.mxu0 %v2920
  %v3057 = vpop.f32.mrf.mxu0
  %v3058 = vadd.f32 0.0, %v3057
  %v3059 = vpop.f32.mrf.mxu0
  %v3060 = vadd.f32 0.0, %v3059
  %3061 = vmatmul.bf16.gmra.mxu0 %v2921
  %v3062 = vpop.f32.mrf.mxu0
  %v3063 = vadd.f32 0.0, %v3062
  %v3064 = vpop.f32.mrf.mxu0
  %v3065 = vadd.f32 0.0, %v3064
  %3066 = vdwg.mxu0
  %3067 = vmatpush.bf16.msra.mxu0 %v3001
  %3068 = vmatpush.bf16.msra.mxu0 %v2999
  %3069 = vmatpush.bf16.msra.mxu0 %v2997
  %3070 = vmatpush.bf16.msra.mxu0 %v2995
  %3071 = vmatpush.bf16.msra.mxu0 %v2993
  %3072 = vmatpush.bf16.msra.mxu0 %v2991
  %3073 = vmatpush.bf16.msra.mxu0 %v2989
  %3074 = vmatpush.bf16.msra.mxu0 %v2987
  %3075 = vmatmul.bf16.gmra.mxu0 %v2914
  %v3076 = vpop.f32.mrf.mxu0
  %v3077 = vadd.f32 0.0, %v3076
  %v3078 = vpop.f32.mrf.mxu0
  %v3079 = vadd.f32 0.0, %v3078
  %3080 = vmatmul.bf16.gmra.mxu0 %v2915
  %v3081 = vpop.f32.mrf.mxu0
  %v3082 = vadd.f32 0.0, %v3081
  %v3083 = vpop.f32.mrf.mxu0
  %v3084 = vadd.f32 0.0, %v3083
  %3085 = vmatmul.bf16.gmra.mxu0 %v2916
  %v3086 = vpop.f32.mrf.mxu0
  %v3087 = vadd.f32 0.0, %v3086
  %v3088 = vpop.f32.mrf.mxu0
  %v3089 = vadd.f32 0.0, %v3088
  %3090 = vmatmul.bf16.gmra.mxu0 %v2917
  %v3091 = vpop.f32.mrf.mxu0
  %v3092 = vadd.f32 0.0, %v3091
  %v3093 = vpop.f32.mrf.mxu0
  %v3094 = vadd.f32 0.0, %v3093
  %3095 = vmatmul.bf16.gmra.mxu0 %v2918
  %v3096 = vpop.f32.mrf.mxu0
  %v3097 = vadd.f32 0.0, %v3096
  %v3098 = vpop.f32.mrf.mxu0
  %v3099 = vadd.f32 0.0, %v3098
  %3100 = vmatmul.bf16.gmra.mxu0 %v2919
  %v3101 = vpop.f32.mrf.mxu0
  %v3102 = vadd.f32 0.0, %v3101
  %v3103 = vpop.f32.mrf.mxu0
  %v3104 = vadd.f32 0.0, %v3103
  %3105 = vmatmul.bf16.gmra.mxu0 %v2920
  %v3106 = vpop.f32.mrf.mxu0
  %v3107 = vadd.f32 0.0, %v3106
  %v3108 = vpop.f32.mrf.mxu0
  %v3109 = vadd.f32 0.0, %v3108
  %3110 = vmatmul.bf16.gmra.mxu0 %v2921
  %v3111 = vpop.f32.mrf.mxu0
  %v3112 = vadd.f32 0.0, %v3111
  %v3113 = vpop.f32.mrf.mxu0
  %v3114 = vadd.f32 0.0, %v3113
  %3115 = vdwg.mxu0
  %3116 = vst [vmem:[#allocation2] sm:$0xff] %v3028
  %3117 = vst [vmem:[#allocation2 + $0x8] sm:$0xff] %v3077
  %3118 = vst [vmem:[#allocation2 + $0x10] sm:$0xff] %v3030
  %3119 = vst [vmem:[#allocation2 + $0x18] sm:$0xff] %v3079
  %3120 = vst [vmem:[#allocation2 + $0x20] sm:$0xff] %v3033
  %3121 = vst [vmem:[#allocation2 + $0x28] sm:$0xff] %v3082
  %3122 = vst [vmem:[#allocation2 + $0x30] sm:$0xff] %v3035
  %3123 = vst [vmem:[#allocation2 + $0x38] sm:$0xff] %v3084
  %3124 = vst [vmem:[#allocation2 + $0x40] sm:$0xff] %v3038
  %3125 = vst [vmem:[#allocation2 + $0x48] sm:$0xff] %v3087
  %3126 = vst [vmem:[#allocation2 + $0x50] sm:$0xff] %v3040
  %3127 = vst [vmem:[#allocation2 + $0x58] sm:$0xff] %v3089
  %3128 = vst [vmem:[#allocation2 + $0x60] sm:$0xff] %v3043
  %3129 = vst [vmem:[#allocation2 + $0x68] sm:$0xff] %v3092
  %3130 = vst [vmem:[#allocation2 + $0x70] sm:$0xff] %v3045
  %3131 = vst [vmem:[#allocation2 + $0x78] sm:$0xff] %v3094
  %3132 = vst [vmem:[#allocation2 + $0x80] sm:$0xff] %v3048
  %3133 = vst [vmem:[#allocation2 + $0x88] sm:$0xff] %v3097
  %3134 = vst [vmem:[#allocation2 + $0x90] sm:$0xff] %v3050
  %3135 = vst [vmem:[#allocation2 + $0x98] sm:$0xff] %v3099
  %3136 = vst [vmem:[#allocation2 + $0xa0] sm:$0xff] %v3053
  %3137 = vst [vmem:[#allocation2 + $0xa8] sm:$0xff] %v3102
  %3138 = vst [vmem:[#allocation2 + $0xb0] sm:$0xff] %v3055
  %3139 = vst [vmem:[#allocation2 + $0xb8] sm:$0xff] %v3104
  %3140 = vst [vmem:[#allocation2 + $0xc0] sm:$0xff] %v3058
  %3141 = vst [vmem:[#allocation2 + $0xc8] sm:$0xff] %v3107
  %3142 = vst [vmem:[#allocation2 + $0xd0] sm:$0xff] %v3060
  %3143 = vst [vmem:[#allocation2 + $0xd8] sm:$0xff] %v3109
  %3144 = vst [vmem:[#allocation2 + $0xe0] sm:$0xff] %v3063
  %3145 = vst [vmem:[#allocation2 + $0xe8] sm:$0xff] %v3112
  %3146 = vst [vmem:[#allocation2 + $0xf0] sm:$0xf] %v3065
  %3147 = vst [vmem:[#allocation2 + $0xf8] sm:$0xf] %v3114
  %v3148 = vld [vmem:[#allocation4 + $0x1] sm:$0xff]
  %v3149 = vld [vmem:[#allocation4 + $0x9] sm:$0xff]
  %v3150 = vld [vmem:[#allocation4 + $0x11] sm:$0xff]
  %v3151 = vld [vmem:[#allocation4 + $0x19] sm:$0xff]
  %v3152 = vld [vmem:[#allocation4 + $0x21] sm:$0xff]
  %v3153 = vld [vmem:[#allocation4 + $0x29] sm:$0xff]
  %v3154 = vld [vmem:[#allocation4 + $0x31] sm:$0xff]
  %v3155 = vld [vmem:[#allocation4 + $0x39] sm:$0xff]
  %v3156 = vld [vmem:[#allocation4 + $0x41] sm:$0xff]
  %v3157 = vld [vmem:[#allocation4 + $0x49] sm:$0xff]
  %v3158 = vld [vmem:[#allocation4 + $0x51] sm:$0xff]
  %v3159 = vld [vmem:[#allocation4 + $0x59] sm:$0xff]
  %v3160 = vld [vmem:[#allocation4 + $0x61] sm:$0xff]
  %v3161 = vld [vmem:[#allocation4 + $0x69] sm:$0xff]
  %v3162 = vld [vmem:[#allocation4 + $0x71] sm:$0xff]
  %v3163 = vld [vmem:[#allocation4 + $0x79] sm:$0xf]
  %v3164 = vpack.c.bf16 %v3149, %v3148
  %v3165 = vpack.c.bf16 %v3151, %v3150
  %v3166 = vpack.c.bf16 %v3153, %v3152
  %v3167 = vpack.c.bf16 %v3155, %v3154
  %v3168 = vpack.c.bf16 %v3157, %v3156
  %v3169 = vpack.c.bf16 %v3159, %v3158
  %v3170 = vpack.c.bf16 %v3161, %v3160
  %v3171 = vpack.c.bf16 %v3163, %v3162
  %s3172 = scalar_lea.vmem %s3, 128
  %v3173 = vld [vmem:[%s3172] sm:$0xff]
  %v3174 = vld [vmem:[%s3172 + $0x8] sm:$0xff]
  %v3175 = vld [vmem:[%s3172 + $0x10] sm:$0xff]
  %v3176 = vld [vmem:[%s3172 + $0x18] sm:$0xff]
  %v3177 = vld [vmem:[%s3172 + $0x20] sm:$0xff]
  %v3178 = vld [vmem:[%s3172 + $0x28] sm:$0xff]
  %v3179 = vld [vmem:[%s3172 + $0x30] sm:$0xff]
  %v3180 = vld [vmem:[%s3172 + $0x38] sm:$0xff]
  %v3181 = vld [vmem:[%s3172 + $0x40] sm:$0xff]
  %v3182 = vld [vmem:[%s3172 + $0x48] sm:$0xff]
  %v3183 = vld [vmem:[%s3172 + $0x50] sm:$0xff]
  %v3184 = vld [vmem:[%s3172 + $0x58] sm:$0xff]
  %v3185 = vld [vmem:[%s3172 + $0x60] sm:$0xff]
  %v3186 = vld [vmem:[%s3172 + $0x68] sm:$0xff]
  %v3187 = vld [vmem:[%s3172 + $0x70] sm:$0xff]
  %v3188 = vld [vmem:[%s3172 + $0x78] sm:$0xff]
  %v3205 = vunpack.c.l.b16 %v3173
  %v3206 = vunpack.c.h.b16 %v3173
  %v3207 = vunpack.c.l.b16 %v3174
  %v3208 = vunpack.c.h.b16 %v3174
  %v3209 = vunpack.c.l.b16 %v3175
  %v3210 = vunpack.c.h.b16 %v3175
  %v3211 = vunpack.c.l.b16 %v3176
  %v3212 = vunpack.c.h.b16 %v3176
  %v3213 = vunpack.c.l.b16 %v3177
  %v3214 = vunpack.c.h.b16 %v3177
  %v3215 = vunpack.c.l.b16 %v3178
  %v3216 = vunpack.c.h.b16 %v3178
  %v3217 = vunpack.c.l.b16 %v3179
  %v3218 = vunpack.c.h.b16 %v3179
  %v3219 = vunpack.c.l.b16 %v3180
  %v3220 = vunpack.c.h.b16 %v3180
  %v3221 = vunpack.c.l.b16 %v3181
  %v3222 = vunpack.c.h.b16 %v3181
  %v3223 = vunpack.c.l.b16 %v3182
  %v3224 = vunpack.c.h.b16 %v3182
  %v3225 = vunpack.c.l.b16 %v3183
  %v3226 = vunpack.c.h.b16 %v3183
  %v3227 = vunpack.c.l.b16 %v3184
  %v3228 = vunpack.c.h.b16 %v3184
  %v3229 = vunpack.c.l.b16 %v3185
  %v3230 = vunpack.c.h.b16 %v3185
  %v3231 = vunpack.c.l.b16 %v3186
  %v3232 = vunpack.c.h.b16 %v3186
  %v3233 = vunpack.c.l.b16 %v3187
  %v3234 = vunpack.c.h.b16 %v3187
  %v3235 = vunpack.c.l.b16 %v3188
  %v3236 = vunpack.c.h.b16 %v3188
  %v3237 = vpack.c.b16 %v3207, %v3205
  %v3238 = vpack.c.b16 %v3208, %v3206
  %v3239 = vpack.c.b16 %v3211, %v3209
  %v3240 = vpack.c.b16 %v3212, %v3210
  %v3241 = vpack.c.b16 %v3215, %v3213
  %v3242 = vpack.c.b16 %v3216, %v3214
  %v3243 = vpack.c.b16 %v3219, %v3217
  %v3244 = vpack.c.b16 %v3220, %v3218
  %v3245 = vpack.c.b16 %v3223, %v3221
  %v3246 = vpack.c.b16 %v3224, %v3222
  %v3247 = vpack.c.b16 %v3227, %v3225
  %v3248 = vpack.c.b16 %v3228, %v3226
  %v3249 = vpack.c.b16 %v3231, %v3229
  %v3250 = vpack.c.b16 %v3232, %v3230
  %v3251 = vpack.c.b16 %v3235, %v3233
  %v3252 = vpack.c.b16 %v3236, %v3234
  %3269 = vmatpush.bf16.msra.mxu0 %v3251
  %3270 = vmatpush.bf16.msra.mxu0 %v3249
  %3271 = vmatpush.bf16.msra.mxu0 %v3247
  %3272 = vmatpush.bf16.msra.mxu0 %v3245
  %3273 = vmatpush.bf16.msra.mxu0 %v3243
  %3274 = vmatpush.bf16.msra.mxu0 %v3241
  %3275 = vmatpush.bf16.msra.mxu0 %v3239
  %3276 = vmatpush.bf16.msra.mxu0 %v3237
  %3277 = vmatmul.bf16.gmra.mxu0 %v3164
  %v3278 = vpop.f32.mrf.mxu0
  %v3279 = vadd.f32 0.0, %v3278
  %v3280 = vpop.f32.mrf.mxu0
  %v3281 = vadd.f32 0.0, %v3280
  %3282 = vmatmul.bf16.gmra.mxu0 %v3165
  %v3283 = vpop.f32.mrf.mxu0
  %v3284 = vadd.f32 0.0, %v3283
  %v3285 = vpop.f32.mrf.mxu0
  %v3286 = vadd.f32 0.0, %v3285
  %3287 = vmatmul.bf16.gmra.mxu0 %v3166
  %v3288 = vpop.f32.mrf.mxu0
  %v3289 = vadd.f32 0.0, %v3288
  %v3290 = vpop.f32.mrf.mxu0
  %v3291 = vadd.f32 0.0, %v3290
  %3292 = vmatmul.bf16.gmra.mxu0 %v3167
  %v3293 = vpop.f32.mrf.mxu0
  %v3294 = vadd.f32 0.0, %v3293
  %v3295 = vpop.f32.mrf.mxu0
  %v3296 = vadd.f32 0.0, %v3295
  %3297 = vmatmul.bf16.gmra.mxu0 %v3168
  %v3298 = vpop.f32.mrf.mxu0
  %v3299 = vadd.f32 0.0, %v3298
  %v3300 = vpop.f32.mrf.mxu0
  %v3301 = vadd.f32 0.0, %v3300
  %3302 = vmatmul.bf16.gmra.mxu0 %v3169
  %v3303 = vpop.f32.mrf.mxu0
  %v3304 = vadd.f32 0.0, %v3303
  %v3305 = vpop.f32.mrf.mxu0
  %v3306 = vadd.f32 0.0, %v3305
  %3307 = vmatmul.bf16.gmra.mxu0 %v3170
  %v3308 = vpop.f32.mrf.mxu0
  %v3309 = vadd.f32 0.0, %v3308
  %v3310 = vpop.f32.mrf.mxu0
  %v3311 = vadd.f32 0.0, %v3310
  %3312 = vmatmul.bf16.gmra.mxu0 %v3171
  %v3313 = vpop.f32.mrf.mxu0
  %v3314 = vadd.f32 0.0, %v3313
  %v3315 = vpop.f32.mrf.mxu0
  %v3316 = vadd.f32 0.0, %v3315
  %3317 = vdwg.mxu0
  %3318 = vmatpush.bf16.msra.mxu0 %v3252
  %3319 = vmatpush.bf16.msra.mxu0 %v3250
  %3320 = vmatpush.bf16.msra.mxu0 %v3248
  %3321 = vmatpush.bf16.msra.mxu0 %v3246
  %3322 = vmatpush.bf16.msra.mxu0 %v3244
  %3323 = vmatpush.bf16.msra.mxu0 %v3242
  %3324 = vmatpush.bf16.msra.mxu0 %v3240
  %3325 = vmatpush.bf16.msra.mxu0 %v3238
  %3326 = vmatmul.bf16.gmra.mxu0 %v3164
  %v3327 = vpop.f32.mrf.mxu0
  %v3328 = vadd.f32 0.0, %v3327
  %v3329 = vpop.f32.mrf.mxu0
  %v3330 = vadd.f32 0.0, %v3329
  %3331 = vmatmul.bf16.gmra.mxu0 %v3165
  %v3332 = vpop.f32.mrf.mxu0
  %v3333 = vadd.f32 0.0, %v3332
  %v3334 = vpop.f32.mrf.mxu0
  %v3335 = vadd.f32 0.0, %v3334
  %3336 = vmatmul.bf16.gmra.mxu0 %v3166
  %v3337 = vpop.f32.mrf.mxu0
  %v3338 = vadd.f32 0.0, %v3337
  %v3339 = vpop.f32.mrf.mxu0
  %v3340 = vadd.f32 0.0, %v3339
  %3341 = vmatmul.bf16.gmra.mxu0 %v3167
  %v3342 = vpop.f32.mrf.mxu0
  %v3343 = vadd.f32 0.0, %v3342
  %v3344 = vpop.f32.mrf.mxu0
  %v3345 = vadd.f32 0.0, %v3344
  %3346 = vmatmul.bf16.gmra.mxu0 %v3168
  %v3347 = vpop.f32.mrf.mxu0
  %v3348 = vadd.f32 0.0, %v3347
  %v3349 = vpop.f32.mrf.mxu0
  %v3350 = vadd.f32 0.0, %v3349
  %3351 = vmatmul.bf16.gmra.mxu0 %v3169
  %v3352 = vpop.f32.mrf.mxu0
  %v3353 = vadd.f32 0.0, %v3352
  %v3354 = vpop.f32.mrf.mxu0
  %v3355 = vadd.f32 0.0, %v3354
  %3356 = vmatmul.bf16.gmra.mxu0 %v3170
  %v3357 = vpop.f32.mrf.mxu0
  %v3358 = vadd.f32 0.0, %v3357
  %v3359 = vpop.f32.mrf.mxu0
  %v3360 = vadd.f32 0.0, %v3359
  %3361 = vmatmul.bf16.gmra.mxu0 %v3171
  %v3362 = vpop.f32.mrf.mxu0
  %v3363 = vadd.f32 0.0, %v3362
  %v3364 = vpop.f32.mrf.mxu0
  %v3365 = vadd.f32 0.0, %v3364
  %3366 = vdwg.mxu0
  %v3367 = vld [vmem:[#allocation2] sm:$0xff]
  %v3368 = vld [vmem:[#allocation2 + $0x8] sm:$0xff]
  %v3369 = vld [vmem:[#allocation2 + $0x10] sm:$0xff]
  %v3370 = vld [vmem:[#allocation2 + $0x18] sm:$0xff]
  %v3371 = vld [vmem:[#allocation2 + $0x20] sm:$0xff]
  %v3372 = vld [vmem:[#allocation2 + $0x28] sm:$0xff]
  %v3373 = vld [vmem:[#allocation2 + $0x30] sm:$0xff]
  %v3374 = vld [vmem:[#allocation2 + $0x38] sm:$0xff]
  %v3375 = vld [vmem:[#allocation2 + $0x40] sm:$0xff]
  %v3376 = vld [vmem:[#allocation2 + $0x48] sm:$0xff]
  %v3377 = vld [vmem:[#allocation2 + $0x50] sm:$0xff]
  %v3378 = vld [vmem:[#allocation2 + $0x58] sm:$0xff]
  %v3379 = vld [vmem:[#allocation2 + $0x60] sm:$0xff]
  %v3380 = vld [vmem:[#allocation2 + $0x68] sm:$0xff]
  %v3381 = vld [vmem:[#allocation2 + $0x70] sm:$0xff]
  %v3382 = vld [vmem:[#allocation2 + $0x78] sm:$0xff]
  %v3383 = vld [vmem:[#allocation2 + $0x80] sm:$0xff]
  %v3384 = vld [vmem:[#allocation2 + $0x88] sm:$0xff]
  %v3385 = vld [vmem:[#allocation2 + $0x90] sm:$0xff]
  %v3386 = vld [vmem:[#allocation2 + $0x98] sm:$0xff]
  %v3387 = vld [vmem:[#allocation2 + $0xa0] sm:$0xff]
  %v3388 = vld [vmem:[#allocation2 + $0xa8] sm:$0xff]
  %v3389 = vld [vmem:[#allocation2 + $0xb0] sm:$0xff]
  %v3390 = vld [vmem:[#allocation2 + $0xb8] sm:$0xff]
  %v3391 = vld [vmem:[#allocation2 + $0xc0] sm:$0xff]
  %v3392 = vld [vmem:[#allocation2 + $0xc8] sm:$0xff]
  %v3393 = vld [vmem:[#allocation2 + $0xd0] sm:$0xff]
  %v3394 = vld [vmem:[#allocation2 + $0xd8] sm:$0xff]
  %v3395 = vld [vmem:[#allocation2 + $0xe0] sm:$0xff]
  %v3396 = vld [vmem:[#allocation2 + $0xe8] sm:$0xff]
  %v3397 = vld [vmem:[#allocation2 + $0xf0] sm:$0xf]
  %v3398 = vld [vmem:[#allocation2 + $0xf8] sm:$0xf]
  %v3399 = vadd.f32 %v3367, %v3279
  %v3400 = vadd.f32 %v3368, %v3328
  %v3401 = vadd.f32 %v3369, %v3281
  %v3402 = vadd.f32 %v3370, %v3330
  %v3403 = vadd.f32 %v3371, %v3284
  %v3404 = vadd.f32 %v3372, %v3333
  %v3405 = vadd.f32 %v3373, %v3286
  %v3406 = vadd.f32 %v3374, %v3335
  %v3407 = vadd.f32 %v3375, %v3289
  %v3408 = vadd.f32 %v3376, %v3338
  %v3409 = vadd.f32 %v3377, %v3291
  %v3410 = vadd.f32 %v3378, %v3340
  %v3411 = vadd.f32 %v3379, %v3294
  %v3412 = vadd.f32 %v3380, %v3343
  %v3413 = vadd.f32 %v3381, %v3296
  %v3414 = vadd.f32 %v3382, %v3345
  %v3415 = vadd.f32 %v3383, %v3299
  %v3416 = vadd.f32 %v3384, %v3348
  %v3417 = vadd.f32 %v3385, %v3301
  %v3418 = vadd.f32 %v3386, %v3350
  %v3419 = vadd.f32 %v3387, %v3304
  %v3420 = vadd.f32 %v3388, %v3353
  %v3421 = vadd.f32 %v3389, %v3306
  %v3422 = vadd.f32 %v3390, %v3355
  %v3423 = vadd.f32 %v3391, %v3309
  %v3424 = vadd.f32 %v3392, %v3358
  %v3425 = vadd.f32 %v3393, %v3311
  %v3426 = vadd.f32 %v3394, %v3360
  %v3427 = vadd.f32 %v3395, %v3314
  %v3428 = vadd.f32 %v3396, %v3363
  %v3429 = vadd.f32 %v3397, %v3316
  %v3430 = vadd.f32 %v3398, %v3365
  %3431 = vst [vmem:[#allocation2] sm:$0xff] %v3399
  %3432 = vst [vmem:[#allocation2 + $0x8] sm:$0xff] %v3400
  %3433 = vst [vmem:[#allocation2 + $0x10] sm:$0xff] %v3401
  %3434 = vst [vmem:[#allocation2 + $0x18] sm:$0xff] %v3402
  %3435 = vst [vmem:[#allocation2 + $0x20] sm:$0xff] %v3403
  %3436 = vst [vmem:[#allocation2 + $0x28] sm:$0xff] %v3404
  %3437 = vst [vmem:[#allocation2 + $0x30] sm:$0xff] %v3405
  %3438 = vst [vmem:[#allocation2 + $0x38] sm:$0xff] %v3406
  %3439 = vst [vmem:[#allocation2 + $0x40] sm:$0xff] %v3407
  %3440 = vst [vmem:[#allocation2 + $0x48] sm:$0xff] %v3408
  %3441 = vst [vmem:[#allocation2 + $0x50] sm:$0xff] %v3409
  %3442 = vst [vmem:[#allocation2 + $0x58] sm:$0xff] %v3410
  %3443 = vst [vmem:[#allocation2 + $0x60] sm:$0xff] %v3411
  %3444 = vst [vmem:[#allocation2 + $0x68] sm:$0xff] %v3412
  %3445 = vst [vmem:[#allocation2 + $0x70] sm:$0xff] %v3413
  %3446 = vst [vmem:[#allocation2 + $0x78] sm:$0xff] %v3414
  %3447 = vst [vmem:[#allocation2 + $0x80] sm:$0xff] %v3415
  %3448 = vst [vmem:[#allocation2 + $0x88] sm:$0xff] %v3416
  %3449 = vst [vmem:[#allocation2 + $0x90] sm:$0xff] %v3417
  %3450 = vst [vmem:[#allocation2 + $0x98] sm:$0xff] %v3418
  %3451 = vst [vmem:[#allocation2 + $0xa0] sm:$0xff] %v3419
  %3452 = vst [vmem:[#allocation2 + $0xa8] sm:$0xff] %v3420
  %3453 = vst [vmem:[#allocation2 + $0xb0] sm:$0xff] %v3421
  %3454 = vst [vmem:[#allocation2 + $0xb8] sm:$0xff] %v3422
  %3455 = vst [vmem:[#allocation2 + $0xc0] sm:$0xff] %v3423
  %3456 = vst [vmem:[#allocation2 + $0xc8] sm:$0xff] %v3424
  %3457 = vst [vmem:[#allocation2 + $0xd0] sm:$0xff] %v3425
  %3458 = vst [vmem:[#allocation2 + $0xd8] sm:$0xff] %v3426
  %3459 = vst [vmem:[#allocation2 + $0xe0] sm:$0xff] %v3427
  %3460 = vst [vmem:[#allocation2 + $0xe8] sm:$0xff] %v3428
  %3461 = vst [vmem:[#allocation2 + $0xf0] sm:$0xf] %v3429
  %3462 = vst [vmem:[#allocation2 + $0xf8] sm:$0xf] %v3430
  %v3463 = vld [vmem:[#allocation4 + $0x2] sm:$0xff]
  %v3464 = vld [vmem:[#allocation4 + $0xa] sm:$0xff]
  %v3465 = vld [vmem:[#allocation4 + $0x12] sm:$0xff]
  %v3466 = vld [vmem:[#allocation4 + $0x1a] sm:$0xff]
  %v3467 = vld [vmem:[#allocation4 + $0x22] sm:$0xff]
  %v3468 = vld [vmem:[#allocation4 + $0x2a] sm:$0xff]
  %v3469 = vld [vmem:[#allocation4 + $0x32] sm:$0xff]
  %v3470 = vld [vmem:[#allocation4 + $0x3a] sm:$0xff]
  %v3471 = vld [vmem:[#allocation4 + $0x42] sm:$0xff]
  %v3472 = vld [vmem:[#allocation4 + $0x4a] sm:$0xff]
  %v3473 = vld [vmem:[#allocation4 + $0x52] sm:$0xff]
  %v3474 = vld [vmem:[#allocation4 + $0x5a] sm:$0xff]
  %v3475 = vld [vmem:[#allocation4 + $0x62] sm:$0xff]
  %v3476 = vld [vmem:[#allocation4 + $0x6a] sm:$0xff]
  %v3477 = vld [vmem:[#allocation4 + $0x72] sm:$0xff]
  %v3478 = vld [vmem:[#allocation4 + $0x7a] sm:$0xf]
  %v3479 = vpack.c.bf16 %v3464, %v3463
  %v3480 = vpack.c.bf16 %v3466, %v3465
  %v3481 = vpack.c.bf16 %v3468, %v3467
  %v3482 = vpack.c.bf16 %v3470, %v3469
  %v3483 = vpack.c.bf16 %v3472, %v3471
  %v3484 = vpack.c.bf16 %v3474, %v3473
  %v3485 = vpack.c.bf16 %v3476, %v3475
  %v3486 = vpack.c.bf16 %v3478, %v3477
  %s3487 = scalar_lea.vmem %s3, 256
  %v3488 = vld [vmem:[%s3487] sm:$0xff]
  %v3489 = vld [vmem:[%s3487 + $0x8] sm:$0xff]
  %v3490 = vld [vmem:[%s3487 + $0x10] sm:$0xff]
  %v3491 = vld [vmem:[%s3487 + $0x18] sm:$0xff]
  %v3492 = vld [vmem:[%s3487 + $0x20] sm:$0xff]
  %v3493 = vld [vmem:[%s3487 + $0x28] sm:$0xff]
  %v3494 = vld [vmem:[%s3487 + $0x30] sm:$0xff]
  %v3495 = vld [vmem:[%s3487 + $0x38] sm:$0xff]
  %v3496 = vld [vmem:[%s3487 + $0x40] sm:$0xff]
  %v3497 = vld [vmem:[%s3487 + $0x48] sm:$0xff]
  %v3498 = vld [vmem:[%s3487 + $0x50] sm:$0xff]
  %v3499 = vld [vmem:[%s3487 + $0x58] sm:$0xff]
  %v3500 = vld [vmem:[%s3487 + $0x60] sm:$0xff]
  %v3501 = vld [vmem:[%s3487 + $0x68] sm:$0xff]
  %v3502 = vld [vmem:[%s3487 + $0x70] sm:$0xff]
  %v3503 = vld [vmem:[%s3487 + $0x78] sm:$0xff]
  %v3520 = vunpack.c.l.b16 %v3488
  %v3521 = vunpack.c.h.b16 %v3488
  %v3522 = vunpack.c.l.b16 %v3489
  %v3523 = vunpack.c.h.b16 %v3489
  %v3524 = vunpack.c.l.b16 %v3490
  %v3525 = vunpack.c.h.b16 %v3490
  %v3526 = vunpack.c.l.b16 %v3491
  %v3527 = vunpack.c.h.b16 %v3491
  %v3528 = vunpack.c.l.b16 %v3492
  %v3529 = vunpack.c.h.b16 %v3492
  %v3530 = vunpack.c.l.b16 %v3493
  %v3531 = vunpack.c.h.b16 %v3493
  %v3532 = vunpack.c.l.b16 %v3494
  %v3533 = vunpack.c.h.b16 %v3494
  %v3534 = vunpack.c.l.b16 %v3495
  %v3535 = vunpack.c.h.b16 %v3495
  %v3536 = vunpack.c.l.b16 %v3496
  %v3537 = vunpack.c.h.b16 %v3496
  %v3538 = vunpack.c.l.b16 %v3497
  %v3539 = vunpack.c.h.b16 %v3497
  %v3540 = vunpack.c.l.b16 %v3498
  %v3541 = vunpack.c.h.b16 %v3498
  %v3542 = vunpack.c.l.b16 %v3499
  %v3543 = vunpack.c.h.b16 %v3499
  %v3544 = vunpack.c.l.b16 %v3500
  %v3545 = vunpack.c.h.b16 %v3500
  %v3546 = vunpack.c.l.b16 %v3501
  %v3547 = vunpack.c.h.b16 %v3501
  %v3548 = vunpack.c.l.b16 %v3502
  %v3549 = vunpack.c.h.b16 %v3502
  %v3550 = vunpack.c.l.b16 %v3503
  %v3551 = vunpack.c.h.b16 %v3503
  %v3552 = vpack.c.b16 %v3522, %v3520
  %v3553 = vpack.c.b16 %v3523, %v3521
  %v3554 = vpack.c.b16 %v3526, %v3524
  %v3555 = vpack.c.b16 %v3527, %v3525
  %v3556 = vpack.c.b16 %v3530, %v3528
  %v3557 = vpack.c.b16 %v3531, %v3529
  %v3558 = vpack.c.b16 %v3534, %v3532
  %v3559 = vpack.c.b16 %v3535, %v3533
  %v3560 = vpack.c.b16 %v3538, %v3536
  %v3561 = vpack.c.b16 %v3539, %v3537
  %v3562 = vpack.c.b16 %v3542, %v3540
  %v3563 = vpack.c.b16 %v3543, %v3541
  %v3564 = vpack.c.b16 %v3546, %v3544
  %v3565 = vpack.c.b16 %v3547, %v3545
  %v3566 = vpack.c.b16 %v3550, %v3548
  %v3567 = vpack.c.b16 %v3551, %v3549
  %3584 = vmatpush.bf16.msra.mxu0 %v3566
  %3585 = vmatpush.bf16.msra.mxu0 %v3564
  %3586 = vmatpush.bf16.msra.mxu0 %v3562
  %3587 = vmatpush.bf16.msra.mxu0 %v3560
  %3588 = vmatpush.bf16.msra.mxu0 %v3558
  %3589 = vmatpush.bf16.msra.mxu0 %v3556
  %3590 = vmatpush.bf16.msra.mxu0 %v3554
  %3591 = vmatpush.bf16.msra.mxu0 %v3552
  %3592 = vmatmul.bf16.gmra.mxu0 %v3479
  %v3593 = vpop.f32.mrf.mxu0
  %v3594 = vadd.f32 0.0, %v3593
  %v3595 = vpop.f32.mrf.mxu0
  %v3596 = vadd.f32 0.0, %v3595
  %3597 = vmatmul.bf16.gmra.mxu0 %v3480
  %v3598 = vpop.f32.mrf.mxu0
  %v3599 = vadd.f32 0.0, %v3598
  %v3600 = vpop.f32.mrf.mxu0
  %v3601 = vadd.f32 0.0, %v3600
  %3602 = vmatmul.bf16.gmra.mxu0 %v3481
  %v3603 = vpop.f32.mrf.mxu0
  %v3604 = vadd.f32 0.0, %v3603
  %v3605 = vpop.f32.mrf.mxu0
  %v3606 = vadd.f32 0.0, %v3605
  %3607 = vmatmul.bf16.gmra.mxu0 %v3482
  %v3608 = vpop.f32.mrf.mxu0
  %v3609 = vadd.f32 0.0, %v3608
  %v3610 = vpop.f32.mrf.mxu0
  %v3611 = vadd.f32 0.0, %v3610
  %3612 = vmatmul.bf16.gmra.mxu0 %v3483
  %v3613 = vpop.f32.mrf.mxu0
  %v3614 = vadd.f32 0.0, %v3613
  %v3615 = vpop.f32.mrf.mxu0
  %v3616 = vadd.f32 0.0, %v3615
  %3617 = vmatmul.bf16.gmra.mxu0 %v3484
  %v3618 = vpop.f32.mrf.mxu0
  %v3619 = vadd.f32 0.0, %v3618
  %v3620 = vpop.f32.mrf.mxu0
  %v3621 = vadd.f32 0.0, %v3620
  %3622 = vmatmul.bf16.gmra.mxu0 %v3485
  %v3623 = vpop.f32.mrf.mxu0
  %v3624 = vadd.f32 0.0, %v3623
  %v3625 = vpop.f32.mrf.mxu0
  %v3626 = vadd.f32 0.0, %v3625
  %3627 = vmatmul.bf16.gmra.mxu0 %v3486
  %v3628 = vpop.f32.mrf.mxu0
  %v3629 = vadd.f32 0.0, %v3628
  %v3630 = vpop.f32.mrf.mxu0
  %v3631 = vadd.f32 0.0, %v3630
  %3632 = vdwg.mxu0
  %3633 = vmatpush.bf16.msra.mxu0 %v3567
  %3634 = vmatpush.bf16.msra.mxu0 %v3565
  %3635 = vmatpush.bf16.msra.mxu0 %v3563
  %3636 = vmatpush.bf16.msra.mxu0 %v3561
  %3637 = vmatpush.bf16.msra.mxu0 %v3559
  %3638 = vmatpush.bf16.msra.mxu0 %v3557
  %3639 = vmatpush.bf16.msra.mxu0 %v3555
  %3640 = vmatpush.bf16.msra.mxu0 %v3553
  %3641 = vmatmul.bf16.gmra.mxu0 %v3479
  %v3642 = vpop.f32.mrf.mxu0
  %v3643 = vadd.f32 0.0, %v3642
  %v3644 = vpop.f32.mrf.mxu0
  %v3645 = vadd.f32 0.0, %v3644
  %3646 = vmatmul.bf16.gmra.mxu0 %v3480
  %v3647 = vpop.f32.mrf.mxu0
  %v3648 = vadd.f32 0.0, %v3647
  %v3649 = vpop.f32.mrf.mxu0
  %v3650 = vadd.f32 0.0, %v3649
  %3651 = vmatmul.bf16.gmra.mxu0 %v3481
  %v3652 = vpop.f32.mrf.mxu0
  %v3653 = vadd.f32 0.0, %v3652
  %v3654 = vpop.f32.mrf.mxu0
  %v3655 = vadd.f32 0.0, %v3654
  %3656 = vmatmul.bf16.gmra.mxu0 %v3482
  %v3657 = vpop.f32.mrf.mxu0
  %v3658 = vadd.f32 0.0, %v3657
  %v3659 = vpop.f32.mrf.mxu0
  %v3660 = vadd.f32 0.0, %v3659
  %3661 = vmatmul.bf16.gmra.mxu0 %v3483
  %v3662 = vpop.f32.mrf.mxu0
  %v3663 = vadd.f32 0.0, %v3662
  %v3664 = vpop.f32.mrf.mxu0
  %v3665 = vadd.f32 0.0, %v3664
  %3666 = vmatmul.bf16.gmra.mxu0 %v3484
  %v3667 = vpop.f32.mrf.mxu0
  %v3668 = vadd.f32 0.0, %v3667
  %v3669 = vpop.f32.mrf.mxu0
  %v3670 = vadd.f32 0.0, %v3669
  %3671 = vmatmul.bf16.gmra.mxu0 %v3485
  %v3672 = vpop.f32.mrf.mxu0
  %v3673 = vadd.f32 0.0, %v3672
  %v3674 = vpop.f32.mrf.mxu0
  %v3675 = vadd.f32 0.0, %v3674
  %3676 = vmatmul.bf16.gmra.mxu0 %v3486
  %v3677 = vpop.f32.mrf.mxu0
  %v3678 = vadd.f32 0.0, %v3677
  %v3679 = vpop.f32.mrf.mxu0
  %v3680 = vadd.f32 0.0, %v3679
  %3681 = vdwg.mxu0
  %v3682 = vld [vmem:[#allocation2] sm:$0xff]
  %v3683 = vld [vmem:[#allocation2 + $0x8] sm:$0xff]
  %v3684 = vld [vmem:[#allocation2 + $0x10] sm:$0xff]
  %v3685 = vld [vmem:[#allocation2 + $0x18] sm:$0xff]
  %v3686 = vld [vmem:[#allocation2 + $0x20] sm:$0xff]
  %v3687 = vld [vmem:[#allocation2 + $0x28] sm:$0xff]
  %v3688 = vld [vmem:[#allocation2 + $0x30] sm:$0xff]
  %v3689 = vld [vmem:[#allocation2 + $0x38] sm:$0xff]
  %v3690 = vld [vmem:[#allocation2 + $0x40] sm:$0xff]
  %v3691 = vld [vmem:[#allocation2 + $0x48] sm:$0xff]
  %v3692 = vld [vmem:[#allocation2 + $0x50] sm:$0xff]
  %v3693 = vld [vmem:[#allocation2 + $0x58] sm:$0xff]
  %v3694 = vld [vmem:[#allocation2 + $0x60] sm:$0xff]
  %v3695 = vld [vmem:[#allocation2 + $0x68] sm:$0xff]
  %v3696 = vld [vmem:[#allocation2 + $0x70] sm:$0xff]
  %v3697 = vld [vmem:[#allocation2 + $0x78] sm:$0xff]
  %v3698 = vld [vmem:[#allocation2 + $0x80] sm:$0xff]
  %v3699 = vld [vmem:[#allocation2 + $0x88] sm:$0xff]
  %v3700 = vld [vmem:[#allocation2 + $0x90] sm:$0xff]
  %v3701 = vld [vmem:[#allocation2 + $0x98] sm:$0xff]
  %v3702 = vld [vmem:[#allocation2 + $0xa0] sm:$0xff]
  %v3703 = vld [vmem:[#allocation2 + $0xa8] sm:$0xff]
  %v3704 = vld [vmem:[#allocation2 + $0xb0] sm:$0xff]
  %v3705 = vld [vmem:[#allocation2 + $0xb8] sm:$0xff]
  %v3706 = vld [vmem:[#allocation2 + $0xc0] sm:$0xff]
  %v3707 = vld [vmem:[#allocation2 + $0xc8] sm:$0xff]
  %v3708 = vld [vmem:[#allocation2 + $0xd0] sm:$0xff]
  %v3709 = vld [vmem:[#allocation2 + $0xd8] sm:$0xff]
  %v3710 = vld [vmem:[#allocation2 + $0xe0] sm:$0xff]
  %v3711 = vld [vmem:[#allocation2 + $0xe8] sm:$0xff]
  %v3712 = vld [vmem:[#allocation2 + $0xf0] sm:$0xf]
  %v3713 = vld [vmem:[#allocation2 + $0xf8] sm:$0xf]
  %v3714 = vadd.f32 %v3682, %v3594
  %v3715 = vadd.f32 %v3683, %v3643
  %v3716 = vadd.f32 %v3684, %v3596
  %v3717 = vadd.f32 %v3685, %v3645
  %v3718 = vadd.f32 %v3686, %v3599
  %v3719 = vadd.f32 %v3687, %v3648
  %v3720 = vadd.f32 %v3688, %v3601
  %v3721 = vadd.f32 %v3689, %v3650
  %v3722 = vadd.f32 %v3690, %v3604
  %v3723 = vadd.f32 %v3691, %v3653
  %v3724 = vadd.f32 %v3692, %v3606
  %v3725 = vadd.f32 %v3693, %v3655
  %v3726 = vadd.f32 %v3694, %v3609
  %v3727 = vadd.f32 %v3695, %v3658
  %v3728 = vadd.f32 %v3696, %v3611
  %v3729 = vadd.f32 %v3697, %v3660
  %v3730 = vadd.f32 %v3698, %v3614
  %v3731 = vadd.f32 %v3699, %v3663
  %v3732 = vadd.f32 %v3700, %v3616
  %v3733 = vadd.f32 %v3701, %v3665
  %v3734 = vadd.f32 %v3702, %v3619
  %v3735 = vadd.f32 %v3703, %v3668
  %v3736 = vadd.f32 %v3704, %v3621
  %v3737 = vadd.f32 %v3705, %v3670
  %v3738 = vadd.f32 %v3706, %v3624
  %v3739 = vadd.f32 %v3707, %v3673
  %v3740 = vadd.f32 %v3708, %v3626
  %v3741 = vadd.f32 %v3709, %v3675
  %v3742 = vadd.f32 %v3710, %v3629
  %v3743 = vadd.f32 %v3711, %v3678
  %v3744 = vadd.f32 %v3712, %v3631
  %v3745 = vadd.f32 %v3713, %v3680
  %3746 = vst [vmem:[#allocation2] sm:$0xff] %v3714
  %3747 = vst [vmem:[#allocation2 + $0x8] sm:$0xff] %v3715
  %3748 = vst [vmem:[#allocation2 + $0x10] sm:$0xff] %v3716
  %3749 = vst [vmem:[#allocation2 + $0x18] sm:$0xff] %v3717
  %3750 = vst [vmem:[#allocation2 + $0x20] sm:$0xff] %v3718
  %3751 = vst [vmem:[#allocation2 + $0x28] sm:$0xff] %v3719
  %3752 = vst [vmem:[#allocation2 + $0x30] sm:$0xff] %v3720
  %3753 = vst [vmem:[#allocation2 + $0x38] sm:$0xff] %v3721
  %3754 = vst [vmem:[#allocation2 + $0x40] sm:$0xff] %v3722
  %3755 = vst [vmem:[#allocation2 + $0x48] sm:$0xff] %v3723
  %3756 = vst [vmem:[#allocation2 + $0x50] sm:$0xff] %v3724
  %3757 = vst [vmem:[#allocation2 + $0x58] sm:$0xff] %v3725
  %3758 = vst [vmem:[#allocation2 + $0x60] sm:$0xff] %v3726
  %3759 = vst [vmem:[#allocation2 + $0x68] sm:$0xff] %v3727
  %3760 = vst [vmem:[#allocation2 + $0x70] sm:$0xff] %v3728
  %3761 = vst [vmem:[#allocation2 + $0x78] sm:$0xff] %v3729
  %3762 = vst [vmem:[#allocation2 + $0x80] sm:$0xff] %v3730
  %3763 = vst [vmem:[#allocation2 + $0x88] sm:$0xff] %v3731
  %3764 = vst [vmem:[#allocation2 + $0x90] sm:$0xff] %v3732
  %3765 = vst [vmem:[#allocation2 + $0x98] sm:$0xff] %v3733
  %3766 = vst [vmem:[#allocation2 + $0xa0] sm:$0xff] %v3734
  %3767 = vst [vmem:[#allocation2 + $0xa8] sm:$0xff] %v3735
  %3768 = vst [vmem:[#allocation2 + $0xb0] sm:$0xff] %v3736
  %3769 = vst [vmem:[#allocation2 + $0xb8] sm:$0xff] %v3737
  %3770 = vst [vmem:[#allocation2 + $0xc0] sm:$0xff] %v3738
  %3771 = vst [vmem:[#allocation2 + $0xc8] sm:$0xff] %v3739
  %3772 = vst [vmem:[#allocation2 + $0xd0] sm:$0xff] %v3740
  %3773 = vst [vmem:[#allocation2 + $0xd8] sm:$0xff] %v3741
  %3774 = vst [vmem:[#allocation2 + $0xe0] sm:$0xff] %v3742
  %3775 = vst [vmem:[#allocation2 + $0xe8] sm:$0xff] %v3743
  %3776 = vst [vmem:[#allocation2 + $0xf0] sm:$0xf] %v3744
  %3777 = vst [vmem:[#allocation2 + $0xf8] sm:$0xf] %v3745
  %v3778 = vld [vmem:[#allocation4 + $0x3] sm:$0xff]
  %v3779 = vld [vmem:[#allocation4 + $0xb] sm:$0xff]
  %v3780 = vld [vmem:[#allocation4 + $0x13] sm:$0xff]
  %v3781 = vld [vmem:[#allocation4 + $0x1b] sm:$0xff]
  %v3782 = vld [vmem:[#allocation4 + $0x23] sm:$0xff]
  %v3783 = vld [vmem:[#allocation4 + $0x2b] sm:$0xff]
  %v3784 = vld [vmem:[#allocation4 + $0x33] sm:$0xff]
  %v3785 = vld [vmem:[#allocation4 + $0x3b] sm:$0xff]
  %v3786 = vld [vmem:[#allocation4 + $0x43] sm:$0xff]
  %v3787 = vld [vmem:[#allocation4 + $0x4b] sm:$0xff]
  %v3788 = vld [vmem:[#allocation4 + $0x53] sm:$0xff]
  %v3789 = vld [vmem:[#allocation4 + $0x5b] sm:$0xff]
  %v3790 = vld [vmem:[#allocation4 + $0x63] sm:$0xff]
  %v3791 = vld [vmem:[#allocation4 + $0x6b] sm:$0xff]
  %v3792 = vld [vmem:[#allocation4 + $0x73] sm:$0xff]
  %v3793 = vld [vmem:[#allocation4 + $0x7b] sm:$0xf]
  %v3794 = vpack.c.bf16 %v3779, %v3778
  %v3795 = vpack.c.bf16 %v3781, %v3780
  %v3796 = vpack.c.bf16 %v3783, %v3782
  %v3797 = vpack.c.bf16 %v3785, %v3784
  %v3798 = vpack.c.bf16 %v3787, %v3786
  %v3799 = vpack.c.bf16 %v3789, %v3788
  %v3800 = vpack.c.bf16 %v3791, %v3790
  %v3801 = vpack.c.bf16 %v3793, %v3792
  %s3802 = scalar_lea.vmem %s3, 384
  %v3803 = vld [vmem:[%s3802] sm:$0xff]
  %v3804 = vld [vmem:[%s3802 + $0x8] sm:$0xff]
  %v3805 = vld [vmem:[%s3802 + $0x10] sm:$0xff]
  %v3806 = vld [vmem:[%s3802 + $0x18] sm:$0xff]
  %v3807 = vld [vmem:[%s3802 + $0x20] sm:$0xff]
  %v3808 = vld [vmem:[%s3802 + $0x28] sm:$0xff]
  %v3809 = vld [vmem:[%s3802 + $0x30] sm:$0xff]
  %v3810 = vld [vmem:[%s3802 + $0x38] sm:$0xff]
  %v3811 = vld [vmem:[%s3802 + $0x40] sm:$0xff]
  %v3812 = vld [vmem:[%s3802 + $0x48] sm:$0xff]
  %v3813 = vld [vmem:[%s3802 + $0x50] sm:$0xff]
  %v3814 = vld [vmem:[%s3802 + $0x58] sm:$0xff]
  %v3815 = vld [vmem:[%s3802 + $0x60] sm:$0xff]
  %v3816 = vld [vmem:[%s3802 + $0x68] sm:$0xff]
  %v3817 = vld [vmem:[%s3802 + $0x70] sm:$0xff]
  %v3818 = vld [vmem:[%s3802 + $0x78] sm:$0xff]
  %v3835 = vunpack.c.l.b16 %v3803
  %v3836 = vunpack.c.h.b16 %v3803
  %v3837 = vunpack.c.l.b16 %v3804
  %v3838 = vunpack.c.h.b16 %v3804
  %v3839 = vunpack.c.l.b16 %v3805
  %v3840 = vunpack.c.h.b16 %v3805
  %v3841 = vunpack.c.l.b16 %v3806
  %v3842 = vunpack.c.h.b16 %v3806
  %v3843 = vunpack.c.l.b16 %v3807
  %v3844 = vunpack.c.h.b16 %v3807
  %v3845 = vunpack.c.l.b16 %v3808
  %v3846 = vunpack.c.h.b16 %v3808
  %v3847 = vunpack.c.l.b16 %v3809
  %v3848 = vunpack.c.h.b16 %v3809
  %v3849 = vunpack.c.l.b16 %v3810
  %v3850 = vunpack.c.h.b16 %v3810
  %v3851 = vunpack.c.l.b16 %v3811
  %v3852 = vunpack.c.h.b16 %v3811
  %v3853 = vunpack.c.l.b16 %v3812
  %v3854 = vunpack.c.h.b16 %v3812
  %v3855 = vunpack.c.l.b16 %v3813
  %v3856 = vunpack.c.h.b16 %v3813
  %v3857 = vunpack.c.l.b16 %v3814
  %v3858 = vunpack.c.h.b16 %v3814
  %v3859 = vunpack.c.l.b16 %v3815
  %v3860 = vunpack.c.h.b16 %v3815
  %v3861 = vunpack.c.l.b16 %v3816
  %v3862 = vunpack.c.h.b16 %v3816
  %v3863 = vunpack.c.l.b16 %v3817
  %v3864 = vunpack.c.h.b16 %v3817
  %v3865 = vunpack.c.l.b16 %v3818
  %v3866 = vunpack.c.h.b16 %v3818
  %v3867 = vpack.c.b16 %v3837, %v3835
  %v3868 = vpack.c.b16 %v3838, %v3836
  %v3869 = vpack.c.b16 %v3841, %v3839
  %v3870 = vpack.c.b16 %v3842, %v3840
  %v3871 = vpack.c.b16 %v3845, %v3843
  %v3872 = vpack.c.b16 %v3846, %v3844
  %v3873 = vpack.c.b16 %v3849, %v3847
  %v3874 = vpack.c.b16 %v3850, %v3848
  %v3875 = vpack.c.b16 %v3853, %v3851
  %v3876 = vpack.c.b16 %v3854, %v3852
  %v3877 = vpack.c.b16 %v3857, %v3855
  %v3878 = vpack.c.b16 %v3858, %v3856
  %v3879 = vpack.c.b16 %v3861, %v3859
  %v3880 = vpack.c.b16 %v3862, %v3860
  %v3881 = vpack.c.b16 %v3865, %v3863
  %v3882 = vpack.c.b16 %v3866, %v3864
  %3899 = vmatpush.bf16.msra.mxu0 %v3881
  %3900 = vmatpush.bf16.msra.mxu0 %v3879
  %3901 = vmatpush.bf16.msra.mxu0 %v3877
  %3902 = vmatpush.bf16.msra.mxu0 %v3875
  %3903 = vmatpush.bf16.msra.mxu0 %v3873
  %3904 = vmatpush.bf16.msra.mxu0 %v3871
  %3905 = vmatpush.bf16.msra.mxu0 %v3869
  %3906 = vmatpush.bf16.msra.mxu0 %v3867
  %3907 = vmatmul.bf16.gmra.mxu0 %v3794
  %v3908 = vpop.f32.mrf.mxu0
  %v3909 = vadd.f32 0.0, %v3908
  %v3910 = vpop.f32.mrf.mxu0
  %v3911 = vadd.f32 0.0, %v3910
  %3912 = vmatmul.bf16.gmra.mxu0 %v3795
  %v3913 = vpop.f32.mrf.mxu0
  %v3914 = vadd.f32 0.0, %v3913
  %v3915 = vpop.f32.mrf.mxu0
  %v3916 = vadd.f32 0.0, %v3915
  %3917 = vmatmul.bf16.gmra.mxu0 %v3796
  %v3918 = vpop.f32.mrf.mxu0
  %v3919 = vadd.f32 0.0, %v3918
  %v3920 = vpop.f32.mrf.mxu0
  %v3921 = vadd.f32 0.0, %v3920
  %3922 = vmatmul.bf16.gmra.mxu0 %v3797
  %v3923 = vpop.f32.mrf.mxu0
  %v3924 = vadd.f32 0.0, %v3923
  %v3925 = vpop.f32.mrf.mxu0
  %v3926 = vadd.f32 0.0, %v3925
  %3927 = vmatmul.bf16.gmra.mxu0 %v3798
  %v3928 = vpop.f32.mrf.mxu0
  %v3929 = vadd.f32 0.0, %v3928
  %v3930 = vpop.f32.mrf.mxu0
  %v3931 = vadd.f32 0.0, %v3930
  %3932 = vmatmul.bf16.gmra.mxu0 %v3799
  %v3933 = vpop.f32.mrf.mxu0
  %v3934 = vadd.f32 0.0, %v3933
  %v3935 = vpop.f32.mrf.mxu0
  %v3936 = vadd.f32 0.0, %v3935
  %3937 = vmatmul.bf16.gmra.mxu0 %v3800
  %v3938 = vpop.f32.mrf.mxu0
  %v3939 = vadd.f32 0.0, %v3938
  %v3940 = vpop.f32.mrf.mxu0
  %v3941 = vadd.f32 0.0, %v3940
  %3942 = vmatmul.bf16.gmra.mxu0 %v3801
  %v3943 = vpop.f32.mrf.mxu0
  %v3944 = vadd.f32 0.0, %v3943
  %v3945 = vpop.f32.mrf.mxu0
  %v3946 = vadd.f32 0.0, %v3945
  %3947 = vdwg.mxu0
  %3948 = vmatpush.bf16.msra.mxu0 %v3882
  %3949 = vmatpush.bf16.msra.mxu0 %v3880
  %3950 = vmatpush.bf16.msra.mxu0 %v3878
  %3951 = vmatpush.bf16.msra.mxu0 %v3876
  %3952 = vmatpush.bf16.msra.mxu0 %v3874
  %3953 = vmatpush.bf16.msra.mxu0 %v3872
  %3954 = vmatpush.bf16.msra.mxu0 %v3870
  %3955 = vmatpush.bf16.msra.mxu0 %v3868
  %3956 = vmatmul.bf16.gmra.mxu0 %v3794
  %v3957 = vpop.f32.mrf.mxu0
  %v3958 = vadd.f32 0.0, %v3957
  %v3959 = vpop.f32.mrf.mxu0
  %v3960 = vadd.f32 0.0, %v3959
  %3961 = vmatmul.bf16.gmra.mxu0 %v3795
  %v3962 = vpop.f32.mrf.mxu0
  %v3963 = vadd.f32 0.0, %v3962
  %v3964 = vpop.f32.mrf.mxu0
  %v3965 = vadd.f32 0.0, %v3964
  %3966 = vmatmul.bf16.gmra.mxu0 %v3796
  %v3967 = vpop.f32.mrf.mxu0
  %v3968 = vadd.f32 0.0, %v3967
  %v3969 = vpop.f32.mrf.mxu0
  %v3970 = vadd.f32 0.0, %v3969
  %3971 = vmatmul.bf16.gmra.mxu0 %v3797
  %v3972 = vpop.f32.mrf.mxu0
  %v3973 = vadd.f32 0.0, %v3972
  %v3974 = vpop.f32.mrf.mxu0
  %v3975 = vadd.f32 0.0, %v3974
  %3976 = vmatmul.bf16.gmra.mxu0 %v3798
  %v3977 = vpop.f32.mrf.mxu0
  %v3978 = vadd.f32 0.0, %v3977
  %v3979 = vpop.f32.mrf.mxu0
  %v3980 = vadd.f32 0.0, %v3979
  %3981 = vmatmul.bf16.gmra.mxu0 %v3799
  %v3982 = vpop.f32.mrf.mxu0
  %v3983 = vadd.f32 0.0, %v3982
  %v3984 = vpop.f32.mrf.mxu0
  %v3985 = vadd.f32 0.0, %v3984
  %3986 = vmatmul.bf16.gmra.mxu0 %v3800
  %v3987 = vpop.f32.mrf.mxu0
  %v3988 = vadd.f32 0.0, %v3987
  %v3989 = vpop.f32.mrf.mxu0
  %v3990 = vadd.f32 0.0, %v3989
  %3991 = vmatmul.bf16.gmra.mxu0 %v3801
  %v3992 = vpop.f32.mrf.mxu0
  %v3993 = vadd.f32 0.0, %v3992
  %v3994 = vpop.f32.mrf.mxu0
  %v3995 = vadd.f32 0.0, %v3994
  %3996 = vdwg.mxu0
  %v3997 = vld [vmem:[#allocation2] sm:$0xff]
  %v3998 = vld [vmem:[#allocation2 + $0x8] sm:$0xff]
  %v3999 = vld [vmem:[#allocation2 + $0x10] sm:$0xff]
  %v4000 = vld [vmem:[#allocation2 + $0x18] sm:$0xff]
  %v4001 = vld [vmem:[#allocation2 + $0x20] sm:$0xff]
  %v4002 = vld [vmem:[#allocation2 + $0x28] sm:$0xff]
  %v4003 = vld [vmem:[#allocation2 + $0x30] sm:$0xff]
  %v4004 = vld [vmem:[#allocation2 + $0x38] sm:$0xff]
  %v4005 = vld [vmem:[#allocation2 + $0x40] sm:$0xff]
  %v4006 = vld [vmem:[#allocation2 + $0x48] sm:$0xff]
  %v4007 = vld [vmem:[#allocation2 + $0x50] sm:$0xff]
  %v4008 = vld [vmem:[#allocation2 + $0x58] sm:$0xff]
  %v4009 = vld [vmem:[#allocation2 + $0x60] sm:$0xff]
  %v4010 = vld [vmem:[#allocation2 + $0x68] sm:$0xff]
  %v4011 = vld [vmem:[#allocation2 + $0x70] sm:$0xff]
  %v4012 = vld [vmem:[#allocation2 + $0x78] sm:$0xff]
  %v4013 = vld [vmem:[#allocation2 + $0x80] sm:$0xff]
  %v4014 = vld [vmem:[#allocation2 + $0x88] sm:$0xff]
  %v4015 = vld [vmem:[#allocation2 + $0x90] sm:$0xff]
  %v4016 = vld [vmem:[#allocation2 + $0x98] sm:$0xff]
  %v4017 = vld [vmem:[#allocation2 + $0xa0] sm:$0xff]
  %v4018 = vld [vmem:[#allocation2 + $0xa8] sm:$0xff]
  %v4019 = vld [vmem:[#allocation2 + $0xb0] sm:$0xff]
  %v4020 = vld [vmem:[#allocation2 + $0xb8] sm:$0xff]
  %v4021 = vld [vmem:[#allocation2 + $0xc0] sm:$0xff]
  %v4022 = vld [vmem:[#allocation2 + $0xc8] sm:$0xff]
  %v4023 = vld [vmem:[#allocation2 + $0xd0] sm:$0xff]
  %v4024 = vld [vmem:[#allocation2 + $0xd8] sm:$0xff]
  %v4025 = vld [vmem:[#allocation2 + $0xe0] sm:$0xff]
  %v4026 = vld [vmem:[#allocation2 + $0xe8] sm:$0xff]
  %v4027 = vld [vmem:[#allocation2 + $0xf0] sm:$0xf]
  %v4028 = vld [vmem:[#allocation2 + $0xf8] sm:$0xf]
  %v4029 = vadd.f32 %v3997, %v3909
  %v4030 = vadd.f32 %v3998, %v3958
  %v4031 = vadd.f32 %v3999, %v3911
  %v4032 = vadd.f32 %v4000, %v3960
  %v4033 = vadd.f32 %v4001, %v3914
  %v4034 = vadd.f32 %v4002, %v3963
  %v4035 = vadd.f32 %v4003, %v3916
  %v4036 = vadd.f32 %v4004, %v3965
  %v4037 = vadd.f32 %v4005, %v3919
  %v4038 = vadd.f32 %v4006, %v3968
  %v4039 = vadd.f32 %v4007, %v3921
  %v4040 = vadd.f32 %v4008, %v3970
  %v4041 = vadd.f32 %v4009, %v3924
  %v4042 = vadd.f32 %v4010, %v3973
  %v4043 = vadd.f32 %v4011, %v3926
  %v4044 = vadd.f32 %v4012, %v3975
  %v4045 = vadd.f32 %v4013, %v3929
  %v4046 = vadd.f32 %v4014, %v3978
  %v4047 = vadd.f32 %v4015, %v3931
  %v4048 = vadd.f32 %v4016, %v3980
  %v4049 = vadd.f32 %v4017, %v3934
  %v4050 = vadd.f32 %v4018, %v3983
  %v4051 = vadd.f32 %v4019, %v3936
  %v4052 = vadd.f32 %v4020, %v3985
  %v4053 = vadd.f32 %v4021, %v3939
  %v4054 = vadd.f32 %v4022, %v3988
  %v4055 = vadd.f32 %v4023, %v3941
  %v4056 = vadd.f32 %v4024, %v3990
  %v4057 = vadd.f32 %v4025, %v3944
  %v4058 = vadd.f32 %v4026, %v3993
  %v4059 = vadd.f32 %v4027, %v3946
  %v4060 = vadd.f32 %v4028, %v3995
  %4061 = vst [vmem:[#allocation2] sm:$0xff] %v4029
  %4062 = vst [vmem:[#allocation2 + $0x8] sm:$0xff] %v4030
  %4063 = vst [vmem:[#allocation2 + $0x10] sm:$0xff] %v4031
  %4064 = vst [vmem:[#allocation2 + $0x18] sm:$0xff] %v4032
  %4065 = vst [vmem:[#allocation2 + $0x20] sm:$0xff] %v4033
  %4066 = vst [vmem:[#allocation2 + $0x28] sm:$0xff] %v4034
  %4067 = vst [vmem:[#allocation2 + $0x30] sm:$0xff] %v4035
  %4068 = vst [vmem:[#allocation2 + $0x38] sm:$0xff] %v4036
  %4069 = vst [vmem:[#allocation2 + $0x40] sm:$0xff] %v4037
  %4070 = vst [vmem:[#allocation2 + $0x48] sm:$0xff] %v4038
  %4071 = vst [vmem:[#allocation2 + $0x50] sm:$0xff] %v4039
  %4072 = vst [vmem:[#allocation2 + $0x58] sm:$0xff] %v4040
  %4073 = vst [vmem:[#allocation2 + $0x60] sm:$0xff] %v4041
  %4074 = vst [vmem:[#allocation2 + $0x68] sm:$0xff] %v4042
  %4075 = vst [vmem:[#allocation2 + $0x70] sm:$0xff] %v4043
  %4076 = vst [vmem:[#allocation2 + $0x78] sm:$0xff] %v4044
  %4077 = vst [vmem:[#allocation2 + $0x80] sm:$0xff] %v4045
  %4078 = vst [vmem:[#allocation2 + $0x88] sm:$0xff] %v4046
  %4079 = vst [vmem:[#allocation2 + $0x90] sm:$0xff] %v4047
  %4080 = vst [vmem:[#allocation2 + $0x98] sm:$0xff] %v4048
  %4081 = vst [vmem:[#allocation2 + $0xa0] sm:$0xff] %v4049
  %4082 = vst [vmem:[#allocation2 + $0xa8] sm:$0xff] %v4050
  %4083 = vst [vmem:[#allocation2 + $0xb0] sm:$0xff] %v4051
  %4084 = vst [vmem:[#allocation2 + $0xb8] sm:$0xff] %v4052
  %4085 = vst [vmem:[#allocation2 + $0xc0] sm:$0xff] %v4053
  %4086 = vst [vmem:[#allocation2 + $0xc8] sm:$0xff] %v4054
  %4087 = vst [vmem:[#allocation2 + $0xd0] sm:$0xff] %v4055
  %4088 = vst [vmem:[#allocation2 + $0xd8] sm:$0xff] %v4056
  %4089 = vst [vmem:[#allocation2 + $0xe0] sm:$0xff] %v4057
  %4090 = vst [vmem:[#allocation2 + $0xe8] sm:$0xff] %v4058
  %4091 = vst [vmem:[#allocation2 + $0xf0] sm:$0xf] %v4059
  %4092 = vst [vmem:[#allocation2 + $0xf8] sm:$0xf] %v4060
  %v4093 = vld [vmem:[#allocation4 + $0x4] sm:$0xff]
  %v4094 = vld [vmem:[#allocation4 + $0xc] sm:$0xff]
  %v4095 = vld [vmem:[#allocation4 + $0x14] sm:$0xff]
  %v4096 = vld [vmem:[#allocation4 + $0x1c] sm:$0xff]
  %v4097 = vld [vmem:[#allocation4 + $0x24] sm:$0xff]
  %v4098 = vld [vmem:[#allocation4 + $0x2c] sm:$0xff]
  %v4099 = vld [vmem:[#allocation4 + $0x34] sm:$0xff]
  %v4100 = vld [vmem:[#allocation4 + $0x3c] sm:$0xff]
  %v4101 = vld [vmem:[#allocation4 + $0x44] sm:$0xff]
  %v4102 = vld [vmem:[#allocation4 + $0x4c] sm:$0xff]
  %v4103 = vld [vmem:[#allocation4 + $0x54] sm:$0xff]
  %v4104 = vld [vmem:[#allocation4 + $0x5c] sm:$0xff]
  %v4105 = vld [vmem:[#allocation4 + $0x64] sm:$0xff]
  %v4106 = vld [vmem:[#allocation4 + $0x6c] sm:$0xff]
  %v4107 = vld [vmem:[#allocation4 + $0x74] sm:$0xff]
  %v4108 = vld [vmem:[#allocation4 + $0x7c] sm:$0xf]
  %v4109 = vpack.c.bf16 %v4094, %v4093
  %v4110 = vpack.c.bf16 %v4096, %v4095
  %v4111 = vpack.c.bf16 %v4098, %v4097
  %v4112 = vpack.c.bf16 %v4100, %v4099
  %v4113 = vpack.c.bf16 %v4102, %v4101
  %v4114 = vpack.c.bf16 %v4104, %v4103
  %v4115 = vpack.c.bf16 %v4106, %v4105
  %v4116 = vpack.c.bf16 %v4108, %v4107
  %s4117 = scalar_lea.vmem %s3, 512
  %v4118 = vld [vmem:[%s4117] sm:$0xff]
  %v4119 = vld [vmem:[%s4117 + $0x8] sm:$0xff]
  %v4120 = vld [vmem:[%s4117 + $0x10] sm:$0xff]
  %v4121 = vld [vmem:[%s4117 + $0x18] sm:$0xff]
  %v4122 = vld [vmem:[%s4117 + $0x20] sm:$0xff]
  %v4123 = vld [vmem:[%s4117 + $0x28] sm:$0xff]
  %v4124 = vld [vmem:[%s4117 + $0x30] sm:$0xff]
  %v4125 = vld [vmem:[%s4117 + $0x38] sm:$0xff]
  %v4126 = vld [vmem:[%s4117 + $0x40] sm:$0xff]
  %v4127 = vld [vmem:[%s4117 + $0x48] sm:$0xff]
  %v4128 = vld [vmem:[%s4117 + $0x50] sm:$0xff]
  %v4129 = vld [vmem:[%s4117 + $0x58] sm:$0xff]
  %v4130 = vld [vmem:[%s4117 + $0x60] sm:$0xff]
  %v4131 = vld [vmem:[%s4117 + $0x68] sm:$0xff]
  %v4132 = vld [vmem:[%s4117 + $0x70] sm:$0xff]
  %v4133 = vld [vmem:[%s4117 + $0x78] sm:$0xff]
  %v4150 = vunpack.c.l.b16 %v4118
  %v4151 = vunpack.c.h.b16 %v4118
  %v4152 = vunpack.c.l.b16 %v4119
  %v4153 = vunpack.c.h.b16 %v4119
  %v4154 = vunpack.c.l.b16 %v4120
  %v4155 = vunpack.c.h.b16 %v4120
  %v4156 = vunpack.c.l.b16 %v4121
  %v4157 = vunpack.c.h.b16 %v4121
  %v4158 = vunpack.c.l.b16 %v4122
  %v4159 = vunpack.c.h.b16 %v4122
  %v4160 = vunpack.c.l.b16 %v4123
  %v4161 = vunpack.c.h.b16 %v4123
  %v4162 = vunpack.c.l.b16 %v4124
  %v4163 = vunpack.c.h.b16 %v4124
  %v4164 = vunpack.c.l.b16 %v4125
  %v4165 = vunpack.c.h.b16 %v4125
  %v4166 = vunpack.c.l.b16 %v4126
  %v4167 = vunpack.c.h.b16 %v4126
  %v4168 = vunpack.c.l.b16 %v4127
  %v4169 = vunpack.c.h.b16 %v4127
  %v4170 = vunpack.c.l.b16 %v4128
  %v4171 = vunpack.c.h.b16 %v4128
  %v4172 = vunpack.c.l.b16 %v4129
  %v4173 = vunpack.c.h.b16 %v4129
  %v4174 = vunpack.c.l.b16 %v4130
  %v4175 = vunpack.c.h.b16 %v4130
  %v4176 = vunpack.c.l.b16 %v4131
  %v4177 = vunpack.c.h.b16 %v4131
  %v4178 = vunpack.c.l.b16 %v4132
  %v4179 = vunpack.c.h.b16 %v4132
  %v4180 = vunpack.c.l.b16 %v4133
  %v4181 = vunpack.c.h.b16 %v4133
  %v4182 = vpack.c.b16 %v4152, %v4150
  %v4183 = vpack.c.b16 %v4153, %v4151
  %v4184 = vpack.c.b16 %v4156, %v4154
  %v4185 = vpack.c.b16 %v4157, %v4155
  %v4186 = vpack.c.b16 %v4160, %v4158
  %v4187 = vpack.c.b16 %v4161, %v4159
  %v4188 = vpack.c.b16 %v4164, %v4162
  %v4189 = vpack.c.b16 %v4165, %v4163
  %v4190 = vpack.c.b16 %v4168, %v4166
  %v4191 = vpack.c.b16 %v4169, %v4167
  %v4192 = vpack.c.b16 %v4172, %v4170
  %v4193 = vpack.c.b16 %v4173, %v4171
  %v4194 = vpack.c.b16 %v4176, %v4174
  %v4195 = vpack.c.b16 %v4177, %v4175
  %v4196 = vpack.c.b16 %v4180, %v4178
  %v4197 = vpack.c.b16 %v4181, %v4179
  %4214 = vmatpush.bf16.msra.mxu0 %v4196
  %4215 = vmatpush.bf16.msra.mxu0 %v4194
  %4216 = vmatpush.bf16.msra.mxu0 %v4192
  %4217 = vmatpush.bf16.msra.mxu0 %v4190
  %4218 = vmatpush.bf16.msra.mxu0 %v4188
  %4219 = vmatpush.bf16.msra.mxu0 %v4186
  %4220 = vmatpush.bf16.msra.mxu0 %v4184
  %4221 = vmatpush.bf16.msra.mxu0 %v4182
  %4222 = vmatmul.bf16.gmra.mxu0 %v4109
  %v4223 = vpop.f32.mrf.mxu0
  %v4224 = vadd.f32 0.0, %v4223
  %v4225 = vpop.f32.mrf.mxu0
  %v4226 = vadd.f32 0.0, %v4225
  %4227 = vmatmul.bf16.gmra.mxu0 %v4110
  %v4228 = vpop.f32.mrf.mxu0
  %v4229 = vadd.f32 0.0, %v4228
  %v4230 = vpop.f32.mrf.mxu0
  %v4231 = vadd.f32 0.0, %v4230
  %4232 = vmatmul.bf16.gmra.mxu0 %v4111
  %v4233 = vpop.f32.mrf.mxu0
  %v4234 = vadd.f32 0.0, %v4233
  %v4235 = vpop.f32.mrf.mxu0
  %v4236 = vadd.f32 0.0, %v4235
  %4237 = vmatmul.bf16.gmra.mxu0 %v4112
  %v4238 = vpop.f32.mrf.mxu0
  %v4239 = vadd.f32 0.0, %v4238
  %v4240 = vpop.f32.mrf.mxu0
  %v4241 = vadd.f32 0.0, %v4240
  %4242 = vmatmul.bf16.gmra.mxu0 %v4113
  %v4243 = vpop.f32.mrf.mxu0
  %v4244 = vadd.f32 0.0, %v4243
  %v4245 = vpop.f32.mrf.mxu0
  %v4246 = vadd.f32 0.0, %v4245
  %4247 = vmatmul.bf16.gmra.mxu0 %v4114
  %v4248 = vpop.f32.mrf.mxu0
  %v4249 = vadd.f32 0.0, %v4248
  %v4250 = vpop.f32.mrf.mxu0
  %v4251 = vadd.f32 0.0, %v4250
  %4252 = vmatmul.bf16.gmra.mxu0 %v4115
  %v4253 = vpop.f32.mrf.mxu0
  %v4254 = vadd.f32 0.0, %v4253
  %v4255 = vpop.f32.mrf.mxu0
  %v4256 = vadd.f32 0.0, %v4255
  %4257 = vmatmul.bf16.gmra.mxu0 %v4116
  %v4258 = vpop.f32.mrf.mxu0
  %v4259 = vadd.f32 0.0, %v4258
  %v4260 = vpop.f32.mrf.mxu0
  %v4261 = vadd.f32 0.0, %v4260
  %4262 = vdwg.mxu0
  %4263 = vmatpush.bf16.msra.mxu0 %v4197
  %4264 = vmatpush.bf16.msra.mxu0 %v4195
  %4265 = vmatpush.bf16.msra.mxu0 %v4193
  %4266 = vmatpush.bf16.msra.mxu0 %v4191
  %4267 = vmatpush.bf16.msra.mxu0 %v4189
  %4268 = vmatpush.bf16.msra.mxu0 %v4187
  %4269 = vmatpush.bf16.msra.mxu0 %v4185
  %4270 = vmatpush.bf16.msra.mxu0 %v4183
  %4271 = vmatmul.bf16.gmra.mxu0 %v4109
  %v4272 = vpop.f32.mrf.mxu0
  %v4273 = vadd.f32 0.0, %v4272
  %v4274 = vpop.f32.mrf.mxu0
  %v4275 = vadd.f32 0.0, %v4274
  %4276 = vmatmul.bf16.gmra.mxu0 %v4110
  %v4277 = vpop.f32.mrf.mxu0
  %v4278 = vadd.f32 0.0, %v4277
  %v4279 = vpop.f32.mrf.mxu0
  %v4280 = vadd.f32 0.0, %v4279
  %4281 = vmatmul.bf16.gmra.mxu0 %v4111
  %v4282 = vpop.f32.mrf.mxu0
  %v4283 = vadd.f32 0.0, %v4282
  %v4284 = vpop.f32.mrf.mxu0
  %v4285 = vadd.f32 0.0, %v4284
  %4286 = vmatmul.bf16.gmra.mxu0 %v4112
  %v4287 = vpop.f32.mrf.mxu0
  %v4288 = vadd.f32 0.0, %v4287
  %v4289 = vpop.f32.mrf.mxu0
  %v4290 = vadd.f32 0.0, %v4289
  %4291 = vmatmul.bf16.gmra.mxu0 %v4113
  %v4292 = vpop.f32.mrf.mxu0
  %v4293 = vadd.f32 0.0, %v4292
  %v4294 = vpop.f32.mrf.mxu0
  %v4295 = vadd.f32 0.0, %v4294
  %4296 = vmatmul.bf16.gmra.mxu0 %v4114
  %v4297 = vpop.f32.mrf.mxu0
  %v4298 = vadd.f32 0.0, %v4297
  %v4299 = vpop.f32.mrf.mxu0
  %v4300 = vadd.f32 0.0, %v4299
  %4301 = vmatmul.bf16.gmra.mxu0 %v4115
  %v4302 = vpop.f32.mrf.mxu0
  %v4303 = vadd.f32 0.0, %v4302
  %v4304 = vpop.f32.mrf.mxu0
  %v4305 = vadd.f32 0.0, %v4304
  %4306 = vmatmul.bf16.gmra.mxu0 %v4116
  %v4307 = vpop.f32.mrf.mxu0
  %v4308 = vadd.f32 0.0, %v4307
  %v4309 = vpop.f32.mrf.mxu0
  %v4310 = vadd.f32 0.0, %v4309
  %4311 = vdwg.mxu0
  %v4312 = vld [vmem:[#allocation2] sm:$0xff]
  %v4313 = vld [vmem:[#allocation2 + $0x8] sm:$0xff]
  %v4314 = vld [vmem:[#allocation2 + $0x10] sm:$0xff]
  %v4315 = vld [vmem:[#allocation2 + $0x18] sm:$0xff]
  %v4316 = vld [vmem:[#allocation2 + $0x20] sm:$0xff]
  %v4317 = vld [vmem:[#allocation2 + $0x28] sm:$0xff]
  %v4318 = vld [vmem:[#allocation2 + $0x30] sm:$0xff]
  %v4319 = vld [vmem:[#allocation2 + $0x38] sm:$0xff]
  %v4320 = vld [vmem:[#allocation2 + $0x40] sm:$0xff]
  %v4321 = vld [vmem:[#allocation2 + $0x48] sm:$0xff]
  %v4322 = vld [vmem:[#allocation2 + $0x50] sm:$0xff]
  %v4323 = vld [vmem:[#allocation2 + $0x58] sm:$0xff]
  %v4324 = vld [vmem:[#allocation2 + $0x60] sm:$0xff]
  %v4325 = vld [vmem:[#allocation2 + $0x68] sm:$0xff]
  %v4326 = vld [vmem:[#allocation2 + $0x70] sm:$0xff]
  %v4327 = vld [vmem:[#allocation2 + $0x78] sm:$0xff]
  %v4328 = vld [vmem:[#allocation2 + $0x80] sm:$0xff]
  %v4329 = vld [vmem:[#allocation2 + $0x88] sm:$0xff]
  %v4330 = vld [vmem:[#allocation2 + $0x90] sm:$0xff]
  %v4331 = vld [vmem:[#allocation2 + $0x98] sm:$0xff]
  %v4332 = vld [vmem:[#allocation2 + $0xa0] sm:$0xff]
  %v4333 = vld [vmem:[#allocation2 + $0xa8] sm:$0xff]
  %v4334 = vld [vmem:[#allocation2 + $0xb0] sm:$0xff]
  %v4335 = vld [vmem:[#allocation2 + $0xb8] sm:$0xff]
  %v4336 = vld [vmem:[#allocation2 + $0xc0] sm:$0xff]
  %v4337 = vld [vmem:[#allocation2 + $0xc8] sm:$0xff]
  %v4338 = vld [vmem:[#allocation2 + $0xd0] sm:$0xff]
  %v4339 = vld [vmem:[#allocation2 + $0xd8] sm:$0xff]
  %v4340 = vld [vmem:[#allocation2 + $0xe0] sm:$0xff]
  %v4341 = vld [vmem:[#allocation2 + $0xe8] sm:$0xff]
  %v4342 = vld [vmem:[#allocation2 + $0xf0] sm:$0xf]
  %v4343 = vld [vmem:[#allocation2 + $0xf8] sm:$0xf]
  %v4344 = vadd.f32 %v4312, %v4224
  %v4345 = vadd.f32 %v4313, %v4273
  %v4346 = vadd.f32 %v4314, %v4226
  %v4347 = vadd.f32 %v4315, %v4275
  %v4348 = vadd.f32 %v4316, %v4229
  %v4349 = vadd.f32 %v4317, %v4278
  %v4350 = vadd.f32 %v4318, %v4231
  %v4351 = vadd.f32 %v4319, %v4280
  %v4352 = vadd.f32 %v4320, %v4234
  %v4353 = vadd.f32 %v4321, %v4283
  %v4354 = vadd.f32 %v4322, %v4236
  %v4355 = vadd.f32 %v4323, %v4285
  %v4356 = vadd.f32 %v4324, %v4239
  %v4357 = vadd.f32 %v4325, %v4288
  %v4358 = vadd.f32 %v4326, %v4241
  %v4359 = vadd.f32 %v4327, %v4290
  %v4360 = vadd.f32 %v4328, %v4244
  %v4361 = vadd.f32 %v4329, %v4293
  %v4362 = vadd.f32 %v4330, %v4246
  %v4363 = vadd.f32 %v4331, %v4295
  %v4364 = vadd.f32 %v4332, %v4249
  %v4365 = vadd.f32 %v4333, %v4298
  %v4366 = vadd.f32 %v4334, %v4251
  %v4367 = vadd.f32 %v4335, %v4300
  %v4368 = vadd.f32 %v4336, %v4254
  %v4369 = vadd.f32 %v4337, %v4303
  %v4370 = vadd.f32 %v4338, %v4256
  %v4371 = vadd.f32 %v4339, %v4305
  %v4372 = vadd.f32 %v4340, %v4259
  %v4373 = vadd.f32 %v4341, %v4308
  %v4374 = vadd.f32 %v4342, %v4261
  %v4375 = vadd.f32 %v4343, %v4310
  %4376 = vst [vmem:[#allocation2] sm:$0xff] %v4344
  %4377 = vst [vmem:[#allocation2 + $0x8] sm:$0xff] %v4345
  %4378 = vst [vmem:[#allocation2 + $0x10] sm:$0xff] %v4346
  %4379 = vst [vmem:[#allocation2 + $0x18] sm:$0xff] %v4347
  %4380 = vst [vmem:[#allocation2 + $0x20] sm:$0xff] %v4348
  %4381 = vst [vmem:[#allocation2 + $0x28] sm:$0xff] %v4349
  %4382 = vst [vmem:[#allocation2 + $0x30] sm:$0xff] %v4350
  %4383 = vst [vmem:[#allocation2 + $0x38] sm:$0xff] %v4351
  %4384 = vst [vmem:[#allocation2 + $0x40] sm:$0xff] %v4352
  %4385 = vst [vmem:[#allocation2 + $0x48] sm:$0xff] %v4353
  %4386 = vst [vmem:[#allocation2 + $0x50] sm:$0xff] %v4354
  %4387 = vst [vmem:[#allocation2 + $0x58] sm:$0xff] %v4355
  %4388 = vst [vmem:[#allocation2 + $0x60] sm:$0xff] %v4356
  %4389 = vst [vmem:[#allocation2 + $0x68] sm:$0xff] %v4357
  %4390 = vst [vmem:[#allocation2 + $0x70] sm:$0xff] %v4358
  %4391 = vst [vmem:[#allocation2 + $0x78] sm:$0xff] %v4359
  %4392 = vst [vmem:[#allocation2 + $0x80] sm:$0xff] %v4360
  %4393 = vst [vmem:[#allocation2 + $0x88] sm:$0xff] %v4361
  %4394 = vst [vmem:[#allocation2 + $0x90] sm:$0xff] %v4362
  %4395 = vst [vmem:[#allocation2 + $0x98] sm:$0xff] %v4363
  %4396 = vst [vmem:[#allocation2 + $0xa0] sm:$0xff] %v4364
  %4397 = vst [vmem:[#allocation2 + $0xa8] sm:$0xff] %v4365
  %4398 = vst [vmem:[#allocation2 + $0xb0] sm:$0xff] %v4366
  %4399 = vst [vmem:[#allocation2 + $0xb8] sm:$0xff] %v4367
  %4400 = vst [vmem:[#allocation2 + $0xc0] sm:$0xff] %v4368
  %4401 = vst [vmem:[#allocation2 + $0xc8] sm:$0xff] %v4369
  %4402 = vst [vmem:[#allocation2 + $0xd0] sm:$0xff] %v4370
  %4403 = vst [vmem:[#allocation2 + $0xd8] sm:$0xff] %v4371
  %4404 = vst [vmem:[#allocation2 + $0xe0] sm:$0xff] %v4372
  %4405 = vst [vmem:[#allocation2 + $0xe8] sm:$0xff] %v4373
  %4406 = vst [vmem:[#allocation2 + $0xf0] sm:$0xf] %v4374
  %4407 = vst [vmem:[#allocation2 + $0xf8] sm:$0xf] %v4375
  %v4408 = vld [vmem:[#allocation2] sm:$0xff]
  %v4409 = vld [vmem:[#allocation2 + $0x10] sm:$0xff]
  %v4410 = vld [vmem:[#allocation2 + $0x20] sm:$0xff]
  %v4411 = vld [vmem:[#allocation2 + $0x30] sm:$0xff]
  %v4412 = vld [vmem:[#allocation2 + $0x40] sm:$0xff]
  %v4413 = vld [vmem:[#allocation2 + $0x50] sm:$0xff]
  %v4414 = vld [vmem:[#allocation2 + $0x60] sm:$0xff]
  %v4415 = vld [vmem:[#allocation2 + $0x70] sm:$0xff]
  %v4416 = vld [vmem:[#allocation2 + $0x80] sm:$0xff]
  %v4417 = vld [vmem:[#allocation2 + $0x90] sm:$0xff]
  %v4418 = vld [vmem:[#allocation2 + $0xa0] sm:$0xff]
  %v4419 = vld [vmem:[#allocation2 + $0xb0] sm:$0xff]
  %v4420 = vld [vmem:[#allocation2 + $0xc0] sm:$0xff]
  %v4421 = vld [vmem:[#allocation2 + $0xd0] sm:$0xff]
  %v4422 = vld [vmem:[#allocation2 + $0xe0] sm:$0xff]
  %v4423 = vld [vmem:[#allocation2 + $0xf0] sm:$0xf]
  %v4424 = vld [vmem:[#allocation2 + $0x8] sm:$0xff]
  %v4425 = vld [vmem:[#allocation2 + $0x18] sm:$0xff]
  %v4426 = vld [vmem:[#allocation2 + $0x28] sm:$0xff]
  %v4427 = vld [vmem:[#allocation2 + $0x38] sm:$0xff]
  %v4428 = vld [vmem:[#allocation2 + $0x48] sm:$0xff]
  %v4429 = vld [vmem:[#allocation2 + $0x58] sm:$0xff]
  %v4430 = vld [vmem:[#allocation2 + $0x68] sm:$0xff]
  %v4431 = vld [vmem:[#allocation2 + $0x78] sm:$0xff]
  %v4432 = vld [vmem:[#allocation2 + $0x88] sm:$0xff]
  %v4433 = vld [vmem:[#allocation2 + $0x98] sm:$0xff]
  %v4434 = vld [vmem:[#allocation2 + $0xa8] sm:$0xff]
  %v4435 = vld [vmem:[#allocation2 + $0xb8] sm:$0xff]
  %v4436 = vld [vmem:[#allocation2 + $0xc8] sm:$0xff]
  %v4437 = vld [vmem:[#allocation2 + $0xd8] sm:$0xff]
  %v4438 = vld [vmem:[#allocation2 + $0xe8] sm:$0xff]
  %v4439 = vld [vmem:[#allocation2 + $0xf8] sm:$0xf]
  %v4440 = vmax.f32 %v4408, %v4424
  %v4441 = vmax.f32 %v4409, %v4425
  %v4442 = vmax.f32 %v4410, %v4426
  %v4443 = vmax.f32 %v4411, %v4427
  %v4444 = vmax.f32 %v4412, %v4428
  %v4445 = vmax.f32 %v4413, %v4429
  %v4446 = vmax.f32 %v4414, %v4430
  %v4447 = vmax.f32 %v4415, %v4431
  %v4448 = vmax.f32 %v4416, %v4432
  %v4449 = vmax.f32 %v4417, %v4433
  %v4450 = vmax.f32 %v4418, %v4434
  %v4451 = vmax.f32 %v4419, %v4435
  %v4452 = vmax.f32 %v4420, %v4436
  %v4453 = vmax.f32 %v4421, %v4437
  %v4454 = vmax.f32 %v4422, %v4438
  %v4455 = vmax.f32 %v4423, %v4439
  %v4456 = vld [vmem:[%s4] sm:$0x1]
  %v4458 = vperm.slane %v4456, 0
  %v4460 = vadd.f32 %v4440, %v4458
  %v4461 = vadd.f32 %v4441, %v4458
  %v4462 = vadd.f32 %v4442, %v4458
  %v4463 = vadd.f32 %v4443, %v4458
  %v4464 = vadd.f32 %v4444, %v4458
  %v4465 = vadd.f32 %v4445, %v4458
  %v4466 = vadd.f32 %v4446, %v4458
  %v4467 = vadd.f32 %v4447, %v4458
  %v4468 = vadd.f32 %v4448, %v4458
  %v4469 = vadd.f32 %v4449, %v4458
  %v4470 = vadd.f32 %v4450, %v4458
  %v4471 = vadd.f32 %v4451, %v4458
  %v4472 = vadd.f32 %v4452, %v4458
  %v4473 = vadd.f32 %v4453, %v4458
  %v4474 = vadd.f32 %v4454, %v4458
  %v4475 = vadd.f32 %v4455, %v4458
  %v4476 = vmax.f32 %v4460, 0.0
  %v4477 = vmax.f32 %v4461, 0.0
  %v4478 = vmax.f32 %v4462, 0.0
  %v4479 = vmax.f32 %v4463, 0.0
  %v4480 = vmax.f32 %v4464, 0.0
  %v4481 = vmax.f32 %v4465, 0.0
  %v4482 = vmax.f32 %v4466, 0.0
  %v4483 = vmax.f32 %v4467, 0.0
  %v4484 = vmax.f32 %v4468, 0.0
  %v4485 = vmax.f32 %v4469, 0.0
  %v4486 = vmax.f32 %v4470, 0.0
  %v4487 = vmax.f32 %v4471, 0.0
  %v4488 = vmax.f32 %v4472, 0.0
  %v4489 = vmax.f32 %v4473, 0.0
  %v4490 = vmax.f32 %v4474, 0.0
  %v4491 = vmax.f32 %v4475, 0.0
  %4492 = vst [vmem:[#allocation5] sm:$0xff] %v4476
  %4493 = vst [vmem:[#allocation5 + $0x8] sm:$0xff] %v4477
  %4494 = vst [vmem:[#allocation5 + $0x10] sm:$0xff] %v4478
  %4495 = vst [vmem:[#allocation5 + $0x18] sm:$0xff] %v4479
  %4496 = vst [vmem:[#allocation5 + $0x20] sm:$0xff] %v4480
  %4497 = vst [vmem:[#allocation5 + $0x28] sm:$0xff] %v4481
  %4498 = vst [vmem:[#allocation5 + $0x30] sm:$0xff] %v4482
  %4499 = vst [vmem:[#allocation5 + $0x38] sm:$0xff] %v4483
  %4500 = vst [vmem:[#allocation5 + $0x40] sm:$0xff] %v4484
  %4501 = vst [vmem:[#allocation5 + $0x48] sm:$0xff] %v4485
  %4502 = vst [vmem:[#allocation5 + $0x50] sm:$0xff] %v4486
  %4503 = vst [vmem:[#allocation5 + $0x58] sm:$0xff] %v4487
  %4504 = vst [vmem:[#allocation5 + $0x60] sm:$0xff] %v4488
  %4505 = vst [vmem:[#allocation5 + $0x68] sm:$0xff] %v4489
  %4506 = vst [vmem:[#allocation5 + $0x70] sm:$0xff] %v4490
  %4507 = vst [vmem:[#allocation5 + $0x78] sm:$0xf] %v4491
  %v4508 = vld [vmem:[#allocation5] ss:$16 sm:$0x3]
  %v4509 = vld [vmem:[#allocation5] ss:$16 sm:$0xc]
  %v4510 = vor.u32 %v4508, %v4509
  %v4511 = vld [vmem:[#allocation5] ss:$16 sm:$0x30]
  %v4512 = vor.u32 %v4510, %v4511
  %v4513 = vld [vmem:[#allocation5] ss:$16 sm:$0xc0]
  %v4514 = vor.u32 %v4512, %v4513
  %s4515 = scalar_lea.vmem [#allocation5], 1
  %v4516 = vld [vmem:[%s4515] ss:$16 sm:$0x3]
  %v4517 = vld [vmem:[%s4515] ss:$16 sm:$0xc]
  %v4518 = vor.u32 %v4516, %v4517
  %v4519 = vld [vmem:[%s4515] ss:$16 sm:$0x30]
  %v4520 = vor.u32 %v4518, %v4519
  %v4521 = vld [vmem:[%s4515] ss:$16 sm:$0xc0]
  %v4522 = vor.u32 %v4520, %v4521
  %v4523 = vmax.f32 %v4514, %v4522
  %v4524 = vpack.c.bf16 %v4523, %v4523
  %v4525 = vld [vmem:[%s5] sm:$0xf]
  %v4526 = vld [vmem:[%s5 + $0x4] sm:$0xf]
  %v4527 = vld [vmem:[%s5 + $0x8] sm:$0xf]
  %v4528 = vld [vmem:[%s5 + $0xc] sm:$0xf]
  %v4529 = vld [vmem:[%s5 + $0x10] sm:$0xf]
  %v4530 = vld [vmem:[%s5 + $0x14] sm:$0xf]
  %v4531 = vld [vmem:[%s5 + $0x18] sm:$0xf]
  %v4532 = vld [vmem:[%s5 + $0x1c] sm:$0xf]
  %v4533 = vld [vmem:[%s5 + $0x20] sm:$0xf]
  %v4534 = vld [vmem:[%s5 + $0x24] sm:$0xf]
  %v4535 = vld [vmem:[%s5 + $0x28] sm:$0xf]
  %v4536 = vld [vmem:[%s5 + $0x2c] sm:$0xf]
  %v4537 = vld [vmem:[%s5 + $0x30] sm:$0xf]
  %v4538 = vld [vmem:[%s5 + $0x34] sm:$0xf]
  %v4539 = vld [vmem:[%s5 + $0x38] sm:$0xf]
  %v4540 = vld [vmem:[%s5 + $0x3c] sm:$0xf]
  %s4541 = scalar_lea.vmem [#allocation5], 2
  %v4542 = vld [vmem:[%s4541] ss:$16 sm:$0x3]
  %v4543 = vld [vmem:[%s4541] ss:$16 sm:$0xc]
  %v4544 = vor.u32 %v4542, %v4543
  %v4545 = vld [vmem:[%s4541] ss:$16 sm:$0x30]
  %v4546 = vor.u32 %v4544, %v4545
  %v4547 = vld [vmem:[%s4541] ss:$16 sm:$0xc0]
  %v4548 = vor.u32 %v4546, %v4547
  %s4549 = scalar_lea.vmem [#allocation5], 3
  %v4550 = vld [vmem:[%s4549] ss:$16 sm:$0x3]
  %v4551 = vld [vmem:[%s4549] ss:$16 sm:$0xc]
  %v4552 = vor.u32 %v4550, %v4551
  %v4553 = vld [vmem:[%s4549] ss:$16 sm:$0x30]
  %v4554 = vor.u32 %v4552, %v4553
  %v4555 = vld [vmem:[%s4549] ss:$16 sm:$0xc0]
  %v4556 = vor.u32 %v4554, %v4555
  %v4557 = vmax.f32 %v4548, %v4556
  %v4558 = vpack.c.bf16 %v4557, %v4557
  %s4559 = scalar_lea.vmem %s5, 64
  %v4560 = vld [vmem:[%s4559] sm:$0xf]
  %v4561 = vld [vmem:[%s4559 + $0x4] sm:$0xf]
  %v4562 = vld [vmem:[%s4559 + $0x8] sm:$0xf]
  %v4563 = vld [vmem:[%s4559 + $0xc] sm:$0xf]
  %v4564 = vld [vmem:[%s4559 + $0x10] sm:$0xf]
  %v4565 = vld [vmem:[%s4559 + $0x14] sm:$0xf]
  %v4566 = vld [vmem:[%s4559 + $0x18] sm:$0xf]
  %v4567 = vld [vmem:[%s4559 + $0x1c] sm:$0xf]
  %v4568 = vld [vmem:[%s4559 + $0x20] sm:$0xf]
  %v4569 = vld [vmem:[%s4559 + $0x24] sm:$0xf]
  %v4570 = vld [vmem:[%s4559 + $0x28] sm:$0xf]
  %v4571 = vld [vmem:[%s4559 + $0x2c] sm:$0xf]
  %v4572 = vld [vmem:[%s4559 + $0x30] sm:$0xf]
  %v4573 = vld [vmem:[%s4559 + $0x34] sm:$0xf]
  %v4574 = vld [vmem:[%s4559 + $0x38] sm:$0xf]
  %v4575 = vld [vmem:[%s4559 + $0x3c] sm:$0xf]
  %v4592 = vunpack.c.l.b16 %v4560
  %v4593 = vunpack.c.l.b16 %v4561
  %v4594 = vunpack.c.l.b16 %v4562
  %v4595 = vunpack.c.l.b16 %v4563
  %v4596 = vunpack.c.l.b16 %v4564
  %v4597 = vunpack.c.l.b16 %v4565
  %v4598 = vunpack.c.l.b16 %v4566
  %v4599 = vunpack.c.l.b16 %v4567
  %v4600 = vunpack.c.l.b16 %v4568
  %v4601 = vunpack.c.l.b16 %v4569
  %v4602 = vunpack.c.l.b16 %v4570
  %v4603 = vunpack.c.l.b16 %v4571
  %v4604 = vunpack.c.l.b16 %v4572
  %v4605 = vunpack.c.l.b16 %v4573
  %v4606 = vunpack.c.l.b16 %v4574
  %v4607 = vunpack.c.l.b16 %v4575
  %v4608 = vpack.c.b16 %v4593, %v4592
  %v4609 = vpack.c.b16 %v4595, %v4594
  %v4610 = vpack.c.b16 %v4597, %v4596
  %v4611 = vpack.c.b16 %v4599, %v4598
  %v4612 = vpack.c.b16 %v4601, %v4600
  %v4613 = vpack.c.b16 %v4603, %v4602
  %v4614 = vpack.c.b16 %v4605, %v4604
  %v4615 = vpack.c.b16 %v4607, %v4606
  %4624 = vmatpush.bf16.msra.mxu0 %v4615
  %4625 = vmatpush.bf16.msra.mxu0 %v4614
  %4626 = vmatpush.bf16.msra.mxu0 %v4613
  %4627 = vmatpush.bf16.msra.mxu0 %v4612
  %4628 = vmatpush.bf16.msra.mxu0 %v4611
  %4629 = vmatpush.bf16.msra.mxu0 %v4610
  %4630 = vmatpush.bf16.msra.mxu0 %v4609
  %4631 = vmatpush.bf16.msra.mxu0 %v4608
  %4632 = vmatmul.bf16.gmra.mxu0 %v4558
  %v4633 = vpop.f32.mrf.mxu0
  %v4634 = vadd.f32 0.0, %v4633
  %v4635 = vpop.f32.mrf.mxu0
  %4636 = vdwg.mxu0
  %v4653 = vunpack.c.l.b16 %v4525
  %v4654 = vunpack.c.l.b16 %v4526
  %v4655 = vunpack.c.l.b16 %v4527
  %v4656 = vunpack.c.l.b16 %v4528
  %v4657 = vunpack.c.l.b16 %v4529
  %v4658 = vunpack.c.l.b16 %v4530
  %v4659 = vunpack.c.l.b16 %v4531
  %v4660 = vunpack.c.l.b16 %v4532
  %v4661 = vunpack.c.l.b16 %v4533
  %v4662 = vunpack.c.l.b16 %v4534
  %v4663 = vunpack.c.l.b16 %v4535
  %v4664 = vunpack.c.l.b16 %v4536
  %v4665 = vunpack.c.l.b16 %v4537
  %v4666 = vunpack.c.l.b16 %v4538
  %v4667 = vunpack.c.l.b16 %v4539
  %v4668 = vunpack.c.l.b16 %v4540
  %v4669 = vpack.c.b16 %v4654, %v4653
  %v4670 = vpack.c.b16 %v4656, %v4655
  %v4671 = vpack.c.b16 %v4658, %v4657
  %v4672 = vpack.c.b16 %v4660, %v4659
  %v4673 = vpack.c.b16 %v4662, %v4661
  %v4674 = vpack.c.b16 %v4664, %v4663
  %v4675 = vpack.c.b16 %v4666, %v4665
  %v4676 = vpack.c.b16 %v4668, %v4667
  %4685 = vmatpush.bf16.msra.mxu0 %v4676
  %4686 = vmatpush.bf16.msra.mxu0 %v4675
  %4687 = vmatpush.bf16.msra.mxu0 %v4674
  %4688 = vmatpush.bf16.msra.mxu0 %v4673
  %4689 = vmatpush.bf16.msra.mxu0 %v4672
  %4690 = vmatpush.bf16.msra.mxu0 %v4671
  %4691 = vmatpush.bf16.msra.mxu0 %v4670
  %4692 = vmatpush.bf16.msra.mxu0 %v4669
  %4693 = vmatmul.bf16.gmra.mxu0 %v4524
  %v4694 = vpop.f32.mrf.mxu0
  %v4695 = vadd.f32 %v4634, %v4694
  %v4696 = vpop.f32.mrf.mxu0
  %4697 = vdwg.mxu0
  %s4698 = scalar_lea.vmem [#allocation5], 4
  %v4699 = vld [vmem:[%s4698] ss:$16 sm:$0x3]
  %v4700 = vld [vmem:[%s4698] ss:$16 sm:$0xc]
  %v4701 = vor.u32 %v4699, %v4700
  %v4702 = vld [vmem:[%s4698] ss:$16 sm:$0x30]
  %v4703 = vor.u32 %v4701, %v4702
  %v4704 = vld [vmem:[%s4698] ss:$16 sm:$0xc0]
  %v4705 = vor.u32 %v4703, %v4704
  %s4706 = scalar_lea.vmem [#allocation5], 5
  %v4707 = vld [vmem:[%s4706] ss:$16 sm:$0x3]
  %v4708 = vld [vmem:[%s4706] ss:$16 sm:$0xc]
  %v4709 = vor.u32 %v4707, %v4708
  %v4710 = vld [vmem:[%s4706] ss:$16 sm:$0x30]
  %v4711 = vor.u32 %v4709, %v4710
  %v4712 = vld [vmem:[%s4706] ss:$16 sm:$0xc0]
  %v4713 = vor.u32 %v4711, %v4712
  %v4714 = vmax.f32 %v4705, %v4713
  %v4715 = vpack.c.bf16 %v4714, %v4714
  %s4716 = scalar_lea.vmem %s5, 128
  %v4717 = vld [vmem:[%s4716] sm:$0xf]
  %v4718 = vld [vmem:[%s4716 + $0x4] sm:$0xf]
  %v4719 = vld [vmem:[%s4716 + $0x8] sm:$0xf]
  %v4720 = vld [vmem:[%s4716 + $0xc] sm:$0xf]
  %v4721 = vld [vmem:[%s4716 + $0x10] sm:$0xf]
  %v4722 = vld [vmem:[%s4716 + $0x14] sm:$0xf]
  %v4723 = vld [vmem:[%s4716 + $0x18] sm:$0xf]
  %v4724 = vld [vmem:[%s4716 + $0x1c] sm:$0xf]
  %v4725 = vld [vmem:[%s4716 + $0x20] sm:$0xf]
  %v4726 = vld [vmem:[%s4716 + $0x24] sm:$0xf]
  %v4727 = vld [vmem:[%s4716 + $0x28] sm:$0xf]
  %v4728 = vld [vmem:[%s4716 + $0x2c] sm:$0xf]
  %v4729 = vld [vmem:[%s4716 + $0x30] sm:$0xf]
  %v4730 = vld [vmem:[%s4716 + $0x34] sm:$0xf]
  %v4731 = vld [vmem:[%s4716 + $0x38] sm:$0xf]
  %v4732 = vld [vmem:[%s4716 + $0x3c] sm:$0xf]
  %v4749 = vunpack.c.l.b16 %v4717
  %v4750 = vunpack.c.l.b16 %v4718
  %v4751 = vunpack.c.l.b16 %v4719
  %v4752 = vunpack.c.l.b16 %v4720
  %v4753 = vunpack.c.l.b16 %v4721
  %v4754 = vunpack.c.l.b16 %v4722
  %v4755 = vunpack.c.l.b16 %v4723
  %v4756 = vunpack.c.l.b16 %v4724
  %v4757 = vunpack.c.l.b16 %v4725
  %v4758 = vunpack.c.l.b16 %v4726
  %v4759 = vunpack.c.l.b16 %v4727
  %v4760 = vunpack.c.l.b16 %v4728
  %v4761 = vunpack.c.l.b16 %v4729
  %v4762 = vunpack.c.l.b16 %v4730
  %v4763 = vunpack.c.l.b16 %v4731
  %v4764 = vunpack.c.l.b16 %v4732
  %v4765 = vpack.c.b16 %v4750, %v4749
  %v4766 = vpack.c.b16 %v4752, %v4751
  %v4767 = vpack.c.b16 %v4754, %v4753
  %v4768 = vpack.c.b16 %v4756, %v4755
  %v4769 = vpack.c.b16 %v4758, %v4757
  %v4770 = vpack.c.b16 %v4760, %v4759
  %v4771 = vpack.c.b16 %v4762, %v4761
  %v4772 = vpack.c.b16 %v4764, %v4763
  %4781 = vmatpush.bf16.msra.mxu0 %v4772
  %4782 = vmatpush.bf16.msra.mxu0 %v4771
  %4783 = vmatpush.bf16.msra.mxu0 %v4770
  %4784 = vmatpush.bf16.msra.mxu0 %v4769
  %4785 = vmatpush.bf16.msra.mxu0 %v4768
  %4786 = vmatpush.bf16.msra.mxu0 %v4767
  %4787 = vmatpush.bf16.msra.mxu0 %v4766
  %4788 = vmatpush.bf16.msra.mxu0 %v4765
  %4789 = vmatmul.bf16.gmra.mxu0 %v4715
  %v4790 = vpop.f32.mrf.mxu0
  %v4791 = vadd.f32 0.0, %v4790
  %v4792 = vpop.f32.mrf.mxu0
  %4793 = vdwg.mxu0
  %v4794 = vadd.f32 %v4695, %v4791
  %s4795 = scalar_lea.vmem [#allocation5], 6
  %v4796 = vld [vmem:[%s4795] ss:$16 sm:$0x3]
  %v4797 = vld [vmem:[%s4795] ss:$16 sm:$0xc]
  %v4798 = vor.u32 %v4796, %v4797
  %v4799 = vld [vmem:[%s4795] ss:$16 sm:$0x30]
  %v4800 = vor.u32 %v4798, %v4799
  %v4801 = vld [vmem:[%s4795] ss:$16 sm:$0xc0]
  %v4802 = vor.u32 %v4800, %v4801
  %s4803 = scalar_lea.vmem [#allocation5], 7
  %v4804 = vld [vmem:[%s4803] ss:$16 sm:$0x3]
  %v4805 = vld [vmem:[%s4803] ss:$16 sm:$0xc]
  %v4806 = vor.u32 %v4804, %v4805
  %v4807 = vld [vmem:[%s4803] ss:$16 sm:$0x30]
  %v4808 = vor.u32 %v4806, %v4807
  %v4809 = vld [vmem:[%s4803] ss:$16 sm:$0xc0]
  %v4810 = vor.u32 %v4808, %v4809
  %v4811 = vmax.f32 %v4802, %v4810
  %v4812 = vpack.c.bf16 %v4811, %v4811
  %s4813 = scalar_lea.vmem %s5, 192
  %v4814 = vld [vmem:[%s4813] sm:$0xf]
  %v4815 = vld [vmem:[%s4813 + $0x4] sm:$0xf]
  %v4816 = vld [vmem:[%s4813 + $0x8] sm:$0xf]
  %v4817 = vld [vmem:[%s4813 + $0xc] sm:$0xf]
  %v4818 = vld [vmem:[%s4813 + $0x10] sm:$0xf]
  %v4819 = vld [vmem:[%s4813 + $0x14] sm:$0xf]
  %v4820 = vld [vmem:[%s4813 + $0x18] sm:$0xf]
  %v4821 = vld [vmem:[%s4813 + $0x1c] sm:$0xf]
  %v4822 = vld [vmem:[%s4813 + $0x20] sm:$0xf]
  %v4823 = vld [vmem:[%s4813 + $0x24] sm:$0xf]
  %v4824 = vld [vmem:[%s4813 + $0x28] sm:$0xf]
  %v4825 = vld [vmem:[%s4813 + $0x2c] sm:$0xf]
  %v4826 = vld [vmem:[%s4813 + $0x30] sm:$0xf]
  %v4827 = vld [vmem:[%s4813 + $0x34] sm:$0xf]
  %v4828 = vld [vmem:[%s4813 + $0x38] sm:$0xf]
  %v4829 = vld [vmem:[%s4813 + $0x3c] sm:$0xf]
  %v4846 = vunpack.c.l.b16 %v4814
  %v4847 = vunpack.c.l.b16 %v4815
  %v4848 = vunpack.c.l.b16 %v4816
  %v4849 = vunpack.c.l.b16 %v4817
  %v4850 = vunpack.c.l.b16 %v4818
  %v4851 = vunpack.c.l.b16 %v4819
  %v4852 = vunpack.c.l.b16 %v4820
  %v4853 = vunpack.c.l.b16 %v4821
  %v4854 = vunpack.c.l.b16 %v4822
  %v4855 = vunpack.c.l.b16 %v4823
  %v4856 = vunpack.c.l.b16 %v4824
  %v4857 = vunpack.c.l.b16 %v4825
  %v4858 = vunpack.c.l.b16 %v4826
  %v4859 = vunpack.c.l.b16 %v4827
  %v4860 = vunpack.c.l.b16 %v4828
  %v4861 = vunpack.c.l.b16 %v4829
  %v4862 = vpack.c.b16 %v4847, %v4846
  %v4863 = vpack.c.b16 %v4849, %v4848
  %v4864 = vpack.c.b16 %v4851, %v4850
  %v4865 = vpack.c.b16 %v4853, %v4852
  %v4866 = vpack.c.b16 %v4855, %v4854
  %v4867 = vpack.c.b16 %v4857, %v4856
  %v4868 = vpack.c.b16 %v4859, %v4858
  %v4869 = vpack.c.b16 %v4861, %v4860
  %4878 = vmatpush.bf16.msra.mxu0 %v4869
  %4879 = vmatpush.bf16.msra.mxu0 %v4868
  %4880 = vmatpush.bf16.msra.mxu0 %v4867
  %4881 = vmatpush.bf16.msra.mxu0 %v4866
  %4882 = vmatpush.bf16.msra.mxu0 %v4865
  %4883 = vmatpush.bf16.msra.mxu0 %v4864
  %4884 = vmatpush.bf16.msra.mxu0 %v4863
  %4885 = vmatpush.bf16.msra.mxu0 %v4862
  %4886 = vmatmul.bf16.gmra.mxu0 %v4812
  %v4887 = vpop.f32.mrf.mxu0
  %v4888 = vadd.f32 0.0, %v4887
  %v4889 = vpop.f32.mrf.mxu0
  %4890 = vdwg.mxu0
  %v4891 = vadd.f32 %v4794, %v4888
  %s4892 = scalar_lea.vmem [#allocation5], 8
  %v4893 = vld [vmem:[%s4892] ss:$16 sm:$0x3]
  %v4894 = vld [vmem:[%s4892] ss:$16 sm:$0xc]
  %v4895 = vor.u32 %v4893, %v4894
  %v4896 = vld [vmem:[%s4892] ss:$16 sm:$0x30]
  %v4897 = vor.u32 %v4895, %v4896
  %v4898 = vld [vmem:[%s4892] ss:$16 sm:$0xc0]
  %v4899 = vor.u32 %v4897, %v4898
  %s4900 = scalar_lea.vmem [#allocation5], 9
  %v4901 = vld [vmem:[%s4900] ss:$16 sm:$0x3]
  %v4902 = vld [vmem:[%s4900] ss:$16 sm:$0xc]
  %v4903 = vor.u32 %v4901, %v4902
  %v4904 = vld [vmem:[%s4900] ss:$16 sm:$0x30]
  %v4905 = vor.u32 %v4903, %v4904
  %v4906 = vld [vmem:[%s4900] ss:$16 sm:$0xc0]
  %v4907 = vor.u32 %v4905, %v4906
  %v4908 = vmax.f32 %v4899, %v4907
  %v4909 = vpack.c.bf16 %v4908, %v4908
  %s4910 = scalar_lea.vmem %s5, 256
  %v4911 = vld [vmem:[%s4910] sm:$0xf]
  %v4912 = vld [vmem:[%s4910 + $0x4] sm:$0xf]
  %v4913 = vld [vmem:[%s4910 + $0x8] sm:$0xf]
  %v4914 = vld [vmem:[%s4910 + $0xc] sm:$0xf]
  %v4915 = vld [vmem:[%s4910 + $0x10] sm:$0xf]
  %v4916 = vld [vmem:[%s4910 + $0x14] sm:$0xf]
  %v4917 = vld [vmem:[%s4910 + $0x18] sm:$0xf]
  %v4918 = vld [vmem:[%s4910 + $0x1c] sm:$0xf]
  %v4919 = vld [vmem:[%s4910 + $0x20] sm:$0xf]
  %v4920 = vld [vmem:[%s4910 + $0x24] sm:$0xf]
  %v4921 = vld [vmem:[%s4910 + $0x28] sm:$0xf]
  %v4922 = vld [vmem:[%s4910 + $0x2c] sm:$0xf]
  %v4923 = vld [vmem:[%s4910 + $0x30] sm:$0xf]
  %v4924 = vld [vmem:[%s4910 + $0x34] sm:$0xf]
  %v4925 = vld [vmem:[%s4910 + $0x38] sm:$0xf]
  %v4926 = vld [vmem:[%s4910 + $0x3c] sm:$0xf]
  %v4943 = vunpack.c.l.b16 %v4911
  %v4944 = vunpack.c.l.b16 %v4912
  %v4945 = vunpack.c.l.b16 %v4913
  %v4946 = vunpack.c.l.b16 %v4914
  %v4947 = vunpack.c.l.b16 %v4915
  %v4948 = vunpack.c.l.b16 %v4916
  %v4949 = vunpack.c.l.b16 %v4917
  %v4950 = vunpack.c.l.b16 %v4918
  %v4951 = vunpack.c.l.b16 %v4919
  %v4952 = vunpack.c.l.b16 %v4920
  %v4953 = vunpack.c.l.b16 %v4921
  %v4954 = vunpack.c.l.b16 %v4922
  %v4955 = vunpack.c.l.b16 %v4923
  %v4956 = vunpack.c.l.b16 %v4924
  %v4957 = vunpack.c.l.b16 %v4925
  %v4958 = vunpack.c.l.b16 %v4926
  %v4959 = vpack.c.b16 %v4944, %v4943
  %v4960 = vpack.c.b16 %v4946, %v4945
  %v4961 = vpack.c.b16 %v4948, %v4947
  %v4962 = vpack.c.b16 %v4950, %v4949
  %v4963 = vpack.c.b16 %v4952, %v4951
  %v4964 = vpack.c.b16 %v4954, %v4953
  %v4965 = vpack.c.b16 %v4956, %v4955
  %v4966 = vpack.c.b16 %v4958, %v4957
  %4975 = vmatpush.bf16.msra.mxu0 %v4966
  %4976 = vmatpush.bf16.msra.mxu0 %v4965
  %4977 = vmatpush.bf16.msra.mxu0 %v4964
  %4978 = vmatpush.bf16.msra.mxu0 %v4963
  %4979 = vmatpush.bf16.msra.mxu0 %v4962
  %4980 = vmatpush.bf16.msra.mxu0 %v4961
  %4981 = vmatpush.bf16.msra.mxu0 %v4960
  %4982 = vmatpush.bf16.msra.mxu0 %v4959
  %4983 = vmatmul.bf16.gmra.mxu0 %v4909
  %v4984 = vpop.f32.mrf.mxu0
  %v4985 = vadd.f32 0.0, %v4984
  %v4986 = vpop.f32.mrf.mxu0
  %4987 = vdwg.mxu0
  %v4988 = vadd.f32 %v4891, %v4985
  %v4989 = vld [vmem:[%s6] sm:$0x1]
  %v4991 = vperm.slane %v4989, 0
  %v4993 = vadd.f32 %v4988, %v4991
  %v4994 = vmax.f32 %v4993, 0.0
  %v4995 = vpack.c.bf16 %v4994, %v4994
  %v4996 = vld [vmem:[%s7] sm:$0xf]
  %v4997 = vld [vmem:[%s7 + $0x4] sm:$0xf]
  %v4998 = vld [vmem:[%s7 + $0x8] sm:$0xf]
  %v4999 = vld [vmem:[%s7 + $0xc] sm:$0xf]
  %v5000 = vld [vmem:[%s7 + $0x10] sm:$0xf]
  %v5001 = vld [vmem:[%s7 + $0x14] sm:$0xf]
  %v5002 = vld [vmem:[%s7 + $0x18] sm:$0xf]
  %v5003 = vld [vmem:[%s7 + $0x1c] sm:$0xf]
  %v5004 = vld [vmem:[%s7 + $0x20] sm:$0xf]
  %v5005 = vld [vmem:[%s7 + $0x24] sm:$0xf]
  %v5006 = vld [vmem:[%s7 + $0x28] sm:$0xf]
  %v5007 = vld [vmem:[%s7 + $0x2c] sm:$0xf]
  %v5008 = vld [vmem:[%s7 + $0x30] sm:$0xf]
  %v5009 = vld [vmem:[%s7 + $0x34] sm:$0xf]
  %v5010 = vld [vmem:[%s7 + $0x38] sm:$0xf]
  %v5011 = vld [vmem:[%s8] sm:$0x1]
  %v5013 = vperm.slane %v5011, 0
  %v5030 = vunpack.c.l.b16 %v4996
  %v5031 = vunpack.c.l.b16 %v4997
  %v5032 = vunpack.c.l.b16 %v4998
  %v5033 = vunpack.c.l.b16 %v4999
  %v5034 = vunpack.c.l.b16 %v5000
  %v5035 = vunpack.c.l.b16 %v5001
  %v5036 = vunpack.c.l.b16 %v5002
  %v5037 = vunpack.c.l.b16 %v5003
  %v5038 = vunpack.c.l.b16 %v5004
  %v5039 = vunpack.c.l.b16 %v5005
  %v5040 = vunpack.c.l.b16 %v5006
  %v5041 = vunpack.c.l.b16 %v5007
  %v5042 = vunpack.c.l.b16 %v5008
  %v5043 = vunpack.c.l.b16 %v5009
  %v5044 = vunpack.c.l.b16 %v5010
  %v5045 = vpack.c.b16 %v5031, %v5030
  %v5046 = vpack.c.b16 %v5033, %v5032
  %v5047 = vpack.c.b16 %v5035, %v5034
  %v5048 = vpack.c.b16 %v5037, %v5036
  %v5049 = vpack.c.b16 %v5039, %v5038
  %v5050 = vpack.c.b16 %v5041, %v5040
  %v5051 = vpack.c.b16 %v5043, %v5042
  %v5052 = vpack.c.b16 %v5044, %v5044
  %vm5060 = vcmask 982016
  %v5062 = vsel %vm5060, %v4995, 0
  %vm5064 = vcmask 1043456
  %v5066 = vsel %vm5064, %v5052, 0
  %5068 = vmatpush.bf16.msra.mxu0 %v5066
  %5069 = vmatpush.bf16.msra.mxu0 %v5051
  %5070 = vmatpush.bf16.msra.mxu0 %v5050
  %5071 = vmatpush.bf16.msra.mxu0 %v5049
  %5072 = vmatpush.bf16.msra.mxu0 %v5048
  %5073 = vmatpush.bf16.msra.mxu0 %v5047
  %5074 = vmatpush.bf16.msra.mxu0 %v5046
  %5075 = vmatpush.bf16.msra.mxu0 %v5045
  %5076 = vmatmul.bf16.gmra.mxu0 %v5062
  %v5077 = vpop.f32.mrf.mxu0
  %v5078 = vadd.f32 %v5013, %v5077
  %v5079 = vpop.f32.mrf.mxu0
  %5080 = vdwg.mxu0
  %v5081 = vmax.f32 %v5078, 0.0
  %v5082 = vpack.c.bf16 %v5081, %v5081
  %v5083 = vld [vmem:[%s9] sm:$0xf]
  %v5084 = vld [vmem:[%s9 + $0x4] sm:$0xf]
  %v5085 = vld [vmem:[%s9 + $0x8] sm:$0xf]
  %v5086 = vld [vmem:[%s9 + $0xc] sm:$0xf]
  %v5087 = vld [vmem:[%s9 + $0x10] sm:$0xf]
  %v5088 = vld [vmem:[%s9 + $0x14] sm:$0xf]
  %v5089 = vld [vmem:[%s9 + $0x18] sm:$0xf]
  %v5090 = vld [vmem:[%s9 + $0x1c] sm:$0xf]
  %v5091 = vld [vmem:[%s9 + $0x20] sm:$0xf]
  %v5092 = vld [vmem:[%s9 + $0x24] sm:$0xf]
  %v5093 = vld [vmem:[%s9 + $0x28] sm:$0x3]
  %v5094 = vld [vmem:[%s10] sm:$0x1]
  %v5096 = vperm.slane %v5094, 0
  %v5109 = vunpack.c.l.b16 %v5083
  %v5110 = vunpack.c.l.b16 %v5084
  %v5111 = vunpack.c.l.b16 %v5085
  %v5112 = vunpack.c.l.b16 %v5086
  %v5113 = vunpack.c.l.b16 %v5087
  %v5114 = vunpack.c.l.b16 %v5088
  %v5115 = vunpack.c.l.b16 %v5089
  %v5116 = vunpack.c.l.b16 %v5090
  %v5117 = vunpack.c.l.b16 %v5091
  %v5118 = vunpack.c.l.b16 %v5092
  %v5119 = vunpack.c.l.b16 %v5093
  %v5120 = vpack.c.b16 %v5110, %v5109
  %v5121 = vpack.c.b16 %v5112, %v5111
  %v5122 = vpack.c.b16 %v5114, %v5113
  %v5123 = vpack.c.b16 %v5116, %v5115
  %v5124 = vpack.c.b16 %v5118, %v5117
  %v5125 = vpack.c.b16 %v5119, %v5119
  %vm5131 = vcmask 687104
  %v5133 = vsel %vm5131, %v5082, 0
  %vm5135 = vcmask 1041408
  %v5137 = vsel %vm5135, %v5125, 0
  %5139 = vmatpush.bf16.msra.mxu0 0
  %5140 = vmatpush.bf16.msra.mxu0 0
  %5141 = vmatpush.bf16.msra.mxu0 %v5137
  %5142 = vmatpush.bf16.msra.mxu0 %v5124
  %5143 = vmatpush.bf16.msra.mxu0 %v5123
  %5144 = vmatpush.bf16.msra.mxu0 %v5122
  %5145 = vmatpush.bf16.msra.mxu0 %v5121
  %5146 = vmatpush.bf16.msra.mxu0 %v5120
  %5147 = vmatmul.bf16.gmra.mxu0 %v5133
  %v5148 = vpop.f32.mrf.mxu0
  %v5149 = vadd.f32 %v5096, %v5148
  %v5150 = vpop.f32.mrf.mxu0
  %5151 = vdwg.mxu0
  %vm5152 = vcmask 80896
  %5153 = vst.msk [vmem:[%s11] sm:$0xff] %vm5152, %v5149
  // Predicated region
  $region46: #{net_forward.1} parent=0 // pred_check
    _
  $region47: #{net_forward.1} parent=0 // pred_check_branch
    %5155 = sbr.rel (0) target = $region49
  $region48: #{net_forward.1} parent=0 // pred_region
    _
  $region49: #{net_forward.1} parent=0 // pred_fallthru
    _
  // Predicated region
  $region50: #{net_forward.1} parent=0 // pred_check
    _
  $region51: #{net_forward.1} parent=0 // pred_check_branch
    %5157 = sbr.rel (0) target = $region53
  $region52: #{net_forward.1} parent=0 // pred_region
    _
  $region53: #{net_forward.1} parent=0 // pred_fallthru
    _

</llo_original>
